<compile_context>
chip_gen: v7x
topology: tpu7x:2x2x1
jax: 0.10.0
libtpu: 0.0.40
codegen_flags: <defaults>
</compile_context>

<pallas_src>
import functools

import jax
import jax.numpy as jnp
from jax.experimental import pallas as pl
from jax.experimental.pallas import tpu as pltpu


def qkv_proj_kernel(x_ref, wqkv_ref, bqkv_ref, qo_ref, ko_ref, vo_ref, *, heads):
    x = x_ref[0]                                   # (tq, D) f32
    D = x.shape[-1]
    hd = D // heads
    scale = hd ** (-0.5)

    qkv = jnp.dot(x.astype(jnp.bfloat16), wqkv_ref[...],
                  preferred_element_type=jnp.float32) + bqkv_ref[...]    # (tq, 3D) f32

    q = qkv[:, 0 * D:1 * D] * scale               # fold softmax scale into q (once per token)
    k = qkv[:, 1 * D:2 * D]
    v = qkv[:, 2 * D:3 * D]

    # Layout-only head split: static lane slices stored to (heads, tq, hd). No per-head
    # matmuls and no concatenate in the attention inner loop.
    for h in range(heads):
        sl = slice(h * hd, (h + 1) * hd)
        qo_ref[0, h] = q[:, sl].astype(jnp.bfloat16)
        ko_ref[0, h] = k[:, sl].astype(jnp.bfloat16)
        vo_ref[0, h] = v[:, sl].astype(jnp.bfloat16)


def flash_attn_kernel(q_ref, k_ref, v_ref, wp_ref, bp_ref, o_ref,
                      m_sc, l_sc, acc_sc, *, heads):
    ki = pl.program_id(2)

    @pl.when(ki == 0)
    def _():
        m_sc[...] = jnp.full_like(m_sc, -jnp.inf)
        l_sc[...] = jnp.zeros_like(l_sc)
        acc_sc[...] = jnp.zeros_like(acc_sc)

    q = q_ref[0]          # (heads, tq, hd) bf16, already scaled
    k = k_ref[0]          # (heads, tk, hd) bf16
    v = v_ref[0]          # (heads, tk, hd) bf16

    # Head-batched score matmul on the MXU.
    s = jnp.einsum("hqd,hkd->hqk", q, k,
                   preferred_element_type=jnp.float32)        # (heads, tq, tk) f32

    m_prev = m_sc[...]
    m_new = jnp.maximum(m_prev, jnp.max(s, axis=-1, keepdims=True))
    alpha = jnp.exp(m_prev - m_new)
    p = jnp.exp(s - m_new)                                    # f32 elementwise (EUP)
    l_sc[...] = alpha * l_sc[...] + jnp.sum(p, axis=-1, keepdims=True)
    acc_sc[...] = alpha * acc_sc[...] + jnp.einsum(
        "hqk,hkd->hqd", p.astype(v.dtype), v, preferred_element_type=jnp.float32)
    m_sc[...] = m_new

    @pl.when(ki == pl.num_programs(2) - 1)
    def _():
        out = acc_sc[...] * pl.reciprocal(l_sc[...], approx=True)   # (heads, tq, hd)
        # Merge heads (lane concat, once per q-tile) and fuse the output projection.
        attn2d = jnp.concatenate([out[h] for h in range(heads)], axis=-1)  # (tq, D)
        proj = jnp.dot(attn2d.astype(jnp.bfloat16), wp_ref[...],
                       preferred_element_type=jnp.float32) + bp_ref[...]
        o_ref[0] = proj.astype(o_ref.dtype)


def gemini_flash_attention(x, params, *, heads, tq=128, tk=128):
    B, S, D = x.shape
    assert D % heads == 0, "dim must be divisible by heads"
    hd = D // heads
    tq = min(tq, S)
    tk = min(tk, S)
    assert S % tq == 0 and S % tk == 0, "seq must be divisible by tile sizes"

    # bf16 weights: halves HBM->VMEM DMA + VMEM residency, hits the bf16 MXU path.
    wqkv = params["wqkv"].astype(jnp.bfloat16)
    wp = params["wp"].astype(jnp.bfloat16)
    bqkv = params["bqkv"].astype(jnp.float32)
    bp = params["bp"].astype(jnp.float32)

    def cparams(sem):
        return pltpu.CompilerParams(dimension_semantics=sem,
                                    vmem_limit_bytes=48 * 1024 * 1024)

    # ---- kernel 1: QKV projection + head split -> (B, heads, S, hd) bf16 ----
    head_shape = jax.ShapeDtypeStruct((B, heads, S, hd), jnp.bfloat16)
    head_out_spec = pl.BlockSpec((1, heads, tq, hd), lambda b, si: (b, 0, si, 0))
    # TODO(synk): for large D the (D, 3D) weight should be K-tiled with an accumulator
    # (and single-buffered) instead of loaded full-size per grid step.
    q, k, v = pl.pallas_call(
        functools.partial(qkv_proj_kernel, heads=heads),
        out_shape=(head_shape, head_shape, head_shape),
        grid_spec=pltpu.PrefetchScalarGridSpec(
            num_scalar_prefetch=0,
            grid=(B, S // tq),
            in_specs=[
                pl.BlockSpec((1, tq, D), lambda b, si: (b, si, 0)),
                pl.BlockSpec((D, 3 * D), lambda b, si: (0, 0)),
                pl.BlockSpec((1, 3 * D), lambda b, si: (0, 0)),
            ],
            out_specs=[head_out_spec, head_out_spec, head_out_spec],
        ),
        compiler_params=cparams(("parallel", "parallel")),
    )(x, wqkv, bqkv)

    # ---- kernel 2: flash attention over KV tiles + fused output projection ----
    out = pl.pallas_call(
        functools.partial(flash_attn_kernel, heads=heads),
        out_shape=jax.ShapeDtypeStruct((B, S, D), jnp.float32),
        grid_spec=pltpu.PrefetchScalarGridSpec(
            num_scalar_prefetch=0,
            grid=(B, S // tq, S // tk),
            in_specs=[
                pl.BlockSpec((1, heads, tq, hd), lambda b, qi, ki: (b, 0, qi, 0)),
                pl.BlockSpec((1, heads, tk, hd), lambda b, qi, ki: (b, 0, ki, 0)),
                pl.BlockSpec((1, heads, tk, hd), lambda b, qi, ki: (b, 0, ki, 0)),
                pl.BlockSpec((D, D), lambda b, qi, ki: (0, 0)),
                pl.BlockSpec((1, D), lambda b, qi, ki: (0, 0)),
            ],
            out_specs=pl.BlockSpec((1, tq, D), lambda b, qi, ki: (b, qi, 0)),
            scratch_shapes=[
                pltpu.VMEM((heads, tq, 1), jnp.float32),   # running max m
                pltpu.VMEM((heads, tq, 1), jnp.float32),   # running sum l
                pltpu.VMEM((heads, tq, hd), jnp.float32),  # output accumulator
            ],
        ),
        compiler_params=cparams(("parallel", "parallel", "arbitrary")),
    )(q, k, v, wp, bp)
    return out


def reference_attention(x, p, *, heads):
    """Pure-JAX f32 reference matching the PyTorch forward (mask=None, dropout=identity)."""
    B, S, D = x.shape
    hd = D // heads
    scale = hd ** (-0.5)
    qkv = x @ p["wqkv"] + p["bqkv"]                 # (B, S, 3D)
    qkv = qkv.reshape(B, S, 3, heads, hd)
    q = jnp.transpose(qkv[:, :, 0], (0, 2, 1, 3))   # (B, h, S, hd)
    k = jnp.transpose(qkv[:, :, 1], (0, 2, 1, 3))
    v = jnp.transpose(qkv[:, :, 2], (0, 2, 1, 3))
    attn = jax.nn.softmax(jnp.einsum("bhqd,bhkd->bhqk", q, k) * scale, axis=-1)
    out = jnp.einsum("bhqk,bhkd->bhqd", attn, v)
    out = jnp.transpose(out, (0, 2, 1, 3)).reshape(B, S, D)
    return out @ p["wp"] + p["bp"]


if __name__ == "__main__":
    # Small but lane-aligned demo shapes; S=256 with 128-wide tiles exercises
    # multiple q-tiles and multiple kv steps of the online softmax.
    B, S, D, heads = 2, 256, 128, 8

    key = jax.random.PRNGKey(0)
    keys = jax.random.split(key, 5)
    w_scale = 0.05
    params = {
        "wqkv": w_scale * jax.random.normal(keys[0], (D, 3 * D), jnp.float32),
        "bqkv": w_scale * jax.random.normal(keys[1], (1, 3 * D), jnp.float32),
        "wp":   w_scale * jax.random.normal(keys[2], (D, D), jnp.float32),
        "bp":   w_scale * jax.random.normal(keys[3], (1, D), jnp.float32),
    }
    x = jax.random.normal(keys[4], (B, S, D), jnp.float32)

    out = gemini_flash_attention(x, params, heads=heads)
    out = jax.block_until_ready(out)

    ref = reference_attention(x, params, heads=heads)
    assert out.shape == (B, S, D)
    # bf16 matmul inputs (f32 accumulation) -> loosened tolerance vs f32 reference.
    assert jnp.allclose(out, ref, atol=2e-2, rtol=2e-2), "mismatch vs JAX reference"

    print("KERNEL_OK")
</pallas_src>

<mosaic_0001>
module attributes {stable_mosaic.version = 11 : i64} {
  func.func @qkv_proj_kernel(%arg0: i32, %arg1: i32, %arg2: memref<1x128x128xf32, #tpu.memory_space<vmem>>, %arg3: memref<128x384xbf16, #tpu.memory_space<vmem>>, %arg4: memref<1x384xf32, #tpu.memory_space<vmem>>, %arg5: memref<1x8x128x16xbf16, #tpu.memory_space<vmem>>, %arg6: memref<1x8x128x16xbf16, #tpu.memory_space<vmem>>, %arg7: memref<1x8x128x16xbf16, #tpu.memory_space<vmem>>) attributes {dimension_semantics = [#tpu.dimension_semantics<parallel>, #tpu.dimension_semantics<parallel>], iteration_bounds = array<i64: 2, 2>, scalar_prefetch = 0 : i64, scratch_operands = 0 : i64, tpu.core_type = #tpu.core_type<tc>, window_params = [{transform_indices = @transform_0, window_bounds = array<i64: 1, 128, 128>}, {pipeline_mode = #tpu.pipeline_mode<synchronous>, transform_indices = @transform_1, window_bounds = array<i64: 128, 384>}, {pipeline_mode = #tpu.pipeline_mode<synchronous>, transform_indices = @transform_2, window_bounds = array<i64: 1, 384>}, {transform_indices = @transform_3, window_bounds = array<i64: 1, 8, 128, 16>}, {transform_indices = @transform_4, window_bounds = array<i64: 1, 8, 128, 16>}, {transform_indices = @transform_5, window_bounds = array<i64: 1, 8, 128, 16>}]} {
    %c0 = arith.constant 0 : index
    %c0_0 = arith.constant 0 : index
    %c0_1 = arith.constant 0 : index
    %0 = vector.load %arg2[%c0, %c0_0, %c0_1] : memref<1x128x128xf32, #tpu.memory_space<vmem>>, vector<1x128x128xf32>
    %1 = vector.shape_cast %0 : vector<1x128x128xf32> to vector<128x128xf32>
    %2 = arith.truncf %1 : vector<128x128xf32> to vector<128x128xbf16>
    %c0_2 = arith.constant 0 : index
    %c0_3 = arith.constant 0 : index
    %3 = vector.load %arg3[%c0_2, %c0_3] : memref<128x384xbf16, #tpu.memory_space<vmem>>, vector<128x384xbf16>
    %cst = arith.constant dense<0.000000e+00> : vector<128x384xf32>
    %4 = tpu.matmul %2, %3, %cst {dimension_numbers = #tpu.dot_dimension_numbers<[1], [0], [0], [1], [0, 0, 1, 1], [], []>} : vector<128x128xbf16>, vector<128x384xbf16>, vector<128x384xf32> -> vector<128x384xf32>
    %c0_4 = arith.constant 0 : index
    %c0_5 = arith.constant 0 : index
    %5 = vector.load %arg4[%c0_4, %c0_5] : memref<1x384xf32, #tpu.memory_space<vmem>>, vector<1x384xf32>
    %6 = vector.broadcast %5 : vector<1x384xf32> to vector<128x384xf32>
    %7 = arith.addf %4, %6 : vector<128x384xf32>
    %8 = vector.extract_strided_slice %7 {offsets = [0, 0], sizes = [128, 128], strides = [1, 1]} : vector<128x384xf32> to vector<128x128xf32>
    %cst_6 = arith.constant 2.500000e-01 : f32
    %9 = vector.broadcast %cst_6 : f32 to vector<128x128xf32>
    %10 = arith.mulf %8, %9 : vector<128x128xf32>
    %11 = vector.extract_strided_slice %7 {offsets = [0, 128], sizes = [128, 128], strides = [1, 1]} : vector<128x384xf32> to vector<128x128xf32>
    %12 = vector.extract_strided_slice %7 {offsets = [0, 256], sizes = [128, 128], strides = [1, 1]} : vector<128x384xf32> to vector<128x128xf32>
    %13 = vector.extract_strided_slice %10 {offsets = [0, 0], sizes = [128, 16], strides = [1, 1]} : vector<128x128xf32> to vector<128x16xf32>
    %14 = arith.truncf %13 : vector<128x16xf32> to vector<128x16xbf16>
    %c0_7 = arith.constant 0 : index
    %c0_8 = arith.constant 0 : index
    %c0_9 = arith.constant 0 : index
    %c0_10 = arith.constant 0 : index
    %15 = vector.load %arg5[%c0_7, %c0_8, %c0_9, %c0_10] : memref<1x8x128x16xbf16, #tpu.memory_space<vmem>>, vector<1x1x128x16xbf16>
    %16 = vector.shape_cast %15 : vector<1x1x128x16xbf16> to vector<128x16xbf16>
    %17 = vector.shape_cast %14 : vector<128x16xbf16> to vector<1x1x128x16xbf16>
    tpu.vector_store %arg5[%c0_7, %c0_8, %c0_9, %c0_10], %17 {strides = array<i32>} : memref<1x8x128x16xbf16, #tpu.memory_space<vmem>>, vector<1x1x128x16xbf16>,
    %18 = vector.extract_strided_slice %11 {offsets = [0, 0], sizes = [128, 16], strides = [1, 1]} : vector<128x128xf32> to vector<128x16xf32>
    %19 = arith.truncf %18 : vector<128x16xf32> to vector<128x16xbf16>
    %c0_11 = arith.constant 0 : index
    %c0_12 = arith.constant 0 : index
    %c0_13 = arith.constant 0 : index
    %c0_14 = arith.constant 0 : index
    %20 = vector.load %arg6[%c0_11, %c0_12, %c0_13, %c0_14] : memref<1x8x128x16xbf16, #tpu.memory_space<vmem>>, vector<1x1x128x16xbf16>
    %21 = vector.shape_cast %20 : vector<1x1x128x16xbf16> to vector<128x16xbf16>
    %22 = vector.shape_cast %19 : vector<128x16xbf16> to vector<1x1x128x16xbf16>
    tpu.vector_store %arg6[%c0_11, %c0_12, %c0_13, %c0_14], %22 {strides = array<i32>} : memref<1x8x128x16xbf16, #tpu.memory_space<vmem>>, vector<1x1x128x16xbf16>,
    %23 = vector.extract_strided_slice %12 {offsets = [0, 0], sizes = [128, 16], strides = [1, 1]} : vector<128x128xf32> to vector<128x16xf32>
    %24 = arith.truncf %23 : vector<128x16xf32> to vector<128x16xbf16>
    %c0_15 = arith.constant 0 : index
    %c0_16 = arith.constant 0 : index
    %c0_17 = arith.constant 0 : index
    %c0_18 = arith.constant 0 : index
    %25 = vector.load %arg7[%c0_15, %c0_16, %c0_17, %c0_18] : memref<1x8x128x16xbf16, #tpu.memory_space<vmem>>, vector<1x1x128x16xbf16>
    %26 = vector.shape_cast %25 : vector<1x1x128x16xbf16> to vector<128x16xbf16>
    %27 = vector.shape_cast %24 : vector<128x16xbf16> to vector<1x1x128x16xbf16>
    tpu.vector_store %arg7[%c0_15, %c0_16, %c0_17, %c0_18], %27 {strides = array<i32>} : memref<1x8x128x16xbf16, #tpu.memory_space<vmem>>, vector<1x1x128x16xbf16>,
    %28 = vector.extract_strided_slice %10 {offsets = [0, 16], sizes = [128, 16], strides = [1, 1]} : vector<128x128xf32> to vector<128x16xf32>
    %29 = arith.truncf %28 : vector<128x16xf32> to vector<128x16xbf16>
    %c0_19 = arith.constant 0 : index
    %c1 = arith.constant 1 : index
    %c0_20 = arith.constant 0 : index
    %c0_21 = arith.constant 0 : index
    %30 = vector.load %arg5[%c0_19, %c1, %c0_20, %c0_21] : memref<1x8x128x16xbf16, #tpu.memory_space<vmem>>, vector<1x1x128x16xbf16>
    %31 = vector.shape_cast %30 : vector<1x1x128x16xbf16> to vector<128x16xbf16>
    %32 = vector.shape_cast %29 : vector<128x16xbf16> to vector<1x1x128x16xbf16>
    tpu.vector_store %arg5[%c0_19, %c1, %c0_20, %c0_21], %32 {strides = array<i32>} : memref<1x8x128x16xbf16, #tpu.memory_space<vmem>>, vector<1x1x128x16xbf16>,
    %33 = vector.extract_strided_slice %11 {offsets = [0, 16], sizes = [128, 16], strides = [1, 1]} : vector<128x128xf32> to vector<128x16xf32>
    %34 = arith.truncf %33 : vector<128x16xf32> to vector<128x16xbf16>
    %c0_22 = arith.constant 0 : index
    %c1_23 = arith.constant 1 : index
    %c0_24 = arith.constant 0 : index
    %c0_25 = arith.constant 0 : index
    %35 = vector.load %arg6[%c0_22, %c1_23, %c0_24, %c0_25] : memref<1x8x128x16xbf16, #tpu.memory_space<vmem>>, vector<1x1x128x16xbf16>
    %36 = vector.shape_cast %35 : vector<1x1x128x16xbf16> to vector<128x16xbf16>
    %37 = vector.shape_cast %34 : vector<128x16xbf16> to vector<1x1x128x16xbf16>
    tpu.vector_store %arg6[%c0_22, %c1_23, %c0_24, %c0_25], %37 {strides = array<i32>} : memref<1x8x128x16xbf16, #tpu.memory_space<vmem>>, vector<1x1x128x16xbf16>,
    %38 = vector.extract_strided_slice %12 {offsets = [0, 16], sizes = [128, 16], strides = [1, 1]} : vector<128x128xf32> to vector<128x16xf32>
    %39 = arith.truncf %38 : vector<128x16xf32> to vector<128x16xbf16>
    %c0_26 = arith.constant 0 : index
    %c1_27 = arith.constant 1 : index
    %c0_28 = arith.constant 0 : index
    %c0_29 = arith.constant 0 : index
    %40 = vector.load %arg7[%c0_26, %c1_27, %c0_28, %c0_29] : memref<1x8x128x16xbf16, #tpu.memory_space<vmem>>, vector<1x1x128x16xbf16>
    %41 = vector.shape_cast %40 : vector<1x1x128x16xbf16> to vector<128x16xbf16>
    %42 = vector.shape_cast %39 : vector<128x16xbf16> to vector<1x1x128x16xbf16>
    tpu.vector_store %arg7[%c0_26, %c1_27, %c0_28, %c0_29], %42 {strides = array<i32>} : memref<1x8x128x16xbf16, #tpu.memory_space<vmem>>, vector<1x1x128x16xbf16>,
    %43 = vector.extract_strided_slice %10 {offsets = [0, 32], sizes = [128, 16], strides = [1, 1]} : vector<128x128xf32> to vector<128x16xf32>
    %44 = arith.truncf %43 : vector<128x16xf32> to vector<128x16xbf16>
    %c0_30 = arith.constant 0 : index
    %c2 = arith.constant 2 : index
    %c0_31 = arith.constant 0 : index
    %c0_32 = arith.constant 0 : index
    %45 = vector.load %arg5[%c0_30, %c2, %c0_31, %c0_32] : memref<1x8x128x16xbf16, #tpu.memory_space<vmem>>, vector<1x1x128x16xbf16>
    %46 = vector.shape_cast %45 : vector<1x1x128x16xbf16> to vector<128x16xbf16>
    %47 = vector.shape_cast %44 : vector<128x16xbf16> to vector<1x1x128x16xbf16>
    tpu.vector_store %arg5[%c0_30, %c2, %c0_31, %c0_32], %47 {strides = array<i32>} : memref<1x8x128x16xbf16, #tpu.memory_space<vmem>>, vector<1x1x128x16xbf16>,
    %48 = vector.extract_strided_slice %11 {offsets = [0, 32], sizes = [128, 16], strides = [1, 1]} : vector<128x128xf32> to vector<128x16xf32>
    %49 = arith.truncf %48 : vector<128x16xf32> to vector<128x16xbf16>
    %c0_33 = arith.constant 0 : index
    %c2_34 = arith.constant 2 : index
    %c0_35 = arith.constant 0 : index
    %c0_36 = arith.constant 0 : index
    %50 = vector.load %arg6[%c0_33, %c2_34, %c0_35, %c0_36] : memref<1x8x128x16xbf16, #tpu.memory_space<vmem>>, vector<1x1x128x16xbf16>
    %51 = vector.shape_cast %50 : vector<1x1x128x16xbf16> to vector<128x16xbf16>
    %52 = vector.shape_cast %49 : vector<128x16xbf16> to vector<1x1x128x16xbf16>
    tpu.vector_store %arg6[%c0_33, %c2_34, %c0_35, %c0_36], %52 {strides = array<i32>} : memref<1x8x128x16xbf16, #tpu.memory_space<vmem>>, vector<1x1x128x16xbf16>,
    %53 = vector.extract_strided_slice %12 {offsets = [0, 32], sizes = [128, 16], strides = [1, 1]} : vector<128x128xf32> to vector<128x16xf32>
    %54 = arith.truncf %53 : vector<128x16xf32> to vector<128x16xbf16>
    %c0_37 = arith.constant 0 : index
    %c2_38 = arith.constant 2 : index
    %c0_39 = arith.constant 0 : index
    %c0_40 = arith.constant 0 : index
    %55 = vector.load %arg7[%c0_37, %c2_38, %c0_39, %c0_40] : memref<1x8x128x16xbf16, #tpu.memory_space<vmem>>, vector<1x1x128x16xbf16>
    %56 = vector.shape_cast %55 : vector<1x1x128x16xbf16> to vector<128x16xbf16>
    %57 = vector.shape_cast %54 : vector<128x16xbf16> to vector<1x1x128x16xbf16>
    tpu.vector_store %arg7[%c0_37, %c2_38, %c0_39, %c0_40], %57 {strides = array<i32>} : memref<1x8x128x16xbf16, #tpu.memory_space<vmem>>, vector<1x1x128x16xbf16>,
    %58 = vector.extract_strided_slice %10 {offsets = [0, 48], sizes = [128, 16], strides = [1, 1]} : vector<128x128xf32> to vector<128x16xf32>
    %59 = arith.truncf %58 : vector<128x16xf32> to vector<128x16xbf16>
    %c0_41 = arith.constant 0 : index
    %c3 = arith.constant 3 : index
    %c0_42 = arith.constant 0 : index
    %c0_43 = arith.constant 0 : index
    %60 = vector.load %arg5[%c0_41, %c3, %c0_42, %c0_43] : memref<1x8x128x16xbf16, #tpu.memory_space<vmem>>, vector<1x1x128x16xbf16>
    %61 = vector.shape_cast %60 : vector<1x1x128x16xbf16> to vector<128x16xbf16>
    %62 = vector.shape_cast %59 : vector<128x16xbf16> to vector<1x1x128x16xbf16>
    tpu.vector_store %arg5[%c0_41, %c3, %c0_42, %c0_43], %62 {strides = array<i32>} : memref<1x8x128x16xbf16, #tpu.memory_space<vmem>>, vector<1x1x128x16xbf16>,
    %63 = vector.extract_strided_slice %11 {offsets = [0, 48], sizes = [128, 16], strides = [1, 1]} : vector<128x128xf32> to vector<128x16xf32>
    %64 = arith.truncf %63 : vector<128x16xf32> to vector<128x16xbf16>
    %c0_44 = arith.constant 0 : index
    %c3_45 = arith.constant 3 : index
    %c0_46 = arith.constant 0 : index
    %c0_47 = arith.constant 0 : index
    %65 = vector.load %arg6[%c0_44, %c3_45, %c0_46, %c0_47] : memref<1x8x128x16xbf16, #tpu.memory_space<vmem>>, vector<1x1x128x16xbf16>
    %66 = vector.shape_cast %65 : vector<1x1x128x16xbf16> to vector<128x16xbf16>
    %67 = vector.shape_cast %64 : vector<128x16xbf16> to vector<1x1x128x16xbf16>
    tpu.vector_store %arg6[%c0_44, %c3_45, %c0_46, %c0_47], %67 {strides = array<i32>} : memref<1x8x128x16xbf16, #tpu.memory_space<vmem>>, vector<1x1x128x16xbf16>,
    %68 = vector.extract_strided_slice %12 {offsets = [0, 48], sizes = [128, 16], strides = [1, 1]} : vector<128x128xf32> to vector<128x16xf32>
    %69 = arith.truncf %68 : vector<128x16xf32> to vector<128x16xbf16>
    %c0_48 = arith.constant 0 : index
    %c3_49 = arith.constant 3 : index
    %c0_50 = arith.constant 0 : index
    %c0_51 = arith.constant 0 : index
    %70 = vector.load %arg7[%c0_48, %c3_49, %c0_50, %c0_51] : memref<1x8x128x16xbf16, #tpu.memory_space<vmem>>, vector<1x1x128x16xbf16>
    %71 = vector.shape_cast %70 : vector<1x1x128x16xbf16> to vector<128x16xbf16>
    %72 = vector.shape_cast %69 : vector<128x16xbf16> to vector<1x1x128x16xbf16>
    tpu.vector_store %arg7[%c0_48, %c3_49, %c0_50, %c0_51], %72 {strides = array<i32>} : memref<1x8x128x16xbf16, #tpu.memory_space<vmem>>, vector<1x1x128x16xbf16>,
    %73 = vector.extract_strided_slice %10 {offsets = [0, 64], sizes = [128, 16], strides = [1, 1]} : vector<128x128xf32> to vector<128x16xf32>
    %74 = arith.truncf %73 : vector<128x16xf32> to vector<128x16xbf16>
    %c0_52 = arith.constant 0 : index
    %c4 = arith.constant 4 : index
    %c0_53 = arith.constant 0 : index
    %c0_54 = arith.constant 0 : index
    %75 = vector.load %arg5[%c0_52, %c4, %c0_53, %c0_54] : memref<1x8x128x16xbf16, #tpu.memory_space<vmem>>, vector<1x1x128x16xbf16>
    %76 = vector.shape_cast %75 : vector<1x1x128x16xbf16> to vector<128x16xbf16>
    %77 = vector.shape_cast %74 : vector<128x16xbf16> to vector<1x1x128x16xbf16>
    tpu.vector_store %arg5[%c0_52, %c4, %c0_53, %c0_54], %77 {strides = array<i32>} : memref<1x8x128x16xbf16, #tpu.memory_space<vmem>>, vector<1x1x128x16xbf16>,
    %78 = vector.extract_strided_slice %11 {offsets = [0, 64], sizes = [128, 16], strides = [1, 1]} : vector<128x128xf32> to vector<128x16xf32>
    %79 = arith.truncf %78 : vector<128x16xf32> to vector<128x16xbf16>
    %c0_55 = arith.constant 0 : index
    %c4_56 = arith.constant 4 : index
    %c0_57 = arith.constant 0 : index
    %c0_58 = arith.constant 0 : index
    %80 = vector.load %arg6[%c0_55, %c4_56, %c0_57, %c0_58] : memref<1x8x128x16xbf16, #tpu.memory_space<vmem>>, vector<1x1x128x16xbf16>
    %81 = vector.shape_cast %80 : vector<1x1x128x16xbf16> to vector<128x16xbf16>
    %82 = vector.shape_cast %79 : vector<128x16xbf16> to vector<1x1x128x16xbf16>
    tpu.vector_store %arg6[%c0_55, %c4_56, %c0_57, %c0_58], %82 {strides = array<i32>} : memref<1x8x128x16xbf16, #tpu.memory_space<vmem>>, vector<1x1x128x16xbf16>,
    %83 = vector.extract_strided_slice %12 {offsets = [0, 64], sizes = [128, 16], strides = [1, 1]} : vector<128x128xf32> to vector<128x16xf32>
    %84 = arith.truncf %83 : vector<128x16xf32> to vector<128x16xbf16>
    %c0_59 = arith.constant 0 : index
    %c4_60 = arith.constant 4 : index
    %c0_61 = arith.constant 0 : index
    %c0_62 = arith.constant 0 : index
    %85 = vector.load %arg7[%c0_59, %c4_60, %c0_61, %c0_62] : memref<1x8x128x16xbf16, #tpu.memory_space<vmem>>, vector<1x1x128x16xbf16>
    %86 = vector.shape_cast %85 : vector<1x1x128x16xbf16> to vector<128x16xbf16>
    %87 = vector.shape_cast %84 : vector<128x16xbf16> to vector<1x1x128x16xbf16>
    tpu.vector_store %arg7[%c0_59, %c4_60, %c0_61, %c0_62], %87 {strides = array<i32>} : memref<1x8x128x16xbf16, #tpu.memory_space<vmem>>, vector<1x1x128x16xbf16>,
    %88 = vector.extract_strided_slice %10 {offsets = [0, 80], sizes = [128, 16], strides = [1, 1]} : vector<128x128xf32> to vector<128x16xf32>
    %89 = arith.truncf %88 : vector<128x16xf32> to vector<128x16xbf16>
    %c0_63 = arith.constant 0 : index
    %c5 = arith.constant 5 : index
    %c0_64 = arith.constant 0 : index
    %c0_65 = arith.constant 0 : index
    %90 = vector.load %arg5[%c0_63, %c5, %c0_64, %c0_65] : memref<1x8x128x16xbf16, #tpu.memory_space<vmem>>, vector<1x1x128x16xbf16>
    %91 = vector.shape_cast %90 : vector<1x1x128x16xbf16> to vector<128x16xbf16>
    %92 = vector.shape_cast %89 : vector<128x16xbf16> to vector<1x1x128x16xbf16>
    tpu.vector_store %arg5[%c0_63, %c5, %c0_64, %c0_65], %92 {strides = array<i32>} : memref<1x8x128x16xbf16, #tpu.memory_space<vmem>>, vector<1x1x128x16xbf16>,
    %93 = vector.extract_strided_slice %11 {offsets = [0, 80], sizes = [128, 16], strides = [1, 1]} : vector<128x128xf32> to vector<128x16xf32>
    %94 = arith.truncf %93 : vector<128x16xf32> to vector<128x16xbf16>
    %c0_66 = arith.constant 0 : index
    %c5_67 = arith.constant 5 : index
    %c0_68 = arith.constant 0 : index
    %c0_69 = arith.constant 0 : index
    %95 = vector.load %arg6[%c0_66, %c5_67, %c0_68, %c0_69] : memref<1x8x128x16xbf16, #tpu.memory_space<vmem>>, vector<1x1x128x16xbf16>
    %96 = vector.shape_cast %95 : vector<1x1x128x16xbf16> to vector<128x16xbf16>
    %97 = vector.shape_cast %94 : vector<128x16xbf16> to vector<1x1x128x16xbf16>
    tpu.vector_store %arg6[%c0_66, %c5_67, %c0_68, %c0_69], %97 {strides = array<i32>} : memref<1x8x128x16xbf16, #tpu.memory_space<vmem>>, vector<1x1x128x16xbf16>,
    %98 = vector.extract_strided_slice %12 {offsets = [0, 80], sizes = [128, 16], strides = [1, 1]} : vector<128x128xf32> to vector<128x16xf32>
    %99 = arith.truncf %98 : vector<128x16xf32> to vector<128x16xbf16>
    %c0_70 = arith.constant 0 : index
    %c5_71 = arith.constant 5 : index
    %c0_72 = arith.constant 0 : index
    %c0_73 = arith.constant 0 : index
    %100 = vector.load %arg7[%c0_70, %c5_71, %c0_72, %c0_73] : memref<1x8x128x16xbf16, #tpu.memory_space<vmem>>, vector<1x1x128x16xbf16>
    %101 = vector.shape_cast %100 : vector<1x1x128x16xbf16> to vector<128x16xbf16>
    %102 = vector.shape_cast %99 : vector<128x16xbf16> to vector<1x1x128x16xbf16>
    tpu.vector_store %arg7[%c0_70, %c5_71, %c0_72, %c0_73], %102 {strides = array<i32>} : memref<1x8x128x16xbf16, #tpu.memory_space<vmem>>, vector<1x1x128x16xbf16>,
    %103 = vector.extract_strided_slice %10 {offsets = [0, 96], sizes = [128, 16], strides = [1, 1]} : vector<128x128xf32> to vector<128x16xf32>
    %104 = arith.truncf %103 : vector<128x16xf32> to vector<128x16xbf16>
    %c0_74 = arith.constant 0 : index
    %c6 = arith.constant 6 : index
    %c0_75 = arith.constant 0 : index
    %c0_76 = arith.constant 0 : index
    %105 = vector.load %arg5[%c0_74, %c6, %c0_75, %c0_76] : memref<1x8x128x16xbf16, #tpu.memory_space<vmem>>, vector<1x1x128x16xbf16>
    %106 = vector.shape_cast %105 : vector<1x1x128x16xbf16> to vector<128x16xbf16>
    %107 = vector.shape_cast %104 : vector<128x16xbf16> to vector<1x1x128x16xbf16>
    tpu.vector_store %arg5[%c0_74, %c6, %c0_75, %c0_76], %107 {strides = array<i32>} : memref<1x8x128x16xbf16, #tpu.memory_space<vmem>>, vector<1x1x128x16xbf16>,
    %108 = vector.extract_strided_slice %11 {offsets = [0, 96], sizes = [128, 16], strides = [1, 1]} : vector<128x128xf32> to vector<128x16xf32>
    %109 = arith.truncf %108 : vector<128x16xf32> to vector<128x16xbf16>
    %c0_77 = arith.constant 0 : index
    %c6_78 = arith.constant 6 : index
    %c0_79 = arith.constant 0 : index
    %c0_80 = arith.constant 0 : index
    %110 = vector.load %arg6[%c0_77, %c6_78, %c0_79, %c0_80] : memref<1x8x128x16xbf16, #tpu.memory_space<vmem>>, vector<1x1x128x16xbf16>
    %111 = vector.shape_cast %110 : vector<1x1x128x16xbf16> to vector<128x16xbf16>
    %112 = vector.shape_cast %109 : vector<128x16xbf16> to vector<1x1x128x16xbf16>
    tpu.vector_store %arg6[%c0_77, %c6_78, %c0_79, %c0_80], %112 {strides = array<i32>} : memref<1x8x128x16xbf16, #tpu.memory_space<vmem>>, vector<1x1x128x16xbf16>,
    %113 = vector.extract_strided_slice %12 {offsets = [0, 96], sizes = [128, 16], strides = [1, 1]} : vector<128x128xf32> to vector<128x16xf32>
    %114 = arith.truncf %113 : vector<128x16xf32> to vector<128x16xbf16>
    %c0_81 = arith.constant 0 : index
    %c6_82 = arith.constant 6 : index
    %c0_83 = arith.constant 0 : index
    %c0_84 = arith.constant 0 : index
    %115 = vector.load %arg7[%c0_81, %c6_82, %c0_83, %c0_84] : memref<1x8x128x16xbf16, #tpu.memory_space<vmem>>, vector<1x1x128x16xbf16>
    %116 = vector.shape_cast %115 : vector<1x1x128x16xbf16> to vector<128x16xbf16>
    %117 = vector.shape_cast %114 : vector<128x16xbf16> to vector<1x1x128x16xbf16>
    tpu.vector_store %arg7[%c0_81, %c6_82, %c0_83, %c0_84], %117 {strides = array<i32>} : memref<1x8x128x16xbf16, #tpu.memory_space<vmem>>, vector<1x1x128x16xbf16>,
    %118 = vector.extract_strided_slice %10 {offsets = [0, 112], sizes = [128, 16], strides = [1, 1]} : vector<128x128xf32> to vector<128x16xf32>
    %119 = arith.truncf %118 : vector<128x16xf32> to vector<128x16xbf16>
    %c0_85 = arith.constant 0 : index
    %c7 = arith.constant 7 : index
    %c0_86 = arith.constant 0 : index
    %c0_87 = arith.constant 0 : index
    %120 = vector.load %arg5[%c0_85, %c7, %c0_86, %c0_87] : memref<1x8x128x16xbf16, #tpu.memory_space<vmem>>, vector<1x1x128x16xbf16>
    %121 = vector.shape_cast %120 : vector<1x1x128x16xbf16> to vector<128x16xbf16>
    %122 = vector.shape_cast %119 : vector<128x16xbf16> to vector<1x1x128x16xbf16>
    tpu.vector_store %arg5[%c0_85, %c7, %c0_86, %c0_87], %122 {strides = array<i32>} : memref<1x8x128x16xbf16, #tpu.memory_space<vmem>>, vector<1x1x128x16xbf16>,
    %123 = vector.extract_strided_slice %11 {offsets = [0, 112], sizes = [128, 16], strides = [1, 1]} : vector<128x128xf32> to vector<128x16xf32>
    %124 = arith.truncf %123 : vector<128x16xf32> to vector<128x16xbf16>
    %c0_88 = arith.constant 0 : index
    %c7_89 = arith.constant 7 : index
    %c0_90 = arith.constant 0 : index
    %c0_91 = arith.constant 0 : index
    %125 = vector.load %arg6[%c0_88, %c7_89, %c0_90, %c0_91] : memref<1x8x128x16xbf16, #tpu.memory_space<vmem>>, vector<1x1x128x16xbf16>
    %126 = vector.shape_cast %125 : vector<1x1x128x16xbf16> to vector<128x16xbf16>
    %127 = vector.shape_cast %124 : vector<128x16xbf16> to vector<1x1x128x16xbf16>
    tpu.vector_store %arg6[%c0_88, %c7_89, %c0_90, %c0_91], %127 {strides = array<i32>} : memref<1x8x128x16xbf16, #tpu.memory_space<vmem>>, vector<1x1x128x16xbf16>,
    %128 = vector.extract_strided_slice %12 {offsets = [0, 112], sizes = [128, 16], strides = [1, 1]} : vector<128x128xf32> to vector<128x16xf32>
    %129 = arith.truncf %128 : vector<128x16xf32> to vector<128x16xbf16>
    %c0_92 = arith.constant 0 : index
    %c7_93 = arith.constant 7 : index
    %c0_94 = arith.constant 0 : index
    %c0_95 = arith.constant 0 : index
    %130 = vector.load %arg7[%c0_92, %c7_93, %c0_94, %c0_95] : memref<1x8x128x16xbf16, #tpu.memory_space<vmem>>, vector<1x1x128x16xbf16>
    %131 = vector.shape_cast %130 : vector<1x1x128x16xbf16> to vector<128x16xbf16>
    %132 = vector.shape_cast %129 : vector<128x16xbf16> to vector<1x1x128x16xbf16>
    tpu.vector_store %arg7[%c0_92, %c7_93, %c0_94, %c0_95], %132 {strides = array<i32>} : memref<1x8x128x16xbf16, #tpu.memory_space<vmem>>, vector<1x1x128x16xbf16>,
    return
  }
  func.func @transform_0(%arg0: i32, %arg1: i32) -> (i32, i32, i32) {
    %c0_i32 = arith.constant 0 : i32
    %c0_i32_0 = arith.constant 0 : i32
    return %arg0, %arg1, %c0_i32 : i32, i32, i32
  }
  func.func @transform_1(%arg0: i32, %arg1: i32) -> (i32, i32) {
    %c0_i32 = arith.constant 0 : i32
    %c0_i32_0 = arith.constant 0 : i32
    %c0_i32_1 = arith.constant 0 : i32
    return %c0_i32, %c0_i32_0 : i32, i32
  }
  func.func @transform_2(%arg0: i32, %arg1: i32) -> (i32, i32) {
    %c0_i32 = arith.constant 0 : i32
    %c0_i32_0 = arith.constant 0 : i32
    %c0_i32_1 = arith.constant 0 : i32
    return %c0_i32, %c0_i32_0 : i32, i32
  }
  func.func @transform_3(%arg0: i32, %arg1: i32) -> (i32, i32, i32, i32) {
    %c0_i32 = arith.constant 0 : i32
    %c0_i32_0 = arith.constant 0 : i32
    %c0_i32_1 = arith.constant 0 : i32
    return %arg0, %c0_i32, %arg1, %c0_i32_0 : i32, i32, i32, i32
  }
  func.func @transform_4(%arg0: i32, %arg1: i32) -> (i32, i32, i32, i32) {
    %c0_i32 = arith.constant 0 : i32
    %c0_i32_0 = arith.constant 0 : i32
    %c0_i32_1 = arith.constant 0 : i32
    return %arg0, %c0_i32, %arg1, %c0_i32_0 : i32, i32, i32, i32
  }
  func.func @transform_5(%arg0: i32, %arg1: i32) -> (i32, i32, i32, i32) {
    %c0_i32 = arith.constant 0 : i32
    %c0_i32_0 = arith.constant 0 : i32
    %c0_i32_1 = arith.constant 0 : i32
    return %arg0, %c0_i32, %arg1, %c0_i32_0 : i32, i32, i32, i32
  }
}

</mosaic_0001>

<llo_original>
// kernel: tpu_custom_call.1
$region0: #{tpu_custom_call.1}
  #allocation0 [shape = 'u32[]', space=smem, size = 0x4, offset = 0x4, fixed_abs, tag = 'smem constant byte address 0x4 - core index']
  #allocation1 [shape = 'u32[144,128]{1,0:T(1,128)}', space=vmem, size = 0x12000, scoped, tag = 'internal scratch']
  %s0 = inlined_call_operand.hbm [shape: f32[2,256,128], index: 0, kind: input, shape index: {}]
  %s1 = inlined_call_operand.hbm [shape: bf16[128,384], index: 1, kind: input, shape index: {}]
  %s2 = inlined_call_operand.vmem [shape: f32[1,384], index: 2, kind: input, shape index: {}]
  %s3 = inlined_call_operand.vmem [shape: bf16[2,8,256,16], index: 3, kind: output, shape index: {0}]
  %s4 = inlined_call_operand.vmem [shape: bf16[2,8,256,16], index: 4, kind: output, shape index: {1}]
  %s5 = inlined_call_operand.vmem [shape: bf16[2,8,256,16], index: 5, kind: output, shape index: {2}]
  %6 = xla_tuple %s3, %s4, %s5
  %s7 = sld [smem:[#allocation0]]
  $region180: #{tpu_custom_call.1} parent=0
    _
  %s9 = ssub.s32 1, %s7
  %s10 = scalar_select 0, %s9, %s7
  $region1: #{tpu_custom_call.1} parent=0
    #allocation2 [shape = 'u8[131072]{0}', space=vmem, size = 0x20000, scoped, tag = 'input window, operand 0']
    #allocation3 [shape = 's32[2]{0}', space=sflag, size = 0x8, scoped, tag = 'scoped memory for tpu_custom_call.1']
    #allocation4 [shape = 'u8[98304]{0}', space=vmem, size = 0x18000, scoped, tag = 'input window, operand 1, single buffered']
    #allocation5 [shape = 's32[1]{0}', space=sflag, size = 0x4, scoped, tag = 'scoped memory for tpu_custom_call.1']
    #allocation6 [shape = 'u8[524288]{0}', space=vmem, size = 0x80000, scoped, tag = 'output window, operand 0']
    #allocation7 [shape = 'u8[524288]{0}', space=vmem, size = 0x80000, scoped, tag = 'output window, operand 1']
    #allocation8 [shape = 'u8[524288]{0}', space=vmem, size = 0x80000, scoped, tag = 'output window, operand 2']
    %11 = vsyncpa [#allocation3], 0
    %s12 = scalar_lea.sflag [#allocation3], 1
    %13 = vsyncpa %s12, 0
    %14 = vsyncpa [#allocation5], 0
    loop: start=0, step=1, limit=6
    $region2: #{tpu_custom_call.1} parent=1 // loop_pre_header
      _
    $region3: #{tpu_custom_call.1} parent=1 // loop_header
      %s16 = sphi 0, %s20
      %p17 = scmp.ge.s32.totalorder %s16, 6
      %s23 = sphi 0, %s35
      %s24 = sphi 0, %s31
      %s25 = sphi 0, %s23
      %s26 = sphi 0, %s24
      %s27 = sphi 0, %s25
      %s28 = sphi 0, %s26
      %s40 = sphi 0, %s42
      %s43 = sphi 0, %s40
      %s44 = sphi 0, %s43
      %s60 = sphi 0, %s44
      %s64 = sphi 0, %s64
      %s66 = sphi 0, %s64
      %s67 = sphi 0, %s66
      %s81 = sphi 0, %s67
      %s85 = sphi 0, %s85
      %s87 = sphi 0, %s85
      %s88 = sphi 0, %s87
      %s102 = sphi 0, %s88
      %s110 = sphi 0, %s112
      %s113 = sphi 0, %s110
      %s114 = sphi 0, %s113
      %s130 = sphi 0, %s114
      %s138 = sphi 0, %s140
      %s141 = sphi 0, %s138
      %s142 = sphi 0, %s141
      %s158 = sphi 0, %s142
      %s166 = sphi 0, %s168
      %s169 = sphi 0, %s166
      %s170 = sphi 0, %s169
      %s186 = sphi 0, %s170
    $region4: #{tpu_custom_call.1} parent=1 // loop_header_branch
      %19 = sbr.rel (%p17) target = $region8
    $region5: #{tpu_custom_call.1} parent=1 // loop_body
      %s21 = ssub.s32 %s16, 1
      %s22 = ssub.s32 %s16, 2
      %s29 = sadd.s32 1, %s24
      %p30 = scmp.ge.s32.totalorder %s29, 2
      %s31 = scalar_select %p30, 0, %s29
      %s32 = sadd.s32 1, %s23
      %s33 = scalar_select %p30, %s32, %s23
      %p34 = scmp.ge.s32.totalorder %s33, 2
      %s35 = scalar_select %p34, 0, %s33
      %s36 = ssub.s32 %s23, %s35
      %s37 = ssub.s32 %s24, %s31
      %s38 = sor.u32 %s36, %s37
      %p39 = scmp.eq.s32.totalorder %s38, 0
      %s41 = sadd.s32 %s40, 1
      %s42 = scalar_select %p39, %s40, %s41
      %p45 = pneg %p39
      %p46 = scmp.eq.s32.totalorder %s16, 3
      %p47 = por %p45, %p46
      %p48 = scmp.ne.s32.totalorder %s40, %s43
      %p49 = scmp.eq.s32.totalorder %s16, 0
      %p50 = por %p48, %p49
      %p51 = scmp.ne.s32.totalorder %s40, %s43
      %p52 = scmp.eq.s32.totalorder %s21, 3
      %p53 = por %p51, %p52
      %p54 = scmp.ne.s32.totalorder %s43, %s44
      %p55 = scmp.eq.s32.totalorder %s21, 0
      %p56 = por %p54, %p55
      %p57 = scmp.ne.s32.totalorder %s43, %s44
      %p58 = scmp.eq.s32.totalorder %s22, 3
      %p59 = por %p57, %p58
      %p61 = scmp.ne.s32.totalorder %s44, %s60
      %p62 = scmp.eq.s32.totalorder %s22, 0
      %p63 = por %p61, %p62
      %s65 = sadd.s32 %s64, 1
      %p68 = scmp.eq.s32.totalorder %s16, 3
      %p69 = scmp.ne.s32.totalorder %s64, %s66
      %p70 = scmp.eq.s32.totalorder %s16, 0
      %p71 = por %p69, %p70
      %p72 = scmp.ne.s32.totalorder %s64, %s66
      %p73 = scmp.eq.s32.totalorder %s21, 3
      %p74 = por %p72, %p73
      %p75 = scmp.ne.s32.totalorder %s66, %s67
      %p76 = scmp.eq.s32.totalorder %s21, 0
      %p77 = por %p75, %p76
      %p78 = scmp.ne.s32.totalorder %s66, %s67
      %p79 = scmp.eq.s32.totalorder %s22, 3
      %p80 = por %p78, %p79
      %p82 = scmp.ne.s32.totalorder %s67, %s81
      %p83 = scmp.eq.s32.totalorder %s22, 0
      %p84 = por %p82, %p83
      %s86 = sadd.s32 %s85, 1
      %p89 = scmp.eq.s32.totalorder %s16, 3
      %p90 = scmp.ne.s32.totalorder %s85, %s87
      %p91 = scmp.eq.s32.totalorder %s16, 0
      %p92 = por %p90, %p91
      %p93 = scmp.ne.s32.totalorder %s85, %s87
      %p94 = scmp.eq.s32.totalorder %s21, 3
      %p95 = por %p93, %p94
      %p96 = scmp.ne.s32.totalorder %s87, %s88
      %p97 = scmp.eq.s32.totalorder %s21, 0
      %p98 = por %p96, %p97
      %p99 = scmp.ne.s32.totalorder %s87, %s88
      %p100 = scmp.eq.s32.totalorder %s22, 3
      %p101 = por %p99, %p100
      %p103 = scmp.ne.s32.totalorder %s88, %s102
      %p104 = scmp.eq.s32.totalorder %s22, 0
      %p105 = por %p103, %p104
      %s106 = ssub.s32 %s23, %s35
      %s107 = ssub.s32 %s24, %s31
      %s108 = sor.u32 %s106, %s107
      %p109 = scmp.eq.s32.totalorder %s108, 0
      %s111 = sadd.s32 %s110, 1
      %s112 = scalar_select %p109, %s110, %s111
      %p115 = pneg %p109
      %p116 = scmp.eq.s32.totalorder %s16, 3
      %p117 = por %p115, %p116
      %p118 = scmp.ne.s32.totalorder %s110, %s113
      %p119 = scmp.eq.s32.totalorder %s16, 0
      %p120 = por %p118, %p119
      %p121 = scmp.ne.s32.totalorder %s110, %s113
      %p122 = scmp.eq.s32.totalorder %s21, 3
      %p123 = por %p121, %p122
      %p124 = scmp.ne.s32.totalorder %s113, %s114
      %p125 = scmp.eq.s32.totalorder %s21, 0
      %p126 = por %p124, %p125
      %p127 = scmp.ne.s32.totalorder %s113, %s114
      %p128 = scmp.eq.s32.totalorder %s22, 3
      %p129 = por %p127, %p128
      %p131 = scmp.ne.s32.totalorder %s114, %s130
      %p132 = scmp.eq.s32.totalorder %s22, 0
      %p133 = por %p131, %p132
      %s134 = ssub.s32 %s23, %s35
      %s135 = ssub.s32 %s24, %s31
      %s136 = sor.u32 %s134, %s135
      %p137 = scmp.eq.s32.totalorder %s136, 0
      %s139 = sadd.s32 %s138, 1
      %s140 = scalar_select %p137, %s138, %s139
      %p143 = pneg %p137
      %p144 = scmp.eq.s32.totalorder %s16, 3
      %p145 = por %p143, %p144
      %p146 = scmp.ne.s32.totalorder %s138, %s141
      %p147 = scmp.eq.s32.totalorder %s16, 0
      %p148 = por %p146, %p147
      %p149 = scmp.ne.s32.totalorder %s138, %s141
      %p150 = scmp.eq.s32.totalorder %s21, 3
      %p151 = por %p149, %p150
      %p152 = scmp.ne.s32.totalorder %s141, %s142
      %p153 = scmp.eq.s32.totalorder %s21, 0
      %p154 = por %p152, %p153
      %p155 = scmp.ne.s32.totalorder %s141, %s142
      %p156 = scmp.eq.s32.totalorder %s22, 3
      %p157 = por %p155, %p156
      %p159 = scmp.ne.s32.totalorder %s142, %s158
      %p160 = scmp.eq.s32.totalorder %s22, 0
      %p161 = por %p159, %p160
      %s162 = ssub.s32 %s23, %s35
      %s163 = ssub.s32 %s24, %s31
      %s164 = sor.u32 %s162, %s163
      %p165 = scmp.eq.s32.totalorder %s164, 0
      %s167 = sadd.s32 %s166, 1
      %s168 = scalar_select %p165, %s166, %s167
      %p171 = pneg %p165
      %p172 = scmp.eq.s32.totalorder %s16, 3
      %p173 = por %p171, %p172
      %p174 = scmp.ne.s32.totalorder %s166, %s169
      %p175 = scmp.eq.s32.totalorder %s16, 0
      %p176 = por %p174, %p175
      %p177 = scmp.ne.s32.totalorder %s166, %s169
      %p178 = scmp.eq.s32.totalorder %s21, 3
      %p179 = por %p177, %p178
      %p180 = scmp.ne.s32.totalorder %s169, %s170
      %p181 = scmp.eq.s32.totalorder %s21, 0
      %p182 = por %p180, %p181
      %p183 = scmp.ne.s32.totalorder %s169, %s170
      %p184 = scmp.eq.s32.totalorder %s22, 3
      %p185 = por %p183, %p184
      %p187 = scmp.ne.s32.totalorder %s170, %s186
      %p188 = scmp.eq.s32.totalorder %s22, 0
      %p189 = por %p187, %p188
      %p190 = scmp.le.s32.totalorder 1, %s16
      %p191 = scmp.lt.s32.totalorder %s16, 5
      %p192 = pnand %p190, %p191
      %p193 = pneg %p192
      // Predicated region
      $region9: #{tpu_custom_call.1} parent=5 // pred_check
        _
      $region10: #{tpu_custom_call.1} parent=5 // pred_check_branch
        %195 = sbr.rel (%p192) target = $region12
      $region11: #{tpu_custom_call.1} parent=5 // pred_region
        %s196 = ssub.s32 %s16, 1
        // Predicated region
        $region13: #{tpu_custom_call.1} parent=11 // pred_check
          %p197 = pneg %p77
        $region14: #{tpu_custom_call.1} parent=11 // pred_check_branch
          %199 = sbr.rel (%p197) target = $region16
        $region15: #{tpu_custom_call.1} parent=11 // pred_region
          %s201 = ssub.s32 3072, 3072
          %202 = vsyncadd [#allocation5], %s201
          %s203 = sshll.u32 [#allocation4], 4
          %s204 = int_to_ptr.vmem [resolvable:$true] %s203
          %209 = dma.hbm_to_vmem [thread:$0]  %s1, 3072, %s204, [#allocation5], 192, 192, 12
        $region16: #{tpu_custom_call.1} parent=11 // pred_fallthru
          _
        // Predicated region
        $region17: #{tpu_custom_call.1} parent=11 // pred_check
          %p210 = pneg %p98
        $region18: #{tpu_custom_call.1} parent=11 // pred_check_branch
          %212 = sbr.rel (%p210) target = $region20
        $region19: #{tpu_custom_call.1} parent=11 // pred_region
          _
        $region20: #{tpu_custom_call.1} parent=11 // pred_fallthru
          _
      $region12: #{tpu_custom_call.1} parent=5 // pred_fallthru
        _
      %p213 = scmp.lt.s32.totalorder %s16, 4
      // Predicated region
      $region21: #{tpu_custom_call.1} parent=5 // pred_check
        %p214 = pneg %p213
      $region22: #{tpu_custom_call.1} parent=5 // pred_check_branch
        %216 = sbr.rel (%p214) target = $region24
      $region23: #{tpu_custom_call.1} parent=5 // pred_region
        // Predicated region
        $region25: #{tpu_custom_call.1} parent=23 // pred_check
          %p217 = pneg %p50
        $region26: #{tpu_custom_call.1} parent=23 // pred_check_branch
          %219 = sbr.rel (%p217) target = $region28
        $region27: #{tpu_custom_call.1} parent=23 // pred_region
          %s220 = sand.u32 %s40, 1
          %s221 = scalar_lea.sflag [#allocation3], %s220
          %s222 = sand.u32 %s40, 1
          %s223 = smul.addr %s222, 128
          %s224 = scalar_lea.vmem [#allocation2], %s223
          %s225 = smul.u32 16, %s24
          %s227 = ssub.s32 2048, 2048
          %228 = vsyncadd %s221, %s227
          %s229 = smul.addr %s23, 32
          %s230 = sadd.s32 %s225, %s229
          %s231 = smul.addr %s230, 128
          %s232 = scalar_lea.hbm %s0, %s231
          %s233 = sshll.u32 %s224, 4
          %s234 = int_to_ptr.vmem [resolvable:$true] %s233
          %239 = dma.hbm_to_vmem [thread:$0]  %s232, 2048, %s234, %s221, 128, 128, 8
        $region28: #{tpu_custom_call.1} parent=23 // pred_fallthru
          _
      $region24: #{tpu_custom_call.1} parent=5 // pred_fallthru
        _
      %p240 = scmp.le.s32.totalorder 1, %s16
      %p241 = scmp.lt.s32.totalorder %s16, 5
      %p242 = pnand %p240, %p241
      %p243 = pneg %p242
      // Predicated region
      $region29: #{tpu_custom_call.1} parent=5 // pred_check
        _
      $region30: #{tpu_custom_call.1} parent=5 // pred_check_branch
        %245 = sbr.rel (%p242) target = $region32
      $region31: #{tpu_custom_call.1} parent=5 // pred_region
        %s246 = ssub.s32 %s16, 1
        %s247 = sand.u32 %s43, 1
        %s248 = scalar_lea.sflag [#allocation3], %s247
        %s249 = sand.u32 %s43, 1
        %s250 = smul.addr %s249, 128
        %s251 = scalar_lea.vmem [#allocation2], %s250
        // Predicated region
        $region33: #{tpu_custom_call.1} parent=31 // pred_check
          %p252 = pneg %p56
        $region34: #{tpu_custom_call.1} parent=31 // pred_check_branch
          %254 = sbr.rel (%p252) target = $region36
        $region35: #{tpu_custom_call.1} parent=31 // pred_region
          %255 = dma.done %s248, 2048
        $region36: #{tpu_custom_call.1} parent=31 // pred_fallthru
          _
        // Predicated region
        $region37: #{tpu_custom_call.1} parent=31 // pred_check
          %p256 = pneg %p77
        $region38: #{tpu_custom_call.1} parent=31 // pred_check_branch
          %258 = sbr.rel (%p256) target = $region40
        $region39: #{tpu_custom_call.1} parent=31 // pred_region
          %259 = dma.done [#allocation5], 3072
        $region40: #{tpu_custom_call.1} parent=31 // pred_fallthru
          _
        %s260 = sand.u32 %s43, 1
        %s261 = scalar_lea.sflag [#allocation3], %s260
        %s262 = sand.u32 %s43, 1
        %s263 = smul.addr %s262, 128
        %s264 = scalar_lea.vmem [#allocation2], %s263
        %p265 = pneg %p56
        %p266 = pneg %p53
        %p267 = pneg %p77
        %p268 = pneg %p74
        %p269 = pneg %p98
        %p270 = pneg %p95
        %p271 = pneg %p126
        %p272 = pneg %p123
        %s273 = sand.u32 %s113, 1
        %s274 = sand.u32 %s113, 1
        %s275 = smul.addr %s274, 512
        %s276 = scalar_lea.vmem [#allocation6], %s275
        %p277 = pneg %p154
        %p278 = pneg %p151
        %s279 = sand.u32 %s141, 1
        %s280 = sand.u32 %s141, 1
        %s281 = smul.addr %s280, 512
        %s282 = scalar_lea.vmem [#allocation7], %s281
        %p283 = pneg %p182
        %p284 = pneg %p179
        %s285 = sand.u32 %s169, 1
        %s286 = sand.u32 %s169, 1
        %s287 = smul.addr %s286, 512
        %s288 = scalar_lea.vmem [#allocation8], %s287
        %s289 = smul.u32 16, %s26
        %s290 = smul.u32 16, %s26
        %s291 = smul.u32 16, %s26
        %s292 = smul.u32 16, %s26
        %v294 = vld [vmem:[%s251] sm:$0xff]
        %v295 = vld [vmem:[%s251 + $0x8] sm:$0xff]
        %v296 = vld [vmem:[%s251 + $0x10] sm:$0xff]
        %v297 = vld [vmem:[%s251 + $0x18] sm:$0xff]
        %v298 = vld [vmem:[%s251 + $0x20] sm:$0xff]
        %v299 = vld [vmem:[%s251 + $0x28] sm:$0xff]
        %v300 = vld [vmem:[%s251 + $0x30] sm:$0xff]
        %v301 = vld [vmem:[%s251 + $0x38] sm:$0xff]
        %v302 = vld [vmem:[%s251 + $0x40] sm:$0xff]
        %v303 = vld [vmem:[%s251 + $0x48] sm:$0xff]
        %v304 = vld [vmem:[%s251 + $0x50] sm:$0xff]
        %v305 = vld [vmem:[%s251 + $0x58] sm:$0xff]
        %v306 = vld [vmem:[%s251 + $0x60] sm:$0xff]
        %v307 = vld [vmem:[%s251 + $0x68] sm:$0xff]
        %v308 = vld [vmem:[%s251 + $0x70] sm:$0xff]
        %v309 = vld [vmem:[%s251 + $0x78] sm:$0xff]
        %v310 = vpack.c.bf16 %v295, %v294
        %v311 = vpack.c.bf16 %v297, %v296
        %v312 = vpack.c.bf16 %v299, %v298
        %v313 = vpack.c.bf16 %v301, %v300
        %v314 = vpack.c.bf16 %v303, %v302
        %v315 = vpack.c.bf16 %v305, %v304
        %v316 = vpack.c.bf16 %v307, %v306
        %v317 = vpack.c.bf16 %v309, %v308
        %v318 = vld [vmem:[#allocation4] sm:$0xff]
        %v319 = vld [vmem:[#allocation4 + $0x8] sm:$0xf]
        %v320 = vld [vmem:[#allocation4 + $0xc] sm:$0xff]
        %v321 = vld [vmem:[#allocation4 + $0x14] sm:$0xf]
        %v322 = vld [vmem:[#allocation4 + $0x18] sm:$0xff]
        %v323 = vld [vmem:[#allocation4 + $0x20] sm:$0xf]
        %v324 = vld [vmem:[#allocation4 + $0x24] sm:$0xff]
        %v325 = vld [vmem:[#allocation4 + $0x2c] sm:$0xf]
        %v326 = vld [vmem:[#allocation4 + $0x30] sm:$0xff]
        %v327 = vld [vmem:[#allocation4 + $0x38] sm:$0xf]
        %v328 = vld [vmem:[#allocation4 + $0x3c] sm:$0xff]
        %v329 = vld [vmem:[#allocation4 + $0x44] sm:$0xf]
        %v330 = vld [vmem:[#allocation4 + $0x48] sm:$0xff]
        %v331 = vld [vmem:[#allocation4 + $0x50] sm:$0xf]
        %v332 = vld [vmem:[#allocation4 + $0x54] sm:$0xff]
        %v333 = vld [vmem:[#allocation4 + $0x5c] sm:$0xf]
        %v334 = vld [vmem:[#allocation4 + $0x60] sm:$0xff]
        %v335 = vld [vmem:[#allocation4 + $0x68] sm:$0xf]
        %v336 = vld [vmem:[#allocation4 + $0x6c] sm:$0xff]
        %v337 = vld [vmem:[#allocation4 + $0x74] sm:$0xf]
        %v338 = vld [vmem:[#allocation4 + $0x78] sm:$0xff]
        %v339 = vld [vmem:[#allocation4 + $0x80] sm:$0xf]
        %v340 = vld [vmem:[#allocation4 + $0x84] sm:$0xff]
        %v341 = vld [vmem:[#allocation4 + $0x8c] sm:$0xf]
        %v342 = vld [vmem:[#allocation4 + $0x90] sm:$0xff]
        %v343 = vld [vmem:[#allocation4 + $0x98] sm:$0xf]
        %v344 = vld [vmem:[#allocation4 + $0x9c] sm:$0xff]
        %v345 = vld [vmem:[#allocation4 + $0xa4] sm:$0xf]
        %v346 = vld [vmem:[#allocation4 + $0xa8] sm:$0xff]
        %v347 = vld [vmem:[#allocation4 + $0xb0] sm:$0xf]
        %v348 = vld [vmem:[#allocation4 + $0xb4] sm:$0xff]
        %v349 = vld [vmem:[#allocation4 + $0xbc] sm:$0xf]
        %v350 = vld [vmem:[%s2] sm:$0x7]
        %v352 = vlaneseq
        %v353 = vshrl.u32 %v352, 7
        %v354 = vsub.s32 0, %v353
        %v355 = vrot.slane %v350, %v354
        %v356 = vlaneseq
        %v357 = vshrl.u32 %v356, 7
        %v358 = vsub.s32 1, %v357
        %v359 = vrot.slane %v350, %v358
        %v360 = vlaneseq
        %v361 = vshrl.u32 %v360, 7
        %v362 = vsub.s32 2, %v361
        %v363 = vrot.slane %v350, %v362
        %v399 = vunpack.c.l.b16 %v318
        %v400 = vunpack.c.h.b16 %v318
        %v401 = vunpack.c.l.b16 %v319
        %v402 = vunpack.c.l.b16 %v320
        %v403 = vunpack.c.h.b16 %v320
        %v404 = vunpack.c.l.b16 %v321
        %v405 = vunpack.c.l.b16 %v322
        %v406 = vunpack.c.h.b16 %v322
        %v407 = vunpack.c.l.b16 %v323
        %v408 = vunpack.c.l.b16 %v324
        %v409 = vunpack.c.h.b16 %v324
        %v410 = vunpack.c.l.b16 %v325
        %v411 = vunpack.c.l.b16 %v326
        %v412 = vunpack.c.h.b16 %v326
        %v413 = vunpack.c.l.b16 %v327
        %v414 = vunpack.c.l.b16 %v328
        %v415 = vunpack.c.h.b16 %v328
        %v416 = vunpack.c.l.b16 %v329
        %v417 = vunpack.c.l.b16 %v330
        %v418 = vunpack.c.h.b16 %v330
        %v419 = vunpack.c.l.b16 %v331
        %v420 = vunpack.c.l.b16 %v332
        %v421 = vunpack.c.h.b16 %v332
        %v422 = vunpack.c.l.b16 %v333
        %v423 = vunpack.c.l.b16 %v334
        %v424 = vunpack.c.h.b16 %v334
        %v425 = vunpack.c.l.b16 %v335
        %v426 = vunpack.c.l.b16 %v336
        %v427 = vunpack.c.h.b16 %v336
        %v428 = vunpack.c.l.b16 %v337
        %v429 = vunpack.c.l.b16 %v338
        %v430 = vunpack.c.h.b16 %v338
        %v431 = vunpack.c.l.b16 %v339
        %v432 = vunpack.c.l.b16 %v340
        %v433 = vunpack.c.h.b16 %v340
        %v434 = vunpack.c.l.b16 %v341
        %v435 = vunpack.c.l.b16 %v342
        %v436 = vunpack.c.h.b16 %v342
        %v437 = vunpack.c.l.b16 %v343
        %v438 = vunpack.c.l.b16 %v344
        %v439 = vunpack.c.h.b16 %v344
        %v440 = vunpack.c.l.b16 %v345
        %v441 = vunpack.c.l.b16 %v346
        %v442 = vunpack.c.h.b16 %v346
        %v443 = vunpack.c.l.b16 %v347
        %v444 = vunpack.c.l.b16 %v348
        %v445 = vunpack.c.h.b16 %v348
        %v446 = vunpack.c.l.b16 %v349
        %v447 = vpack.c.b16 %v402, %v399
        %v448 = vpack.c.b16 %v403, %v400
        %v449 = vpack.c.b16 %v404, %v401
        %v450 = vpack.c.b16 %v408, %v405
        %v451 = vpack.c.b16 %v409, %v406
        %v452 = vpack.c.b16 %v410, %v407
        %v453 = vpack.c.b16 %v414, %v411
        %v454 = vpack.c.b16 %v415, %v412
        %v455 = vpack.c.b16 %v416, %v413
        %v456 = vpack.c.b16 %v420, %v417
        %v457 = vpack.c.b16 %v421, %v418
        %v458 = vpack.c.b16 %v422, %v419
        %v459 = vpack.c.b16 %v426, %v423
        %v460 = vpack.c.b16 %v427, %v424
        %v461 = vpack.c.b16 %v428, %v425
        %v462 = vpack.c.b16 %v432, %v429
        %v463 = vpack.c.b16 %v433, %v430
        %v464 = vpack.c.b16 %v434, %v431
        %v465 = vpack.c.b16 %v438, %v435
        %v466 = vpack.c.b16 %v439, %v436
        %v467 = vpack.c.b16 %v440, %v437
        %v468 = vpack.c.b16 %v444, %v441
        %v469 = vpack.c.b16 %v445, %v442
        %v470 = vpack.c.b16 %v446, %v443
        %495 = vmatprep.subr.bf16.mxu0 %v448
        %496 = vmatpush1.bf16.msra.mxu0 %v447
        %497 = vmatprep.subr.bf16.mxu0 %v451
        %498 = vmatpush1.bf16.msra.mxu0 %v450
        %499 = vmatprep.subr.bf16.mxu0 %v454
        %500 = vmatpush1.bf16.msra.mxu0 %v453
        %501 = vmatprep.subr.bf16.mxu0 %v457
        %502 = vmatpush1.bf16.msra.mxu0 %v456
        %503 = vmatprep.subr.bf16.mxu0 %v460
        %504 = vmatpush1.bf16.msra.mxu0 %v459
        %505 = vmatprep.subr.bf16.mxu0 %v463
        %506 = vmatpush1.bf16.msra.mxu0 %v462
        %507 = vmatprep.subr.bf16.mxu0 %v466
        %508 = vmatpush1.bf16.msra.mxu0 %v465
        %509 = vmatprep.subr.bf16.mxu0 %v469
        %510 = vmatpush1.bf16.msra.mxu0 %v468
        %511 = vmatprep.subr.bf16.mxu0 0
        %512 = vmatpush1.bf16.msra.mxu0 0
        %513 = vmatprep.subr.bf16.mxu0 0
        %514 = vmatpush1.bf16.msra.mxu0 0
        %515 = vmatprep.subr.bf16.mxu0 0
        %516 = vmatpush1.bf16.msra.mxu0 0
        %517 = vmatprep.subr.bf16.mxu0 0
        %518 = vmatpush1.bf16.msra.mxu0 0
        %519 = vmatprep.subr.bf16.mxu0 0
        %520 = vmatpush1.bf16.msra.mxu0 0
        %521 = vmatprep.subr.bf16.mxu0 0
        %522 = vmatpush1.bf16.msra.mxu0 0
        %523 = vmatprep.subr.bf16.mxu0 0
        %524 = vmatpush1.bf16.msra.mxu0 0
        %525 = vmatprep.subr.bf16.mxu0 0
        %526 = vmatpush1.bf16.msra.mxu0 0
        %527 = vmatprep.mubr.bf16.mxu0 0
        %528 = vmatmul.mubr.bf16.gmra.mrb[0].mxu0 %v310
        %v529 = vpop.f32.mrb[0].mxu0
        %v530 = vadd.f32 %v355, %v529
        %v531 = vpop.f32.mrb[0].mxu0
        %v532 = vadd.f32 %v359, %v531
        %v533 = vpop.f32.mrb[0].mxu0
        %v534 = vadd.f32 %v355, %v533
        %v535 = vpop.f32.mrb[0].mxu0
        %v536 = vadd.f32 %v359, %v535
        %537 = vmatprep.mubr.bf16.mxu0 0
        %538 = vmatmul.mubr.bf16.gmra.mrb[0].mxu0 %v311
        %v539 = vpop.f32.mrb[0].mxu0
        %v540 = vadd.f32 %v355, %v539
        %v541 = vpop.f32.mrb[0].mxu0
        %v542 = vadd.f32 %v359, %v541
        %v543 = vpop.f32.mrb[0].mxu0
        %v544 = vadd.f32 %v355, %v543
        %v545 = vpop.f32.mrb[0].mxu0
        %v546 = vadd.f32 %v359, %v545
        %547 = vmatprep.mubr.bf16.mxu0 0
        %548 = vmatmul.mubr.bf16.gmra.mrb[0].mxu0 %v312
        %v549 = vpop.f32.mrb[0].mxu0
        %v550 = vadd.f32 %v355, %v549
        %v551 = vpop.f32.mrb[0].mxu0
        %v552 = vadd.f32 %v359, %v551
        %v553 = vpop.f32.mrb[0].mxu0
        %v554 = vadd.f32 %v355, %v553
        %v555 = vpop.f32.mrb[0].mxu0
        %v556 = vadd.f32 %v359, %v555
        %557 = vmatprep.mubr.bf16.mxu0 0
        %558 = vmatmul.mubr.bf16.gmra.mrb[0].mxu0 %v313
        %v559 = vpop.f32.mrb[0].mxu0
        %v560 = vadd.f32 %v355, %v559
        %v561 = vpop.f32.mrb[0].mxu0
        %v562 = vadd.f32 %v359, %v561
        %v563 = vpop.f32.mrb[0].mxu0
        %v564 = vadd.f32 %v355, %v563
        %v565 = vpop.f32.mrb[0].mxu0
        %v566 = vadd.f32 %v359, %v565
        %567 = vmatprep.mubr.bf16.mxu0 0
        %568 = vmatmul.mubr.bf16.gmra.mrb[0].mxu0 %v314
        %v569 = vpop.f32.mrb[0].mxu0
        %v570 = vadd.f32 %v355, %v569
        %v571 = vpop.f32.mrb[0].mxu0
        %v572 = vadd.f32 %v359, %v571
        %v573 = vpop.f32.mrb[0].mxu0
        %v574 = vadd.f32 %v355, %v573
        %v575 = vpop.f32.mrb[0].mxu0
        %v576 = vadd.f32 %v359, %v575
        %577 = vmatprep.mubr.bf16.mxu0 0
        %578 = vmatmul.mubr.bf16.gmra.mrb[0].mxu0 %v315
        %v579 = vpop.f32.mrb[0].mxu0
        %v580 = vadd.f32 %v355, %v579
        %v581 = vpop.f32.mrb[0].mxu0
        %v582 = vadd.f32 %v359, %v581
        %v583 = vpop.f32.mrb[0].mxu0
        %v584 = vadd.f32 %v355, %v583
        %v585 = vpop.f32.mrb[0].mxu0
        %v586 = vadd.f32 %v359, %v585
        %587 = vmatprep.mubr.bf16.mxu0 0
        %588 = vmatmul.mubr.bf16.gmra.mrb[0].mxu0 %v316
        %v589 = vpop.f32.mrb[0].mxu0
        %v590 = vadd.f32 %v355, %v589
        %v591 = vpop.f32.mrb[0].mxu0
        %v592 = vadd.f32 %v359, %v591
        %v593 = vpop.f32.mrb[0].mxu0
        %v594 = vadd.f32 %v355, %v593
        %v595 = vpop.f32.mrb[0].mxu0
        %v596 = vadd.f32 %v359, %v595
        %597 = vmatprep.mubr.bf16.mxu0 0
        %598 = vmatmul.mubr.bf16.gmra.mrb[0].mxu0 %v317
        %v599 = vpop.f32.mrb[0].mxu0
        %v600 = vadd.f32 %v355, %v599
        %v601 = vpop.f32.mrb[0].mxu0
        %v602 = vadd.f32 %v359, %v601
        %v603 = vpop.f32.mrb[0].mxu0
        %v604 = vadd.f32 %v355, %v603
        %v605 = vpop.f32.mrb[0].mxu0
        %v606 = vadd.f32 %v359, %v605
        %607 = vdwg.mxu0
        %608 = vmatprep.subr.bf16.mxu0 0
        %609 = vmatpush1.bf16.msra.mxu0 %v449
        %610 = vmatprep.subr.bf16.mxu0 0
        %611 = vmatpush1.bf16.msra.mxu0 %v452
        %612 = vmatprep.subr.bf16.mxu0 0
        %613 = vmatpush1.bf16.msra.mxu0 %v455
        %614 = vmatprep.subr.bf16.mxu0 0
        %615 = vmatpush1.bf16.msra.mxu0 %v458
        %616 = vmatprep.subr.bf16.mxu0 0
        %617 = vmatpush1.bf16.msra.mxu0 %v461
        %618 = vmatprep.subr.bf16.mxu0 0
        %619 = vmatpush1.bf16.msra.mxu0 %v464
        %620 = vmatprep.subr.bf16.mxu0 0
        %621 = vmatpush1.bf16.msra.mxu0 %v467
        %622 = vmatprep.subr.bf16.mxu0 0
        %623 = vmatpush1.bf16.msra.mxu0 %v470
        %624 = vmatprep.subr.bf16.mxu0 0
        %625 = vmatpush1.bf16.msra.mxu0 0
        %626 = vmatprep.subr.bf16.mxu0 0
        %627 = vmatpush1.bf16.msra.mxu0 0
        %628 = vmatprep.subr.bf16.mxu0 0
        %629 = vmatpush1.bf16.msra.mxu0 0
        %630 = vmatprep.subr.bf16.mxu0 0
        %631 = vmatpush1.bf16.msra.mxu0 0
        %632 = vmatprep.subr.bf16.mxu0 0
        %633 = vmatpush1.bf16.msra.mxu0 0
        %634 = vmatprep.subr.bf16.mxu0 0
        %635 = vmatpush1.bf16.msra.mxu0 0
        %636 = vmatprep.subr.bf16.mxu0 0
        %637 = vmatpush1.bf16.msra.mxu0 0
        %638 = vmatprep.subr.bf16.mxu0 0
        %639 = vmatpush1.bf16.msra.mxu0 0
        %640 = vmatprep.mubr.bf16.mxu0 0
        %641 = vmatmul.mubr.bf16.gmra.mrb[0].mxu0 %v310
        %v642 = vpop.f32.mrb[0].mxu0
        %v643 = vadd.f32 %v363, %v642
        %v644 = vpop.f32.mrb[0].mxu0
        %v645 = vpop.f32.mrb[0].mxu0
        %v646 = vadd.f32 %v363, %v645
        %v647 = vpop.f32.mrb[0].mxu0
        %648 = vmatprep.mubr.bf16.mxu0 0
        %649 = vmatmul.mubr.bf16.gmra.mrb[0].mxu0 %v311
        %v650 = vpop.f32.mrb[0].mxu0
        %v651 = vadd.f32 %v363, %v650
        %v652 = vpop.f32.mrb[0].mxu0
        %v653 = vpop.f32.mrb[0].mxu0
        %v654 = vadd.f32 %v363, %v653
        %v655 = vpop.f32.mrb[0].mxu0
        %656 = vmatprep.mubr.bf16.mxu0 0
        %657 = vmatmul.mubr.bf16.gmra.mrb[0].mxu0 %v312
        %v658 = vpop.f32.mrb[0].mxu0
        %v659 = vadd.f32 %v363, %v658
        %v660 = vpop.f32.mrb[0].mxu0
        %v661 = vpop.f32.mrb[0].mxu0
        %v662 = vadd.f32 %v363, %v661
        %v663 = vpop.f32.mrb[0].mxu0
        %664 = vmatprep.mubr.bf16.mxu0 0
        %665 = vmatmul.mubr.bf16.gmra.mrb[0].mxu0 %v313
        %v666 = vpop.f32.mrb[0].mxu0
        %v667 = vadd.f32 %v363, %v666
        %v668 = vpop.f32.mrb[0].mxu0
        %v669 = vpop.f32.mrb[0].mxu0
        %v670 = vadd.f32 %v363, %v669
        %v671 = vpop.f32.mrb[0].mxu0
        %672 = vmatprep.mubr.bf16.mxu0 0
        %673 = vmatmul.mubr.bf16.gmra.mrb[0].mxu0 %v314
        %v674 = vpop.f32.mrb[0].mxu0
        %v675 = vadd.f32 %v363, %v674
        %v676 = vpop.f32.mrb[0].mxu0
        %v677 = vpop.f32.mrb[0].mxu0
        %v678 = vadd.f32 %v363, %v677
        %v679 = vpop.f32.mrb[0].mxu0
        %680 = vmatprep.mubr.bf16.mxu0 0
        %681 = vmatmul.mubr.bf16.gmra.mrb[0].mxu0 %v315
        %v682 = vpop.f32.mrb[0].mxu0
        %v683 = vadd.f32 %v363, %v682
        %v684 = vpop.f32.mrb[0].mxu0
        %v685 = vpop.f32.mrb[0].mxu0
        %v686 = vadd.f32 %v363, %v685
        %v687 = vpop.f32.mrb[0].mxu0
        %688 = vmatprep.mubr.bf16.mxu0 0
        %689 = vmatmul.mubr.bf16.gmra.mrb[0].mxu0 %v316
        %v690 = vpop.f32.mrb[0].mxu0
        %v691 = vadd.f32 %v363, %v690
        %v692 = vpop.f32.mrb[0].mxu0
        %v693 = vpop.f32.mrb[0].mxu0
        %v694 = vadd.f32 %v363, %v693
        %v695 = vpop.f32.mrb[0].mxu0
        %696 = vmatprep.mubr.bf16.mxu0 0
        %697 = vmatmul.mubr.bf16.gmra.mrb[0].mxu0 %v317
        %v698 = vpop.f32.mrb[0].mxu0
        %v699 = vadd.f32 %v363, %v698
        %v700 = vpop.f32.mrb[0].mxu0
        %v701 = vpop.f32.mrb[0].mxu0
        %v702 = vadd.f32 %v363, %v701
        %v703 = vpop.f32.mrb[0].mxu0
        %704 = vdwg.mxu0
        %v705 = vmul.f32 %v530, 0.25
        %v706 = vmul.f32 %v534, 0.25
        %v707 = vmul.f32 %v540, 0.25
        %v708 = vmul.f32 %v544, 0.25
        %v709 = vmul.f32 %v550, 0.25
        %v710 = vmul.f32 %v554, 0.25
        %v711 = vmul.f32 %v560, 0.25
        %v712 = vmul.f32 %v564, 0.25
        %v713 = vmul.f32 %v570, 0.25
        %v714 = vmul.f32 %v574, 0.25
        %v715 = vmul.f32 %v580, 0.25
        %v716 = vmul.f32 %v584, 0.25
        %v717 = vmul.f32 %v590, 0.25
        %v718 = vmul.f32 %v594, 0.25
        %v719 = vmul.f32 %v600, 0.25
        %v720 = vmul.f32 %v604, 0.25
        %v721 = vpack.c.bf16 %v706, %v705
        %v722 = vpack.c.bf16 %v708, %v707
        %v723 = vpack.c.bf16 %v710, %v709
        %v724 = vpack.c.bf16 %v712, %v711
        %v725 = vpack.c.bf16 %v714, %v713
        %v726 = vpack.c.bf16 %v716, %v715
        %v727 = vpack.c.bf16 %v718, %v717
        %v728 = vpack.c.bf16 %v720, %v719
        %v737 = vunpack.c.l.b16 %v721
        %v738 = vunpack.c.h.b16 %v721
        %v739 = vunpack.c.l.b16 %v722
        %v740 = vunpack.c.h.b16 %v722
        %v741 = vunpack.c.l.b16 %v723
        %v742 = vunpack.c.h.b16 %v723
        %v743 = vunpack.c.l.b16 %v724
        %v744 = vunpack.c.h.b16 %v724
        %v745 = vunpack.c.l.b16 %v725
        %v746 = vunpack.c.h.b16 %v725
        %v747 = vunpack.c.l.b16 %v726
        %v748 = vunpack.c.h.b16 %v726
        %v749 = vunpack.c.l.b16 %v727
        %v750 = vunpack.c.h.b16 %v727
        %v751 = vunpack.c.l.b16 %v728
        %v752 = vunpack.c.h.b16 %v728
        %v753 = vpack.c.b16 %v737, %v737
        %v754 = vpack.c.b16 %v738, %v738
        %v755 = vpack.c.b16 %v739, %v739
        %v756 = vpack.c.b16 %v740, %v740
        %v757 = vpack.c.b16 %v741, %v741
        %v758 = vpack.c.b16 %v742, %v742
        %v759 = vpack.c.b16 %v743, %v743
        %v760 = vpack.c.b16 %v744, %v744
        %v761 = vpack.c.b16 %v745, %v745
        %v762 = vpack.c.b16 %v746, %v746
        %v763 = vpack.c.b16 %v747, %v747
        %v764 = vpack.c.b16 %v748, %v748
        %v765 = vpack.c.b16 %v749, %v749
        %v766 = vpack.c.b16 %v750, %v750
        %v767 = vpack.c.b16 %v751, %v751
        %v768 = vpack.c.b16 %v752, %v752
        %vm785 = vcmask 125952
        %786 = vst.msk [vmem:[%s276] sm:$0xf] %vm785, %v753
        %787 = vst.msk [vmem:[%s276 + $0x4] sm:$0xf] %vm785, %v754
        %788 = vst.msk [vmem:[%s276 + $0x8] sm:$0xf] %vm785, %v755
        %789 = vst.msk [vmem:[%s276 + $0xc] sm:$0xf] %vm785, %v756
        %790 = vst.msk [vmem:[%s276 + $0x10] sm:$0xf] %vm785, %v757
        %791 = vst.msk [vmem:[%s276 + $0x14] sm:$0xf] %vm785, %v758
        %792 = vst.msk [vmem:[%s276 + $0x18] sm:$0xf] %vm785, %v759
        %793 = vst.msk [vmem:[%s276 + $0x1c] sm:$0xf] %vm785, %v760
        %794 = vst.msk [vmem:[%s276 + $0x20] sm:$0xf] %vm785, %v761
        %795 = vst.msk [vmem:[%s276 + $0x24] sm:$0xf] %vm785, %v762
        %796 = vst.msk [vmem:[%s276 + $0x28] sm:$0xf] %vm785, %v763
        %797 = vst.msk [vmem:[%s276 + $0x2c] sm:$0xf] %vm785, %v764
        %798 = vst.msk [vmem:[%s276 + $0x30] sm:$0xf] %vm785, %v765
        %799 = vst.msk [vmem:[%s276 + $0x34] sm:$0xf] %vm785, %v766
        %800 = vst.msk [vmem:[%s276 + $0x38] sm:$0xf] %vm785, %v767
        %801 = vst.msk [vmem:[%s276 + $0x3c] sm:$0xf] %vm785, %v768
        %v802 = vpack.c.bf16 %v536, %v532
        %v803 = vpack.c.bf16 %v546, %v542
        %v804 = vpack.c.bf16 %v556, %v552
        %v805 = vpack.c.bf16 %v566, %v562
        %v806 = vpack.c.bf16 %v576, %v572
        %v807 = vpack.c.bf16 %v586, %v582
        %v808 = vpack.c.bf16 %v596, %v592
        %v809 = vpack.c.bf16 %v606, %v602
        %v818 = vunpack.c.l.b16 %v802
        %v819 = vunpack.c.h.b16 %v802
        %v820 = vunpack.c.l.b16 %v803
        %v821 = vunpack.c.h.b16 %v803
        %v822 = vunpack.c.l.b16 %v804
        %v823 = vunpack.c.h.b16 %v804
        %v824 = vunpack.c.l.b16 %v805
        %v825 = vunpack.c.h.b16 %v805
        %v826 = vunpack.c.l.b16 %v806
        %v827 = vunpack.c.h.b16 %v806
        %v828 = vunpack.c.l.b16 %v807
        %v829 = vunpack.c.h.b16 %v807
        %v830 = vunpack.c.l.b16 %v808
        %v831 = vunpack.c.h.b16 %v808
        %v832 = vunpack.c.l.b16 %v809
        %v833 = vunpack.c.h.b16 %v809
        %v834 = vpack.c.b16 %v818, %v818
        %v835 = vpack.c.b16 %v819, %v819
        %v836 = vpack.c.b16 %v820, %v820
        %v837 = vpack.c.b16 %v821, %v821
        %v838 = vpack.c.b16 %v822, %v822
        %v839 = vpack.c.b16 %v823, %v823
        %v840 = vpack.c.b16 %v824, %v824
        %v841 = vpack.c.b16 %v825, %v825
        %v842 = vpack.c.b16 %v826, %v826
        %v843 = vpack.c.b16 %v827, %v827
        %v844 = vpack.c.b16 %v828, %v828
        %v845 = vpack.c.b16 %v829, %v829
        %v846 = vpack.c.b16 %v830, %v830
        %v847 = vpack.c.b16 %v831, %v831
        %v848 = vpack.c.b16 %v832, %v832
        %v849 = vpack.c.b16 %v833, %v833
        %866 = vst.msk [vmem:[%s282] sm:$0xf] %vm785, %v834
        %867 = vst.msk [vmem:[%s282 + $0x4] sm:$0xf] %vm785, %v835
        %868 = vst.msk [vmem:[%s282 + $0x8] sm:$0xf] %vm785, %v836
        %869 = vst.msk [vmem:[%s282 + $0xc] sm:$0xf] %vm785, %v837
        %870 = vst.msk [vmem:[%s282 + $0x10] sm:$0xf] %vm785, %v838
        %871 = vst.msk [vmem:[%s282 + $0x14] sm:$0xf] %vm785, %v839
        %872 = vst.msk [vmem:[%s282 + $0x18] sm:$0xf] %vm785, %v840
        %873 = vst.msk [vmem:[%s282 + $0x1c] sm:$0xf] %vm785, %v841
        %874 = vst.msk [vmem:[%s282 + $0x20] sm:$0xf] %vm785, %v842
        %875 = vst.msk [vmem:[%s282 + $0x24] sm:$0xf] %vm785, %v843
        %876 = vst.msk [vmem:[%s282 + $0x28] sm:$0xf] %vm785, %v844
        %877 = vst.msk [vmem:[%s282 + $0x2c] sm:$0xf] %vm785, %v845
        %878 = vst.msk [vmem:[%s282 + $0x30] sm:$0xf] %vm785, %v846
        %879 = vst.msk [vmem:[%s282 + $0x34] sm:$0xf] %vm785, %v847
        %880 = vst.msk [vmem:[%s282 + $0x38] sm:$0xf] %vm785, %v848
        %881 = vst.msk [vmem:[%s282 + $0x3c] sm:$0xf] %vm785, %v849
        %v882 = vpack.c.bf16 %v646, %v643
        %v883 = vpack.c.bf16 %v654, %v651
        %v884 = vpack.c.bf16 %v662, %v659
        %v885 = vpack.c.bf16 %v670, %v667
        %v886 = vpack.c.bf16 %v678, %v675
        %v887 = vpack.c.bf16 %v686, %v683
        %v888 = vpack.c.bf16 %v694, %v691
        %v889 = vpack.c.bf16 %v702, %v699
        %v898 = vunpack.c.l.b16 %v882
        %v899 = vunpack.c.h.b16 %v882
        %v900 = vunpack.c.l.b16 %v883
        %v901 = vunpack.c.h.b16 %v883
        %v902 = vunpack.c.l.b16 %v884
        %v903 = vunpack.c.h.b16 %v884
        %v904 = vunpack.c.l.b16 %v885
        %v905 = vunpack.c.h.b16 %v885
        %v906 = vunpack.c.l.b16 %v886
        %v907 = vunpack.c.h.b16 %v886
        %v908 = vunpack.c.l.b16 %v887
        %v909 = vunpack.c.h.b16 %v887
        %v910 = vunpack.c.l.b16 %v888
        %v911 = vunpack.c.h.b16 %v888
        %v912 = vunpack.c.l.b16 %v889
        %v913 = vunpack.c.h.b16 %v889
        %v914 = vpack.c.b16 %v898, %v898
        %v915 = vpack.c.b16 %v899, %v899
        %v916 = vpack.c.b16 %v900, %v900
        %v917 = vpack.c.b16 %v901, %v901
        %v918 = vpack.c.b16 %v902, %v902
        %v919 = vpack.c.b16 %v903, %v903
        %v920 = vpack.c.b16 %v904, %v904
        %v921 = vpack.c.b16 %v905, %v905
        %v922 = vpack.c.b16 %v906, %v906
        %v923 = vpack.c.b16 %v907, %v907
        %v924 = vpack.c.b16 %v908, %v908
        %v925 = vpack.c.b16 %v909, %v909
        %v926 = vpack.c.b16 %v910, %v910
        %v927 = vpack.c.b16 %v911, %v911
        %v928 = vpack.c.b16 %v912, %v912
        %v929 = vpack.c.b16 %v913, %v913
        %946 = vst.msk [vmem:[%s288] sm:$0xf] %vm785, %v914
        %947 = vst.msk [vmem:[%s288 + $0x4] sm:$0xf] %vm785, %v915
        %948 = vst.msk [vmem:[%s288 + $0x8] sm:$0xf] %vm785, %v916
        %949 = vst.msk [vmem:[%s288 + $0xc] sm:$0xf] %vm785, %v917
        %950 = vst.msk [vmem:[%s288 + $0x10] sm:$0xf] %vm785, %v918
        %951 = vst.msk [vmem:[%s288 + $0x14] sm:$0xf] %vm785, %v919
        %952 = vst.msk [vmem:[%s288 + $0x18] sm:$0xf] %vm785, %v920
        %953 = vst.msk [vmem:[%s288 + $0x1c] sm:$0xf] %vm785, %v921
        %954 = vst.msk [vmem:[%s288 + $0x20] sm:$0xf] %vm785, %v922
        %955 = vst.msk [vmem:[%s288 + $0x24] sm:$0xf] %vm785, %v923
        %956 = vst.msk [vmem:[%s288 + $0x28] sm:$0xf] %vm785, %v924
        %957 = vst.msk [vmem:[%s288 + $0x2c] sm:$0xf] %vm785, %v925
        %958 = vst.msk [vmem:[%s288 + $0x30] sm:$0xf] %vm785, %v926
        %959 = vst.msk [vmem:[%s288 + $0x34] sm:$0xf] %vm785, %v927
        %960 = vst.msk [vmem:[%s288 + $0x38] sm:$0xf] %vm785, %v928
        %961 = vst.msk [vmem:[%s288 + $0x3c] sm:$0xf] %vm785, %v929
        %962 = vrot.lane.b32.xlu0 %v753, 112
        %v963 = vpop.permute.xlu0 %962
        %964 = vrot.lane.b32.xlu0 %v754, 112
        %v965 = vpop.permute.xlu0 %964
        %966 = vrot.lane.b32.xlu0 %v755, 112
        %v967 = vpop.permute.xlu0 %966
        %968 = vrot.lane.b32.xlu0 %v756, 112
        %v969 = vpop.permute.xlu0 %968
        %970 = vrot.lane.b32.xlu0 %v757, 112
        %v971 = vpop.permute.xlu0 %970
        %972 = vrot.lane.b32.xlu0 %v758, 112
        %v973 = vpop.permute.xlu0 %972
        %974 = vrot.lane.b32.xlu0 %v759, 112
        %v975 = vpop.permute.xlu0 %974
        %976 = vrot.lane.b32.xlu0 %v760, 112
        %v977 = vpop.permute.xlu0 %976
        %978 = vrot.lane.b32.xlu0 %v761, 112
        %v979 = vpop.permute.xlu0 %978
        %980 = vrot.lane.b32.xlu0 %v762, 112
        %v981 = vpop.permute.xlu0 %980
        %982 = vrot.lane.b32.xlu0 %v763, 112
        %v983 = vpop.permute.xlu0 %982
        %984 = vrot.lane.b32.xlu0 %v764, 112
        %v985 = vpop.permute.xlu0 %984
        %986 = vrot.lane.b32.xlu0 %v765, 112
        %v987 = vpop.permute.xlu0 %986
        %988 = vrot.lane.b32.xlu0 %v766, 112
        %v989 = vpop.permute.xlu0 %988
        %990 = vrot.lane.b32.xlu0 %v767, 112
        %v991 = vpop.permute.xlu0 %990
        %992 = vrot.lane.b32.xlu0 %v768, 112
        %v993 = vpop.permute.xlu0 %992
        %s1010 = scalar_lea.vmem %s276, 64 [#allocation6]
        %1011 = vst.msk [vmem:[%s1010] sm:$0xf] %vm785, %v963
        %1012 = vst.msk [vmem:[%s1010 + $0x4] sm:$0xf] %vm785, %v965
        %1013 = vst.msk [vmem:[%s1010 + $0x8] sm:$0xf] %vm785, %v967
        %1014 = vst.msk [vmem:[%s1010 + $0xc] sm:$0xf] %vm785, %v969
        %1015 = vst.msk [vmem:[%s1010 + $0x10] sm:$0xf] %vm785, %v971
        %1016 = vst.msk [vmem:[%s1010 + $0x14] sm:$0xf] %vm785, %v973
        %1017 = vst.msk [vmem:[%s1010 + $0x18] sm:$0xf] %vm785, %v975
        %1018 = vst.msk [vmem:[%s1010 + $0x1c] sm:$0xf] %vm785, %v977
        %1019 = vst.msk [vmem:[%s1010 + $0x20] sm:$0xf] %vm785, %v979
        %1020 = vst.msk [vmem:[%s1010 + $0x24] sm:$0xf] %vm785, %v981
        %1021 = vst.msk [vmem:[%s1010 + $0x28] sm:$0xf] %vm785, %v983
        %1022 = vst.msk [vmem:[%s1010 + $0x2c] sm:$0xf] %vm785, %v985
        %1023 = vst.msk [vmem:[%s1010 + $0x30] sm:$0xf] %vm785, %v987
        %1024 = vst.msk [vmem:[%s1010 + $0x34] sm:$0xf] %vm785, %v989
        %1025 = vst.msk [vmem:[%s1010 + $0x38] sm:$0xf] %vm785, %v991
        %1026 = vst.msk [vmem:[%s1010 + $0x3c] sm:$0xf] %vm785, %v993
        %1027 = vrot.lane.b32.xlu0 %v834, 112
        %v1028 = vpop.permute.xlu0 %1027
        %1029 = vrot.lane.b32.xlu0 %v835, 112
        %v1030 = vpop.permute.xlu0 %1029
        %1031 = vrot.lane.b32.xlu0 %v836, 112
        %v1032 = vpop.permute.xlu0 %1031
        %1033 = vrot.lane.b32.xlu0 %v837, 112
        %v1034 = vpop.permute.xlu0 %1033
        %1035 = vrot.lane.b32.xlu0 %v838, 112
        %v1036 = vpop.permute.xlu0 %1035
        %1037 = vrot.lane.b32.xlu0 %v839, 112
        %v1038 = vpop.permute.xlu0 %1037
        %1039 = vrot.lane.b32.xlu0 %v840, 112
        %v1040 = vpop.permute.xlu0 %1039
        %1041 = vrot.lane.b32.xlu0 %v841, 112
        %v1042 = vpop.permute.xlu0 %1041
        %1043 = vrot.lane.b32.xlu0 %v842, 112
        %v1044 = vpop.permute.xlu0 %1043
        %1045 = vrot.lane.b32.xlu0 %v843, 112
        %v1046 = vpop.permute.xlu0 %1045
        %1047 = vrot.lane.b32.xlu0 %v844, 112
        %v1048 = vpop.permute.xlu0 %1047
        %1049 = vrot.lane.b32.xlu0 %v845, 112
        %v1050 = vpop.permute.xlu0 %1049
        %1051 = vrot.lane.b32.xlu0 %v846, 112
        %v1052 = vpop.permute.xlu0 %1051
        %1053 = vrot.lane.b32.xlu0 %v847, 112
        %v1054 = vpop.permute.xlu0 %1053
        %1055 = vrot.lane.b32.xlu0 %v848, 112
        %v1056 = vpop.permute.xlu0 %1055
        %1057 = vrot.lane.b32.xlu0 %v849, 112
        %v1058 = vpop.permute.xlu0 %1057
        %s1075 = scalar_lea.vmem %s282, 64 [#allocation7]
        %1076 = vst.msk [vmem:[%s1075] sm:$0xf] %vm785, %v1028
        %1077 = vst.msk [vmem:[%s1075 + $0x4] sm:$0xf] %vm785, %v1030
        %1078 = vst.msk [vmem:[%s1075 + $0x8] sm:$0xf] %vm785, %v1032
        %1079 = vst.msk [vmem:[%s1075 + $0xc] sm:$0xf] %vm785, %v1034
        %1080 = vst.msk [vmem:[%s1075 + $0x10] sm:$0xf] %vm785, %v1036
        %1081 = vst.msk [vmem:[%s1075 + $0x14] sm:$0xf] %vm785, %v1038
        %1082 = vst.msk [vmem:[%s1075 + $0x18] sm:$0xf] %vm785, %v1040
        %1083 = vst.msk [vmem:[%s1075 + $0x1c] sm:$0xf] %vm785, %v1042
        %1084 = vst.msk [vmem:[%s1075 + $0x20] sm:$0xf] %vm785, %v1044
        %1085 = vst.msk [vmem:[%s1075 + $0x24] sm:$0xf] %vm785, %v1046
        %1086 = vst.msk [vmem:[%s1075 + $0x28] sm:$0xf] %vm785, %v1048
        %1087 = vst.msk [vmem:[%s1075 + $0x2c] sm:$0xf] %vm785, %v1050
        %1088 = vst.msk [vmem:[%s1075 + $0x30] sm:$0xf] %vm785, %v1052
        %1089 = vst.msk [vmem:[%s1075 + $0x34] sm:$0xf] %vm785, %v1054
        %1090 = vst.msk [vmem:[%s1075 + $0x38] sm:$0xf] %vm785, %v1056
        %1091 = vst.msk [vmem:[%s1075 + $0x3c] sm:$0xf] %vm785, %v1058
        %1092 = vrot.lane.b32.xlu0 %v914, 112
        %v1093 = vpop.permute.xlu0 %1092
        %1094 = vrot.lane.b32.xlu0 %v915, 112
        %v1095 = vpop.permute.xlu0 %1094
        %1096 = vrot.lane.b32.xlu0 %v916, 112
        %v1097 = vpop.permute.xlu0 %1096
        %1098 = vrot.lane.b32.xlu0 %v917, 112
        %v1099 = vpop.permute.xlu0 %1098
        %1100 = vrot.lane.b32.xlu0 %v918, 112
        %v1101 = vpop.permute.xlu0 %1100
        %1102 = vrot.lane.b32.xlu0 %v919, 112
        %v1103 = vpop.permute.xlu0 %1102
        %1104 = vrot.lane.b32.xlu0 %v920, 112
        %v1105 = vpop.permute.xlu0 %1104
        %1106 = vrot.lane.b32.xlu0 %v921, 112
        %v1107 = vpop.permute.xlu0 %1106
        %1108 = vrot.lane.b32.xlu0 %v922, 112
        %v1109 = vpop.permute.xlu0 %1108
        %1110 = vrot.lane.b32.xlu0 %v923, 112
        %v1111 = vpop.permute.xlu0 %1110
        %1112 = vrot.lane.b32.xlu0 %v924, 112
        %v1113 = vpop.permute.xlu0 %1112
        %1114 = vrot.lane.b32.xlu0 %v925, 112
        %v1115 = vpop.permute.xlu0 %1114
        %1116 = vrot.lane.b32.xlu0 %v926, 112
        %v1117 = vpop.permute.xlu0 %1116
        %1118 = vrot.lane.b32.xlu0 %v927, 112
        %v1119 = vpop.permute.xlu0 %1118
        %1120 = vrot.lane.b32.xlu0 %v928, 112
        %v1121 = vpop.permute.xlu0 %1120
        %1122 = vrot.lane.b32.xlu0 %v929, 112
        %v1123 = vpop.permute.xlu0 %1122
        %s1140 = scalar_lea.vmem %s288, 64 [#allocation8]
        %1141 = vst.msk [vmem:[%s1140] sm:$0xf] %vm785, %v1093
        %1142 = vst.msk [vmem:[%s1140 + $0x4] sm:$0xf] %vm785, %v1095
        %1143 = vst.msk [vmem:[%s1140 + $0x8] sm:$0xf] %vm785, %v1097
        %1144 = vst.msk [vmem:[%s1140 + $0xc] sm:$0xf] %vm785, %v1099
        %1145 = vst.msk [vmem:[%s1140 + $0x10] sm:$0xf] %vm785, %v1101
        %1146 = vst.msk [vmem:[%s1140 + $0x14] sm:$0xf] %vm785, %v1103
        %1147 = vst.msk [vmem:[%s1140 + $0x18] sm:$0xf] %vm785, %v1105
        %1148 = vst.msk [vmem:[%s1140 + $0x1c] sm:$0xf] %vm785, %v1107
        %1149 = vst.msk [vmem:[%s1140 + $0x20] sm:$0xf] %vm785, %v1109
        %1150 = vst.msk [vmem:[%s1140 + $0x24] sm:$0xf] %vm785, %v1111
        %1151 = vst.msk [vmem:[%s1140 + $0x28] sm:$0xf] %vm785, %v1113
        %1152 = vst.msk [vmem:[%s1140 + $0x2c] sm:$0xf] %vm785, %v1115
        %1153 = vst.msk [vmem:[%s1140 + $0x30] sm:$0xf] %vm785, %v1117
        %1154 = vst.msk [vmem:[%s1140 + $0x34] sm:$0xf] %vm785, %v1119
        %1155 = vst.msk [vmem:[%s1140 + $0x38] sm:$0xf] %vm785, %v1121
        %1156 = vst.msk [vmem:[%s1140 + $0x3c] sm:$0xf] %vm785, %v1123
        %1157 = vrot.lane.b32.xlu0 %v753, 96
        %v1158 = vpop.permute.xlu0 %1157
        %1159 = vrot.lane.b32.xlu0 %v754, 96
        %v1160 = vpop.permute.xlu0 %1159
        %1161 = vrot.lane.b32.xlu0 %v755, 96
        %v1162 = vpop.permute.xlu0 %1161
        %1163 = vrot.lane.b32.xlu0 %v756, 96
        %v1164 = vpop.permute.xlu0 %1163
        %1165 = vrot.lane.b32.xlu0 %v757, 96
        %v1166 = vpop.permute.xlu0 %1165
        %1167 = vrot.lane.b32.xlu0 %v758, 96
        %v1168 = vpop.permute.xlu0 %1167
        %1169 = vrot.lane.b32.xlu0 %v759, 96
        %v1170 = vpop.permute.xlu0 %1169
        %1171 = vrot.lane.b32.xlu0 %v760, 96
        %v1172 = vpop.permute.xlu0 %1171
        %1173 = vrot.lane.b32.xlu0 %v761, 96
        %v1174 = vpop.permute.xlu0 %1173
        %1175 = vrot.lane.b32.xlu0 %v762, 96
        %v1176 = vpop.permute.xlu0 %1175
        %1177 = vrot.lane.b32.xlu0 %v763, 96
        %v1178 = vpop.permute.xlu0 %1177
        %1179 = vrot.lane.b32.xlu0 %v764, 96
        %v1180 = vpop.permute.xlu0 %1179
        %1181 = vrot.lane.b32.xlu0 %v765, 96
        %v1182 = vpop.permute.xlu0 %1181
        %1183 = vrot.lane.b32.xlu0 %v766, 96
        %v1184 = vpop.permute.xlu0 %1183
        %1185 = vrot.lane.b32.xlu0 %v767, 96
        %v1186 = vpop.permute.xlu0 %1185
        %1187 = vrot.lane.b32.xlu0 %v768, 96
        %v1188 = vpop.permute.xlu0 %1187
        %s1205 = scalar_lea.vmem %s276, 128 [#allocation6]
        %1206 = vst.msk [vmem:[%s1205] sm:$0xf] %vm785, %v1158
        %1207 = vst.msk [vmem:[%s1205 + $0x4] sm:$0xf] %vm785, %v1160
        %1208 = vst.msk [vmem:[%s1205 + $0x8] sm:$0xf] %vm785, %v1162
        %1209 = vst.msk [vmem:[%s1205 + $0xc] sm:$0xf] %vm785, %v1164
        %1210 = vst.msk [vmem:[%s1205 + $0x10] sm:$0xf] %vm785, %v1166
        %1211 = vst.msk [vmem:[%s1205 + $0x14] sm:$0xf] %vm785, %v1168
        %1212 = vst.msk [vmem:[%s1205 + $0x18] sm:$0xf] %vm785, %v1170
        %1213 = vst.msk [vmem:[%s1205 + $0x1c] sm:$0xf] %vm785, %v1172
        %1214 = vst.msk [vmem:[%s1205 + $0x20] sm:$0xf] %vm785, %v1174
        %1215 = vst.msk [vmem:[%s1205 + $0x24] sm:$0xf] %vm785, %v1176
        %1216 = vst.msk [vmem:[%s1205 + $0x28] sm:$0xf] %vm785, %v1178
        %1217 = vst.msk [vmem:[%s1205 + $0x2c] sm:$0xf] %vm785, %v1180
        %1218 = vst.msk [vmem:[%s1205 + $0x30] sm:$0xf] %vm785, %v1182
        %1219 = vst.msk [vmem:[%s1205 + $0x34] sm:$0xf] %vm785, %v1184
        %1220 = vst.msk [vmem:[%s1205 + $0x38] sm:$0xf] %vm785, %v1186
        %1221 = vst.msk [vmem:[%s1205 + $0x3c] sm:$0xf] %vm785, %v1188
        %1222 = vrot.lane.b32.xlu0 %v834, 96
        %v1223 = vpop.permute.xlu0 %1222
        %1224 = vrot.lane.b32.xlu0 %v835, 96
        %v1225 = vpop.permute.xlu0 %1224
        %1226 = vrot.lane.b32.xlu0 %v836, 96
        %v1227 = vpop.permute.xlu0 %1226
        %1228 = vrot.lane.b32.xlu0 %v837, 96
        %v1229 = vpop.permute.xlu0 %1228
        %1230 = vrot.lane.b32.xlu0 %v838, 96
        %v1231 = vpop.permute.xlu0 %1230
        %1232 = vrot.lane.b32.xlu0 %v839, 96
        %v1233 = vpop.permute.xlu0 %1232
        %1234 = vrot.lane.b32.xlu0 %v840, 96
        %v1235 = vpop.permute.xlu0 %1234
        %1236 = vrot.lane.b32.xlu0 %v841, 96
        %v1237 = vpop.permute.xlu0 %1236
        %1238 = vrot.lane.b32.xlu0 %v842, 96
        %v1239 = vpop.permute.xlu0 %1238
        %1240 = vrot.lane.b32.xlu0 %v843, 96
        %v1241 = vpop.permute.xlu0 %1240
        %1242 = vrot.lane.b32.xlu0 %v844, 96
        %v1243 = vpop.permute.xlu0 %1242
        %1244 = vrot.lane.b32.xlu0 %v845, 96
        %v1245 = vpop.permute.xlu0 %1244
        %1246 = vrot.lane.b32.xlu0 %v846, 96
        %v1247 = vpop.permute.xlu0 %1246
        %1248 = vrot.lane.b32.xlu0 %v847, 96
        %v1249 = vpop.permute.xlu0 %1248
        %1250 = vrot.lane.b32.xlu0 %v848, 96
        %v1251 = vpop.permute.xlu0 %1250
        %1252 = vrot.lane.b32.xlu0 %v849, 96
        %v1253 = vpop.permute.xlu0 %1252
        %s1270 = scalar_lea.vmem %s282, 128 [#allocation7]
        %1271 = vst.msk [vmem:[%s1270] sm:$0xf] %vm785, %v1223
        %1272 = vst.msk [vmem:[%s1270 + $0x4] sm:$0xf] %vm785, %v1225
        %1273 = vst.msk [vmem:[%s1270 + $0x8] sm:$0xf] %vm785, %v1227
        %1274 = vst.msk [vmem:[%s1270 + $0xc] sm:$0xf] %vm785, %v1229
        %1275 = vst.msk [vmem:[%s1270 + $0x10] sm:$0xf] %vm785, %v1231
        %1276 = vst.msk [vmem:[%s1270 + $0x14] sm:$0xf] %vm785, %v1233
        %1277 = vst.msk [vmem:[%s1270 + $0x18] sm:$0xf] %vm785, %v1235
        %1278 = vst.msk [vmem:[%s1270 + $0x1c] sm:$0xf] %vm785, %v1237
        %1279 = vst.msk [vmem:[%s1270 + $0x20] sm:$0xf] %vm785, %v1239
        %1280 = vst.msk [vmem:[%s1270 + $0x24] sm:$0xf] %vm785, %v1241
        %1281 = vst.msk [vmem:[%s1270 + $0x28] sm:$0xf] %vm785, %v1243
        %1282 = vst.msk [vmem:[%s1270 + $0x2c] sm:$0xf] %vm785, %v1245
        %1283 = vst.msk [vmem:[%s1270 + $0x30] sm:$0xf] %vm785, %v1247
        %1284 = vst.msk [vmem:[%s1270 + $0x34] sm:$0xf] %vm785, %v1249
        %1285 = vst.msk [vmem:[%s1270 + $0x38] sm:$0xf] %vm785, %v1251
        %1286 = vst.msk [vmem:[%s1270 + $0x3c] sm:$0xf] %vm785, %v1253
        %1287 = vrot.lane.b32.xlu0 %v914, 96
        %v1288 = vpop.permute.xlu0 %1287
        %1289 = vrot.lane.b32.xlu0 %v915, 96
        %v1290 = vpop.permute.xlu0 %1289
        %1291 = vrot.lane.b32.xlu0 %v916, 96
        %v1292 = vpop.permute.xlu0 %1291
        %1293 = vrot.lane.b32.xlu0 %v917, 96
        %v1294 = vpop.permute.xlu0 %1293
        %1295 = vrot.lane.b32.xlu0 %v918, 96
        %v1296 = vpop.permute.xlu0 %1295
        %1297 = vrot.lane.b32.xlu0 %v919, 96
        %v1298 = vpop.permute.xlu0 %1297
        %1299 = vrot.lane.b32.xlu0 %v920, 96
        %v1300 = vpop.permute.xlu0 %1299
        %1301 = vrot.lane.b32.xlu0 %v921, 96
        %v1302 = vpop.permute.xlu0 %1301
        %1303 = vrot.lane.b32.xlu0 %v922, 96
        %v1304 = vpop.permute.xlu0 %1303
        %1305 = vrot.lane.b32.xlu0 %v923, 96
        %v1306 = vpop.permute.xlu0 %1305
        %1307 = vrot.lane.b32.xlu0 %v924, 96
        %v1308 = vpop.permute.xlu0 %1307
        %1309 = vrot.lane.b32.xlu0 %v925, 96
        %v1310 = vpop.permute.xlu0 %1309
        %1311 = vrot.lane.b32.xlu0 %v926, 96
        %v1312 = vpop.permute.xlu0 %1311
        %1313 = vrot.lane.b32.xlu0 %v927, 96
        %v1314 = vpop.permute.xlu0 %1313
        %1315 = vrot.lane.b32.xlu0 %v928, 96
        %v1316 = vpop.permute.xlu0 %1315
        %1317 = vrot.lane.b32.xlu0 %v929, 96
        %v1318 = vpop.permute.xlu0 %1317
        %s1335 = scalar_lea.vmem %s288, 128 [#allocation8]
        %1336 = vst.msk [vmem:[%s1335] sm:$0xf] %vm785, %v1288
        %1337 = vst.msk [vmem:[%s1335 + $0x4] sm:$0xf] %vm785, %v1290
        %1338 = vst.msk [vmem:[%s1335 + $0x8] sm:$0xf] %vm785, %v1292
        %1339 = vst.msk [vmem:[%s1335 + $0xc] sm:$0xf] %vm785, %v1294
        %1340 = vst.msk [vmem:[%s1335 + $0x10] sm:$0xf] %vm785, %v1296
        %1341 = vst.msk [vmem:[%s1335 + $0x14] sm:$0xf] %vm785, %v1298
        %1342 = vst.msk [vmem:[%s1335 + $0x18] sm:$0xf] %vm785, %v1300
        %1343 = vst.msk [vmem:[%s1335 + $0x1c] sm:$0xf] %vm785, %v1302
        %1344 = vst.msk [vmem:[%s1335 + $0x20] sm:$0xf] %vm785, %v1304
        %1345 = vst.msk [vmem:[%s1335 + $0x24] sm:$0xf] %vm785, %v1306
        %1346 = vst.msk [vmem:[%s1335 + $0x28] sm:$0xf] %vm785, %v1308
        %1347 = vst.msk [vmem:[%s1335 + $0x2c] sm:$0xf] %vm785, %v1310
        %1348 = vst.msk [vmem:[%s1335 + $0x30] sm:$0xf] %vm785, %v1312
        %1349 = vst.msk [vmem:[%s1335 + $0x34] sm:$0xf] %vm785, %v1314
        %1350 = vst.msk [vmem:[%s1335 + $0x38] sm:$0xf] %vm785, %v1316
        %1351 = vst.msk [vmem:[%s1335 + $0x3c] sm:$0xf] %vm785, %v1318
        %1352 = vrot.lane.b32.xlu0 %v753, 80
        %v1353 = vpop.permute.xlu0 %1352
        %1354 = vrot.lane.b32.xlu0 %v754, 80
        %v1355 = vpop.permute.xlu0 %1354
        %1356 = vrot.lane.b32.xlu0 %v755, 80
        %v1357 = vpop.permute.xlu0 %1356
        %1358 = vrot.lane.b32.xlu0 %v756, 80
        %v1359 = vpop.permute.xlu0 %1358
        %1360 = vrot.lane.b32.xlu0 %v757, 80
        %v1361 = vpop.permute.xlu0 %1360
        %1362 = vrot.lane.b32.xlu0 %v758, 80
        %v1363 = vpop.permute.xlu0 %1362
        %1364 = vrot.lane.b32.xlu0 %v759, 80
        %v1365 = vpop.permute.xlu0 %1364
        %1366 = vrot.lane.b32.xlu0 %v760, 80
        %v1367 = vpop.permute.xlu0 %1366
        %1368 = vrot.lane.b32.xlu0 %v761, 80
        %v1369 = vpop.permute.xlu0 %1368
        %1370 = vrot.lane.b32.xlu0 %v762, 80
        %v1371 = vpop.permute.xlu0 %1370
        %1372 = vrot.lane.b32.xlu0 %v763, 80
        %v1373 = vpop.permute.xlu0 %1372
        %1374 = vrot.lane.b32.xlu0 %v764, 80
        %v1375 = vpop.permute.xlu0 %1374
        %1376 = vrot.lane.b32.xlu0 %v765, 80
        %v1377 = vpop.permute.xlu0 %1376
        %1378 = vrot.lane.b32.xlu0 %v766, 80
        %v1379 = vpop.permute.xlu0 %1378
        %1380 = vrot.lane.b32.xlu0 %v767, 80
        %v1381 = vpop.permute.xlu0 %1380
        %1382 = vrot.lane.b32.xlu0 %v768, 80
        %v1383 = vpop.permute.xlu0 %1382
        %s1400 = scalar_lea.vmem %s276, 192 [#allocation6]
        %1401 = vst.msk [vmem:[%s1400] sm:$0xf] %vm785, %v1353
        %1402 = vst.msk [vmem:[%s1400 + $0x4] sm:$0xf] %vm785, %v1355
        %1403 = vst.msk [vmem:[%s1400 + $0x8] sm:$0xf] %vm785, %v1357
        %1404 = vst.msk [vmem:[%s1400 + $0xc] sm:$0xf] %vm785, %v1359
        %1405 = vst.msk [vmem:[%s1400 + $0x10] sm:$0xf] %vm785, %v1361
        %1406 = vst.msk [vmem:[%s1400 + $0x14] sm:$0xf] %vm785, %v1363
        %1407 = vst.msk [vmem:[%s1400 + $0x18] sm:$0xf] %vm785, %v1365
        %1408 = vst.msk [vmem:[%s1400 + $0x1c] sm:$0xf] %vm785, %v1367
        %1409 = vst.msk [vmem:[%s1400 + $0x20] sm:$0xf] %vm785, %v1369
        %1410 = vst.msk [vmem:[%s1400 + $0x24] sm:$0xf] %vm785, %v1371
        %1411 = vst.msk [vmem:[%s1400 + $0x28] sm:$0xf] %vm785, %v1373
        %1412 = vst.msk [vmem:[%s1400 + $0x2c] sm:$0xf] %vm785, %v1375
        %1413 = vst.msk [vmem:[%s1400 + $0x30] sm:$0xf] %vm785, %v1377
        %1414 = vst.msk [vmem:[%s1400 + $0x34] sm:$0xf] %vm785, %v1379
        %1415 = vst.msk [vmem:[%s1400 + $0x38] sm:$0xf] %vm785, %v1381
        %1416 = vst.msk [vmem:[%s1400 + $0x3c] sm:$0xf] %vm785, %v1383
        %1417 = vrot.lane.b32.xlu0 %v834, 80
        %v1418 = vpop.permute.xlu0 %1417
        %1419 = vrot.lane.b32.xlu0 %v835, 80
        %v1420 = vpop.permute.xlu0 %1419
        %1421 = vrot.lane.b32.xlu0 %v836, 80
        %v1422 = vpop.permute.xlu0 %1421
        %1423 = vrot.lane.b32.xlu0 %v837, 80
        %v1424 = vpop.permute.xlu0 %1423
        %1425 = vrot.lane.b32.xlu0 %v838, 80
        %v1426 = vpop.permute.xlu0 %1425
        %1427 = vrot.lane.b32.xlu0 %v839, 80
        %v1428 = vpop.permute.xlu0 %1427
        %1429 = vrot.lane.b32.xlu0 %v840, 80
        %v1430 = vpop.permute.xlu0 %1429
        %1431 = vrot.lane.b32.xlu0 %v841, 80
        %v1432 = vpop.permute.xlu0 %1431
        %1433 = vrot.lane.b32.xlu0 %v842, 80
        %v1434 = vpop.permute.xlu0 %1433
        %1435 = vrot.lane.b32.xlu0 %v843, 80
        %v1436 = vpop.permute.xlu0 %1435
        %1437 = vrot.lane.b32.xlu0 %v844, 80
        %v1438 = vpop.permute.xlu0 %1437
        %1439 = vrot.lane.b32.xlu0 %v845, 80
        %v1440 = vpop.permute.xlu0 %1439
        %1441 = vrot.lane.b32.xlu0 %v846, 80
        %v1442 = vpop.permute.xlu0 %1441
        %1443 = vrot.lane.b32.xlu0 %v847, 80
        %v1444 = vpop.permute.xlu0 %1443
        %1445 = vrot.lane.b32.xlu0 %v848, 80
        %v1446 = vpop.permute.xlu0 %1445
        %1447 = vrot.lane.b32.xlu0 %v849, 80
        %v1448 = vpop.permute.xlu0 %1447
        %s1465 = scalar_lea.vmem %s282, 192 [#allocation7]
        %1466 = vst.msk [vmem:[%s1465] sm:$0xf] %vm785, %v1418
        %1467 = vst.msk [vmem:[%s1465 + $0x4] sm:$0xf] %vm785, %v1420
        %1468 = vst.msk [vmem:[%s1465 + $0x8] sm:$0xf] %vm785, %v1422
        %1469 = vst.msk [vmem:[%s1465 + $0xc] sm:$0xf] %vm785, %v1424
        %1470 = vst.msk [vmem:[%s1465 + $0x10] sm:$0xf] %vm785, %v1426
        %1471 = vst.msk [vmem:[%s1465 + $0x14] sm:$0xf] %vm785, %v1428
        %1472 = vst.msk [vmem:[%s1465 + $0x18] sm:$0xf] %vm785, %v1430
        %1473 = vst.msk [vmem:[%s1465 + $0x1c] sm:$0xf] %vm785, %v1432
        %1474 = vst.msk [vmem:[%s1465 + $0x20] sm:$0xf] %vm785, %v1434
        %1475 = vst.msk [vmem:[%s1465 + $0x24] sm:$0xf] %vm785, %v1436
        %1476 = vst.msk [vmem:[%s1465 + $0x28] sm:$0xf] %vm785, %v1438
        %1477 = vst.msk [vmem:[%s1465 + $0x2c] sm:$0xf] %vm785, %v1440
        %1478 = vst.msk [vmem:[%s1465 + $0x30] sm:$0xf] %vm785, %v1442
        %1479 = vst.msk [vmem:[%s1465 + $0x34] sm:$0xf] %vm785, %v1444
        %1480 = vst.msk [vmem:[%s1465 + $0x38] sm:$0xf] %vm785, %v1446
        %1481 = vst.msk [vmem:[%s1465 + $0x3c] sm:$0xf] %vm785, %v1448
        %1482 = vrot.lane.b32.xlu0 %v914, 80
        %v1483 = vpop.permute.xlu0 %1482
        %1484 = vrot.lane.b32.xlu0 %v915, 80
        %v1485 = vpop.permute.xlu0 %1484
        %1486 = vrot.lane.b32.xlu0 %v916, 80
        %v1487 = vpop.permute.xlu0 %1486
        %1488 = vrot.lane.b32.xlu0 %v917, 80
        %v1489 = vpop.permute.xlu0 %1488
        %1490 = vrot.lane.b32.xlu0 %v918, 80
        %v1491 = vpop.permute.xlu0 %1490
        %1492 = vrot.lane.b32.xlu0 %v919, 80
        %v1493 = vpop.permute.xlu0 %1492
        %1494 = vrot.lane.b32.xlu0 %v920, 80
        %v1495 = vpop.permute.xlu0 %1494
        %1496 = vrot.lane.b32.xlu0 %v921, 80
        %v1497 = vpop.permute.xlu0 %1496
        %1498 = vrot.lane.b32.xlu0 %v922, 80
        %v1499 = vpop.permute.xlu0 %1498
        %1500 = vrot.lane.b32.xlu0 %v923, 80
        %v1501 = vpop.permute.xlu0 %1500
        %1502 = vrot.lane.b32.xlu0 %v924, 80
        %v1503 = vpop.permute.xlu0 %1502
        %1504 = vrot.lane.b32.xlu0 %v925, 80
        %v1505 = vpop.permute.xlu0 %1504
        %1506 = vrot.lane.b32.xlu0 %v926, 80
        %v1507 = vpop.permute.xlu0 %1506
        %1508 = vrot.lane.b32.xlu0 %v927, 80
        %v1509 = vpop.permute.xlu0 %1508
        %1510 = vrot.lane.b32.xlu0 %v928, 80
        %v1511 = vpop.permute.xlu0 %1510
        %1512 = vrot.lane.b32.xlu0 %v929, 80
        %v1513 = vpop.permute.xlu0 %1512
        %s1530 = scalar_lea.vmem %s288, 192 [#allocation8]
        %1531 = vst.msk [vmem:[%s1530] sm:$0xf] %vm785, %v1483
        %1532 = vst.msk [vmem:[%s1530 + $0x4] sm:$0xf] %vm785, %v1485
        %1533 = vst.msk [vmem:[%s1530 + $0x8] sm:$0xf] %vm785, %v1487
        %1534 = vst.msk [vmem:[%s1530 + $0xc] sm:$0xf] %vm785, %v1489
        %1535 = vst.msk [vmem:[%s1530 + $0x10] sm:$0xf] %vm785, %v1491
        %1536 = vst.msk [vmem:[%s1530 + $0x14] sm:$0xf] %vm785, %v1493
        %1537 = vst.msk [vmem:[%s1530 + $0x18] sm:$0xf] %vm785, %v1495
        %1538 = vst.msk [vmem:[%s1530 + $0x1c] sm:$0xf] %vm785, %v1497
        %1539 = vst.msk [vmem:[%s1530 + $0x20] sm:$0xf] %vm785, %v1499
        %1540 = vst.msk [vmem:[%s1530 + $0x24] sm:$0xf] %vm785, %v1501
        %1541 = vst.msk [vmem:[%s1530 + $0x28] sm:$0xf] %vm785, %v1503
        %1542 = vst.msk [vmem:[%s1530 + $0x2c] sm:$0xf] %vm785, %v1505
        %1543 = vst.msk [vmem:[%s1530 + $0x30] sm:$0xf] %vm785, %v1507
        %1544 = vst.msk [vmem:[%s1530 + $0x34] sm:$0xf] %vm785, %v1509
        %1545 = vst.msk [vmem:[%s1530 + $0x38] sm:$0xf] %vm785, %v1511
        %1546 = vst.msk [vmem:[%s1530 + $0x3c] sm:$0xf] %vm785, %v1513
        %1547 = vrot.lane.b32.xlu0 %v753, 64
        %v1548 = vpop.permute.xlu0 %1547
        %1549 = vrot.lane.b32.xlu0 %v754, 64
        %v1550 = vpop.permute.xlu0 %1549
        %1551 = vrot.lane.b32.xlu0 %v755, 64
        %v1552 = vpop.permute.xlu0 %1551
        %1553 = vrot.lane.b32.xlu0 %v756, 64
        %v1554 = vpop.permute.xlu0 %1553
        %1555 = vrot.lane.b32.xlu0 %v757, 64
        %v1556 = vpop.permute.xlu0 %1555
        %1557 = vrot.lane.b32.xlu0 %v758, 64
        %v1558 = vpop.permute.xlu0 %1557
        %1559 = vrot.lane.b32.xlu0 %v759, 64
        %v1560 = vpop.permute.xlu0 %1559
        %1561 = vrot.lane.b32.xlu0 %v760, 64
        %v1562 = vpop.permute.xlu0 %1561
        %1563 = vrot.lane.b32.xlu0 %v761, 64
        %v1564 = vpop.permute.xlu0 %1563
        %1565 = vrot.lane.b32.xlu0 %v762, 64
        %v1566 = vpop.permute.xlu0 %1565
        %1567 = vrot.lane.b32.xlu0 %v763, 64
        %v1568 = vpop.permute.xlu0 %1567
        %1569 = vrot.lane.b32.xlu0 %v764, 64
        %v1570 = vpop.permute.xlu0 %1569
        %1571 = vrot.lane.b32.xlu0 %v765, 64
        %v1572 = vpop.permute.xlu0 %1571
        %1573 = vrot.lane.b32.xlu0 %v766, 64
        %v1574 = vpop.permute.xlu0 %1573
        %1575 = vrot.lane.b32.xlu0 %v767, 64
        %v1576 = vpop.permute.xlu0 %1575
        %1577 = vrot.lane.b32.xlu0 %v768, 64
        %v1578 = vpop.permute.xlu0 %1577
        %s1595 = scalar_lea.vmem %s276, 256 [#allocation6]
        %1596 = vst.msk [vmem:[%s1595] sm:$0xf] %vm785, %v1548
        %1597 = vst.msk [vmem:[%s1595 + $0x4] sm:$0xf] %vm785, %v1550
        %1598 = vst.msk [vmem:[%s1595 + $0x8] sm:$0xf] %vm785, %v1552
        %1599 = vst.msk [vmem:[%s1595 + $0xc] sm:$0xf] %vm785, %v1554
        %1600 = vst.msk [vmem:[%s1595 + $0x10] sm:$0xf] %vm785, %v1556
        %1601 = vst.msk [vmem:[%s1595 + $0x14] sm:$0xf] %vm785, %v1558
        %1602 = vst.msk [vmem:[%s1595 + $0x18] sm:$0xf] %vm785, %v1560
        %1603 = vst.msk [vmem:[%s1595 + $0x1c] sm:$0xf] %vm785, %v1562
        %1604 = vst.msk [vmem:[%s1595 + $0x20] sm:$0xf] %vm785, %v1564
        %1605 = vst.msk [vmem:[%s1595 + $0x24] sm:$0xf] %vm785, %v1566
        %1606 = vst.msk [vmem:[%s1595 + $0x28] sm:$0xf] %vm785, %v1568
        %1607 = vst.msk [vmem:[%s1595 + $0x2c] sm:$0xf] %vm785, %v1570
        %1608 = vst.msk [vmem:[%s1595 + $0x30] sm:$0xf] %vm785, %v1572
        %1609 = vst.msk [vmem:[%s1595 + $0x34] sm:$0xf] %vm785, %v1574
        %1610 = vst.msk [vmem:[%s1595 + $0x38] sm:$0xf] %vm785, %v1576
        %1611 = vst.msk [vmem:[%s1595 + $0x3c] sm:$0xf] %vm785, %v1578
        %1612 = vrot.lane.b32.xlu0 %v834, 64
        %v1613 = vpop.permute.xlu0 %1612
        %1614 = vrot.lane.b32.xlu0 %v835, 64
        %v1615 = vpop.permute.xlu0 %1614
        %1616 = vrot.lane.b32.xlu0 %v836, 64
        %v1617 = vpop.permute.xlu0 %1616
        %1618 = vrot.lane.b32.xlu0 %v837, 64
        %v1619 = vpop.permute.xlu0 %1618
        %1620 = vrot.lane.b32.xlu0 %v838, 64
        %v1621 = vpop.permute.xlu0 %1620
        %1622 = vrot.lane.b32.xlu0 %v839, 64
        %v1623 = vpop.permute.xlu0 %1622
        %1624 = vrot.lane.b32.xlu0 %v840, 64
        %v1625 = vpop.permute.xlu0 %1624
        %1626 = vrot.lane.b32.xlu0 %v841, 64
        %v1627 = vpop.permute.xlu0 %1626
        %1628 = vrot.lane.b32.xlu0 %v842, 64
        %v1629 = vpop.permute.xlu0 %1628
        %1630 = vrot.lane.b32.xlu0 %v843, 64
        %v1631 = vpop.permute.xlu0 %1630
        %1632 = vrot.lane.b32.xlu0 %v844, 64
        %v1633 = vpop.permute.xlu0 %1632
        %1634 = vrot.lane.b32.xlu0 %v845, 64
        %v1635 = vpop.permute.xlu0 %1634
        %1636 = vrot.lane.b32.xlu0 %v846, 64
        %v1637 = vpop.permute.xlu0 %1636
        %1638 = vrot.lane.b32.xlu0 %v847, 64
        %v1639 = vpop.permute.xlu0 %1638
        %1640 = vrot.lane.b32.xlu0 %v848, 64
        %v1641 = vpop.permute.xlu0 %1640
        %1642 = vrot.lane.b32.xlu0 %v849, 64
        %v1643 = vpop.permute.xlu0 %1642
        %s1660 = scalar_lea.vmem %s282, 256 [#allocation7]
        %1661 = vst.msk [vmem:[%s1660] sm:$0xf] %vm785, %v1613
        %1662 = vst.msk [vmem:[%s1660 + $0x4] sm:$0xf] %vm785, %v1615
        %1663 = vst.msk [vmem:[%s1660 + $0x8] sm:$0xf] %vm785, %v1617
        %1664 = vst.msk [vmem:[%s1660 + $0xc] sm:$0xf] %vm785, %v1619
        %1665 = vst.msk [vmem:[%s1660 + $0x10] sm:$0xf] %vm785, %v1621
        %1666 = vst.msk [vmem:[%s1660 + $0x14] sm:$0xf] %vm785, %v1623
        %1667 = vst.msk [vmem:[%s1660 + $0x18] sm:$0xf] %vm785, %v1625
        %1668 = vst.msk [vmem:[%s1660 + $0x1c] sm:$0xf] %vm785, %v1627
        %1669 = vst.msk [vmem:[%s1660 + $0x20] sm:$0xf] %vm785, %v1629
        %1670 = vst.msk [vmem:[%s1660 + $0x24] sm:$0xf] %vm785, %v1631
        %1671 = vst.msk [vmem:[%s1660 + $0x28] sm:$0xf] %vm785, %v1633
        %1672 = vst.msk [vmem:[%s1660 + $0x2c] sm:$0xf] %vm785, %v1635
        %1673 = vst.msk [vmem:[%s1660 + $0x30] sm:$0xf] %vm785, %v1637
        %1674 = vst.msk [vmem:[%s1660 + $0x34] sm:$0xf] %vm785, %v1639
        %1675 = vst.msk [vmem:[%s1660 + $0x38] sm:$0xf] %vm785, %v1641
        %1676 = vst.msk [vmem:[%s1660 + $0x3c] sm:$0xf] %vm785, %v1643
        %1677 = vrot.lane.b32.xlu0 %v914, 64
        %v1678 = vpop.permute.xlu0 %1677
        %1679 = vrot.lane.b32.xlu0 %v915, 64
        %v1680 = vpop.permute.xlu0 %1679
        %1681 = vrot.lane.b32.xlu0 %v916, 64
        %v1682 = vpop.permute.xlu0 %1681
        %1683 = vrot.lane.b32.xlu0 %v917, 64
        %v1684 = vpop.permute.xlu0 %1683
        %1685 = vrot.lane.b32.xlu0 %v918, 64
        %v1686 = vpop.permute.xlu0 %1685
        %1687 = vrot.lane.b32.xlu0 %v919, 64
        %v1688 = vpop.permute.xlu0 %1687
        %1689 = vrot.lane.b32.xlu0 %v920, 64
        %v1690 = vpop.permute.xlu0 %1689
        %1691 = vrot.lane.b32.xlu0 %v921, 64
        %v1692 = vpop.permute.xlu0 %1691
        %1693 = vrot.lane.b32.xlu0 %v922, 64
        %v1694 = vpop.permute.xlu0 %1693
        %1695 = vrot.lane.b32.xlu0 %v923, 64
        %v1696 = vpop.permute.xlu0 %1695
        %1697 = vrot.lane.b32.xlu0 %v924, 64
        %v1698 = vpop.permute.xlu0 %1697
        %1699 = vrot.lane.b32.xlu0 %v925, 64
        %v1700 = vpop.permute.xlu0 %1699
        %1701 = vrot.lane.b32.xlu0 %v926, 64
        %v1702 = vpop.permute.xlu0 %1701
        %1703 = vrot.lane.b32.xlu0 %v927, 64
        %v1704 = vpop.permute.xlu0 %1703
        %1705 = vrot.lane.b32.xlu0 %v928, 64
        %v1706 = vpop.permute.xlu0 %1705
        %1707 = vrot.lane.b32.xlu0 %v929, 64
        %v1708 = vpop.permute.xlu0 %1707
        %s1725 = scalar_lea.vmem %s288, 256 [#allocation8]
        %1726 = vst.msk [vmem:[%s1725] sm:$0xf] %vm785, %v1678
        %1727 = vst.msk [vmem:[%s1725 + $0x4] sm:$0xf] %vm785, %v1680
        %1728 = vst.msk [vmem:[%s1725 + $0x8] sm:$0xf] %vm785, %v1682
        %1729 = vst.msk [vmem:[%s1725 + $0xc] sm:$0xf] %vm785, %v1684
        %1730 = vst.msk [vmem:[%s1725 + $0x10] sm:$0xf] %vm785, %v1686
        %1731 = vst.msk [vmem:[%s1725 + $0x14] sm:$0xf] %vm785, %v1688
        %1732 = vst.msk [vmem:[%s1725 + $0x18] sm:$0xf] %vm785, %v1690
        %1733 = vst.msk [vmem:[%s1725 + $0x1c] sm:$0xf] %vm785, %v1692
        %1734 = vst.msk [vmem:[%s1725 + $0x20] sm:$0xf] %vm785, %v1694
        %1735 = vst.msk [vmem:[%s1725 + $0x24] sm:$0xf] %vm785, %v1696
        %1736 = vst.msk [vmem:[%s1725 + $0x28] sm:$0xf] %vm785, %v1698
        %1737 = vst.msk [vmem:[%s1725 + $0x2c] sm:$0xf] %vm785, %v1700
        %1738 = vst.msk [vmem:[%s1725 + $0x30] sm:$0xf] %vm785, %v1702
        %1739 = vst.msk [vmem:[%s1725 + $0x34] sm:$0xf] %vm785, %v1704
        %1740 = vst.msk [vmem:[%s1725 + $0x38] sm:$0xf] %vm785, %v1706
        %1741 = vst.msk [vmem:[%s1725 + $0x3c] sm:$0xf] %vm785, %v1708
        %1742 = vrot.lane.b32.xlu0 %v753, 48
        %v1743 = vpop.permute.xlu0 %1742
        %1744 = vrot.lane.b32.xlu0 %v754, 48
        %v1745 = vpop.permute.xlu0 %1744
        %1746 = vrot.lane.b32.xlu0 %v755, 48
        %v1747 = vpop.permute.xlu0 %1746
        %1748 = vrot.lane.b32.xlu0 %v756, 48
        %v1749 = vpop.permute.xlu0 %1748
        %1750 = vrot.lane.b32.xlu0 %v757, 48
        %v1751 = vpop.permute.xlu0 %1750
        %1752 = vrot.lane.b32.xlu0 %v758, 48
        %v1753 = vpop.permute.xlu0 %1752
        %1754 = vrot.lane.b32.xlu0 %v759, 48
        %v1755 = vpop.permute.xlu0 %1754
        %1756 = vrot.lane.b32.xlu0 %v760, 48
        %v1757 = vpop.permute.xlu0 %1756
        %1758 = vrot.lane.b32.xlu0 %v761, 48
        %v1759 = vpop.permute.xlu0 %1758
        %1760 = vrot.lane.b32.xlu0 %v762, 48
        %v1761 = vpop.permute.xlu0 %1760
        %1762 = vrot.lane.b32.xlu0 %v763, 48
        %v1763 = vpop.permute.xlu0 %1762
        %1764 = vrot.lane.b32.xlu0 %v764, 48
        %v1765 = vpop.permute.xlu0 %1764
        %1766 = vrot.lane.b32.xlu0 %v765, 48
        %v1767 = vpop.permute.xlu0 %1766
        %1768 = vrot.lane.b32.xlu0 %v766, 48
        %v1769 = vpop.permute.xlu0 %1768
        %1770 = vrot.lane.b32.xlu0 %v767, 48
        %v1771 = vpop.permute.xlu0 %1770
        %1772 = vrot.lane.b32.xlu0 %v768, 48
        %v1773 = vpop.permute.xlu0 %1772
        %s1790 = scalar_lea.vmem %s276, 320 [#allocation6]
        %1791 = vst.msk [vmem:[%s1790] sm:$0xf] %vm785, %v1743
        %1792 = vst.msk [vmem:[%s1790 + $0x4] sm:$0xf] %vm785, %v1745
        %1793 = vst.msk [vmem:[%s1790 + $0x8] sm:$0xf] %vm785, %v1747
        %1794 = vst.msk [vmem:[%s1790 + $0xc] sm:$0xf] %vm785, %v1749
        %1795 = vst.msk [vmem:[%s1790 + $0x10] sm:$0xf] %vm785, %v1751
        %1796 = vst.msk [vmem:[%s1790 + $0x14] sm:$0xf] %vm785, %v1753
        %1797 = vst.msk [vmem:[%s1790 + $0x18] sm:$0xf] %vm785, %v1755
        %1798 = vst.msk [vmem:[%s1790 + $0x1c] sm:$0xf] %vm785, %v1757
        %1799 = vst.msk [vmem:[%s1790 + $0x20] sm:$0xf] %vm785, %v1759
        %1800 = vst.msk [vmem:[%s1790 + $0x24] sm:$0xf] %vm785, %v1761
        %1801 = vst.msk [vmem:[%s1790 + $0x28] sm:$0xf] %vm785, %v1763
        %1802 = vst.msk [vmem:[%s1790 + $0x2c] sm:$0xf] %vm785, %v1765
        %1803 = vst.msk [vmem:[%s1790 + $0x30] sm:$0xf] %vm785, %v1767
        %1804 = vst.msk [vmem:[%s1790 + $0x34] sm:$0xf] %vm785, %v1769
        %1805 = vst.msk [vmem:[%s1790 + $0x38] sm:$0xf] %vm785, %v1771
        %1806 = vst.msk [vmem:[%s1790 + $0x3c] sm:$0xf] %vm785, %v1773
        %1807 = vrot.lane.b32.xlu0 %v834, 48
        %v1808 = vpop.permute.xlu0 %1807
        %1809 = vrot.lane.b32.xlu0 %v835, 48
        %v1810 = vpop.permute.xlu0 %1809
        %1811 = vrot.lane.b32.xlu0 %v836, 48
        %v1812 = vpop.permute.xlu0 %1811
        %1813 = vrot.lane.b32.xlu0 %v837, 48
        %v1814 = vpop.permute.xlu0 %1813
        %1815 = vrot.lane.b32.xlu0 %v838, 48
        %v1816 = vpop.permute.xlu0 %1815
        %1817 = vrot.lane.b32.xlu0 %v839, 48
        %v1818 = vpop.permute.xlu0 %1817
        %1819 = vrot.lane.b32.xlu0 %v840, 48
        %v1820 = vpop.permute.xlu0 %1819
        %1821 = vrot.lane.b32.xlu0 %v841, 48
        %v1822 = vpop.permute.xlu0 %1821
        %1823 = vrot.lane.b32.xlu0 %v842, 48
        %v1824 = vpop.permute.xlu0 %1823
        %1825 = vrot.lane.b32.xlu0 %v843, 48
        %v1826 = vpop.permute.xlu0 %1825
        %1827 = vrot.lane.b32.xlu0 %v844, 48
        %v1828 = vpop.permute.xlu0 %1827
        %1829 = vrot.lane.b32.xlu0 %v845, 48
        %v1830 = vpop.permute.xlu0 %1829
        %1831 = vrot.lane.b32.xlu0 %v846, 48
        %v1832 = vpop.permute.xlu0 %1831
        %1833 = vrot.lane.b32.xlu0 %v847, 48
        %v1834 = vpop.permute.xlu0 %1833
        %1835 = vrot.lane.b32.xlu0 %v848, 48
        %v1836 = vpop.permute.xlu0 %1835
        %1837 = vrot.lane.b32.xlu0 %v849, 48
        %v1838 = vpop.permute.xlu0 %1837
        %s1855 = scalar_lea.vmem %s282, 320 [#allocation7]
        %1856 = vst.msk [vmem:[%s1855] sm:$0xf] %vm785, %v1808
        %1857 = vst.msk [vmem:[%s1855 + $0x4] sm:$0xf] %vm785, %v1810
        %1858 = vst.msk [vmem:[%s1855 + $0x8] sm:$0xf] %vm785, %v1812
        %1859 = vst.msk [vmem:[%s1855 + $0xc] sm:$0xf] %vm785, %v1814
        %1860 = vst.msk [vmem:[%s1855 + $0x10] sm:$0xf] %vm785, %v1816
        %1861 = vst.msk [vmem:[%s1855 + $0x14] sm:$0xf] %vm785, %v1818
        %1862 = vst.msk [vmem:[%s1855 + $0x18] sm:$0xf] %vm785, %v1820
        %1863 = vst.msk [vmem:[%s1855 + $0x1c] sm:$0xf] %vm785, %v1822
        %1864 = vst.msk [vmem:[%s1855 + $0x20] sm:$0xf] %vm785, %v1824
        %1865 = vst.msk [vmem:[%s1855 + $0x24] sm:$0xf] %vm785, %v1826
        %1866 = vst.msk [vmem:[%s1855 + $0x28] sm:$0xf] %vm785, %v1828
        %1867 = vst.msk [vmem:[%s1855 + $0x2c] sm:$0xf] %vm785, %v1830
        %1868 = vst.msk [vmem:[%s1855 + $0x30] sm:$0xf] %vm785, %v1832
        %1869 = vst.msk [vmem:[%s1855 + $0x34] sm:$0xf] %vm785, %v1834
        %1870 = vst.msk [vmem:[%s1855 + $0x38] sm:$0xf] %vm785, %v1836
        %1871 = vst.msk [vmem:[%s1855 + $0x3c] sm:$0xf] %vm785, %v1838
        %1872 = vrot.lane.b32.xlu0 %v914, 48
        %v1873 = vpop.permute.xlu0 %1872
        %1874 = vrot.lane.b32.xlu0 %v915, 48
        %v1875 = vpop.permute.xlu0 %1874
        %1876 = vrot.lane.b32.xlu0 %v916, 48
        %v1877 = vpop.permute.xlu0 %1876
        %1878 = vrot.lane.b32.xlu0 %v917, 48
        %v1879 = vpop.permute.xlu0 %1878
        %1880 = vrot.lane.b32.xlu0 %v918, 48
        %v1881 = vpop.permute.xlu0 %1880
        %1882 = vrot.lane.b32.xlu0 %v919, 48
        %v1883 = vpop.permute.xlu0 %1882
        %1884 = vrot.lane.b32.xlu0 %v920, 48
        %v1885 = vpop.permute.xlu0 %1884
        %1886 = vrot.lane.b32.xlu0 %v921, 48
        %v1887 = vpop.permute.xlu0 %1886
        %1888 = vrot.lane.b32.xlu0 %v922, 48
        %v1889 = vpop.permute.xlu0 %1888
        %1890 = vrot.lane.b32.xlu0 %v923, 48
        %v1891 = vpop.permute.xlu0 %1890
        %1892 = vrot.lane.b32.xlu0 %v924, 48
        %v1893 = vpop.permute.xlu0 %1892
        %1894 = vrot.lane.b32.xlu0 %v925, 48
        %v1895 = vpop.permute.xlu0 %1894
        %1896 = vrot.lane.b32.xlu0 %v926, 48
        %v1897 = vpop.permute.xlu0 %1896
        %1898 = vrot.lane.b32.xlu0 %v927, 48
        %v1899 = vpop.permute.xlu0 %1898
        %1900 = vrot.lane.b32.xlu0 %v928, 48
        %v1901 = vpop.permute.xlu0 %1900
        %1902 = vrot.lane.b32.xlu0 %v929, 48
        %v1903 = vpop.permute.xlu0 %1902
        %s1920 = scalar_lea.vmem %s288, 320 [#allocation8]
        %1921 = vst.msk [vmem:[%s1920] sm:$0xf] %vm785, %v1873
        %1922 = vst.msk [vmem:[%s1920 + $0x4] sm:$0xf] %vm785, %v1875
        %1923 = vst.msk [vmem:[%s1920 + $0x8] sm:$0xf] %vm785, %v1877
        %1924 = vst.msk [vmem:[%s1920 + $0xc] sm:$0xf] %vm785, %v1879
        %1925 = vst.msk [vmem:[%s1920 + $0x10] sm:$0xf] %vm785, %v1881
        %1926 = vst.msk [vmem:[%s1920 + $0x14] sm:$0xf] %vm785, %v1883
        %1927 = vst.msk [vmem:[%s1920 + $0x18] sm:$0xf] %vm785, %v1885
        %1928 = vst.msk [vmem:[%s1920 + $0x1c] sm:$0xf] %vm785, %v1887
        %1929 = vst.msk [vmem:[%s1920 + $0x20] sm:$0xf] %vm785, %v1889
        %1930 = vst.msk [vmem:[%s1920 + $0x24] sm:$0xf] %vm785, %v1891
        %1931 = vst.msk [vmem:[%s1920 + $0x28] sm:$0xf] %vm785, %v1893
        %1932 = vst.msk [vmem:[%s1920 + $0x2c] sm:$0xf] %vm785, %v1895
        %1933 = vst.msk [vmem:[%s1920 + $0x30] sm:$0xf] %vm785, %v1897
        %1934 = vst.msk [vmem:[%s1920 + $0x34] sm:$0xf] %vm785, %v1899
        %1935 = vst.msk [vmem:[%s1920 + $0x38] sm:$0xf] %vm785, %v1901
        %1936 = vst.msk [vmem:[%s1920 + $0x3c] sm:$0xf] %vm785, %v1903
        %1937 = vrot.lane.b32.xlu0 %v753, 32
        %v1938 = vpop.permute.xlu0 %1937
        %1939 = vrot.lane.b32.xlu0 %v754, 32
        %v1940 = vpop.permute.xlu0 %1939
        %1941 = vrot.lane.b32.xlu0 %v755, 32
        %v1942 = vpop.permute.xlu0 %1941
        %1943 = vrot.lane.b32.xlu0 %v756, 32
        %v1944 = vpop.permute.xlu0 %1943
        %1945 = vrot.lane.b32.xlu0 %v757, 32
        %v1946 = vpop.permute.xlu0 %1945
        %1947 = vrot.lane.b32.xlu0 %v758, 32
        %v1948 = vpop.permute.xlu0 %1947
        %1949 = vrot.lane.b32.xlu0 %v759, 32
        %v1950 = vpop.permute.xlu0 %1949
        %1951 = vrot.lane.b32.xlu0 %v760, 32
        %v1952 = vpop.permute.xlu0 %1951
        %1953 = vrot.lane.b32.xlu0 %v761, 32
        %v1954 = vpop.permute.xlu0 %1953
        %1955 = vrot.lane.b32.xlu0 %v762, 32
        %v1956 = vpop.permute.xlu0 %1955
        %1957 = vrot.lane.b32.xlu0 %v763, 32
        %v1958 = vpop.permute.xlu0 %1957
        %1959 = vrot.lane.b32.xlu0 %v764, 32
        %v1960 = vpop.permute.xlu0 %1959
        %1961 = vrot.lane.b32.xlu0 %v765, 32
        %v1962 = vpop.permute.xlu0 %1961
        %1963 = vrot.lane.b32.xlu0 %v766, 32
        %v1964 = vpop.permute.xlu0 %1963
        %1965 = vrot.lane.b32.xlu0 %v767, 32
        %v1966 = vpop.permute.xlu0 %1965
        %1967 = vrot.lane.b32.xlu0 %v768, 32
        %v1968 = vpop.permute.xlu0 %1967
        %s1985 = scalar_lea.vmem %s276, 384 [#allocation6]
        %1986 = vst.msk [vmem:[%s1985] sm:$0xf] %vm785, %v1938
        %1987 = vst.msk [vmem:[%s1985 + $0x4] sm:$0xf] %vm785, %v1940
        %1988 = vst.msk [vmem:[%s1985 + $0x8] sm:$0xf] %vm785, %v1942
        %1989 = vst.msk [vmem:[%s1985 + $0xc] sm:$0xf] %vm785, %v1944
        %1990 = vst.msk [vmem:[%s1985 + $0x10] sm:$0xf] %vm785, %v1946
        %1991 = vst.msk [vmem:[%s1985 + $0x14] sm:$0xf] %vm785, %v1948
        %1992 = vst.msk [vmem:[%s1985 + $0x18] sm:$0xf] %vm785, %v1950
        %1993 = vst.msk [vmem:[%s1985 + $0x1c] sm:$0xf] %vm785, %v1952
        %1994 = vst.msk [vmem:[%s1985 + $0x20] sm:$0xf] %vm785, %v1954
        %1995 = vst.msk [vmem:[%s1985 + $0x24] sm:$0xf] %vm785, %v1956
        %1996 = vst.msk [vmem:[%s1985 + $0x28] sm:$0xf] %vm785, %v1958
        %1997 = vst.msk [vmem:[%s1985 + $0x2c] sm:$0xf] %vm785, %v1960
        %1998 = vst.msk [vmem:[%s1985 + $0x30] sm:$0xf] %vm785, %v1962
        %1999 = vst.msk [vmem:[%s1985 + $0x34] sm:$0xf] %vm785, %v1964
        %2000 = vst.msk [vmem:[%s1985 + $0x38] sm:$0xf] %vm785, %v1966
        %2001 = vst.msk [vmem:[%s1985 + $0x3c] sm:$0xf] %vm785, %v1968
        %2002 = vrot.lane.b32.xlu0 %v834, 32
        %v2003 = vpop.permute.xlu0 %2002
        %2004 = vrot.lane.b32.xlu0 %v835, 32
        %v2005 = vpop.permute.xlu0 %2004
        %2006 = vrot.lane.b32.xlu0 %v836, 32
        %v2007 = vpop.permute.xlu0 %2006
        %2008 = vrot.lane.b32.xlu0 %v837, 32
        %v2009 = vpop.permute.xlu0 %2008
        %2010 = vrot.lane.b32.xlu0 %v838, 32
        %v2011 = vpop.permute.xlu0 %2010
        %2012 = vrot.lane.b32.xlu0 %v839, 32
        %v2013 = vpop.permute.xlu0 %2012
        %2014 = vrot.lane.b32.xlu0 %v840, 32
        %v2015 = vpop.permute.xlu0 %2014
        %2016 = vrot.lane.b32.xlu0 %v841, 32
        %v2017 = vpop.permute.xlu0 %2016
        %2018 = vrot.lane.b32.xlu0 %v842, 32
        %v2019 = vpop.permute.xlu0 %2018
        %2020 = vrot.lane.b32.xlu0 %v843, 32
        %v2021 = vpop.permute.xlu0 %2020
        %2022 = vrot.lane.b32.xlu0 %v844, 32
        %v2023 = vpop.permute.xlu0 %2022
        %2024 = vrot.lane.b32.xlu0 %v845, 32
        %v2025 = vpop.permute.xlu0 %2024
        %2026 = vrot.lane.b32.xlu0 %v846, 32
        %v2027 = vpop.permute.xlu0 %2026
        %2028 = vrot.lane.b32.xlu0 %v847, 32
        %v2029 = vpop.permute.xlu0 %2028
        %2030 = vrot.lane.b32.xlu0 %v848, 32
        %v2031 = vpop.permute.xlu0 %2030
        %2032 = vrot.lane.b32.xlu0 %v849, 32
        %v2033 = vpop.permute.xlu0 %2032
        %s2050 = scalar_lea.vmem %s282, 384 [#allocation7]
        %2051 = vst.msk [vmem:[%s2050] sm:$0xf] %vm785, %v2003
        %2052 = vst.msk [vmem:[%s2050 + $0x4] sm:$0xf] %vm785, %v2005
        %2053 = vst.msk [vmem:[%s2050 + $0x8] sm:$0xf] %vm785, %v2007
        %2054 = vst.msk [vmem:[%s2050 + $0xc] sm:$0xf] %vm785, %v2009
        %2055 = vst.msk [vmem:[%s2050 + $0x10] sm:$0xf] %vm785, %v2011
        %2056 = vst.msk [vmem:[%s2050 + $0x14] sm:$0xf] %vm785, %v2013
        %2057 = vst.msk [vmem:[%s2050 + $0x18] sm:$0xf] %vm785, %v2015
        %2058 = vst.msk [vmem:[%s2050 + $0x1c] sm:$0xf] %vm785, %v2017
        %2059 = vst.msk [vmem:[%s2050 + $0x20] sm:$0xf] %vm785, %v2019
        %2060 = vst.msk [vmem:[%s2050 + $0x24] sm:$0xf] %vm785, %v2021
        %2061 = vst.msk [vmem:[%s2050 + $0x28] sm:$0xf] %vm785, %v2023
        %2062 = vst.msk [vmem:[%s2050 + $0x2c] sm:$0xf] %vm785, %v2025
        %2063 = vst.msk [vmem:[%s2050 + $0x30] sm:$0xf] %vm785, %v2027
        %2064 = vst.msk [vmem:[%s2050 + $0x34] sm:$0xf] %vm785, %v2029
        %2065 = vst.msk [vmem:[%s2050 + $0x38] sm:$0xf] %vm785, %v2031
        %2066 = vst.msk [vmem:[%s2050 + $0x3c] sm:$0xf] %vm785, %v2033
        %2067 = vrot.lane.b32.xlu0 %v914, 32
        %v2068 = vpop.permute.xlu0 %2067
        %2069 = vrot.lane.b32.xlu0 %v915, 32
        %v2070 = vpop.permute.xlu0 %2069
        %2071 = vrot.lane.b32.xlu0 %v916, 32
        %v2072 = vpop.permute.xlu0 %2071
        %2073 = vrot.lane.b32.xlu0 %v917, 32
        %v2074 = vpop.permute.xlu0 %2073
        %2075 = vrot.lane.b32.xlu0 %v918, 32
        %v2076 = vpop.permute.xlu0 %2075
        %2077 = vrot.lane.b32.xlu0 %v919, 32
        %v2078 = vpop.permute.xlu0 %2077
        %2079 = vrot.lane.b32.xlu0 %v920, 32
        %v2080 = vpop.permute.xlu0 %2079
        %2081 = vrot.lane.b32.xlu0 %v921, 32
        %v2082 = vpop.permute.xlu0 %2081
        %2083 = vrot.lane.b32.xlu0 %v922, 32
        %v2084 = vpop.permute.xlu0 %2083
        %2085 = vrot.lane.b32.xlu0 %v923, 32
        %v2086 = vpop.permute.xlu0 %2085
        %2087 = vrot.lane.b32.xlu0 %v924, 32
        %v2088 = vpop.permute.xlu0 %2087
        %2089 = vrot.lane.b32.xlu0 %v925, 32
        %v2090 = vpop.permute.xlu0 %2089
        %2091 = vrot.lane.b32.xlu0 %v926, 32
        %v2092 = vpop.permute.xlu0 %2091
        %2093 = vrot.lane.b32.xlu0 %v927, 32
        %v2094 = vpop.permute.xlu0 %2093
        %2095 = vrot.lane.b32.xlu0 %v928, 32
        %v2096 = vpop.permute.xlu0 %2095
        %2097 = vrot.lane.b32.xlu0 %v929, 32
        %v2098 = vpop.permute.xlu0 %2097
        %s2115 = scalar_lea.vmem %s288, 384 [#allocation8]
        %2116 = vst.msk [vmem:[%s2115] sm:$0xf] %vm785, %v2068
        %2117 = vst.msk [vmem:[%s2115 + $0x4] sm:$0xf] %vm785, %v2070
        %2118 = vst.msk [vmem:[%s2115 + $0x8] sm:$0xf] %vm785, %v2072
        %2119 = vst.msk [vmem:[%s2115 + $0xc] sm:$0xf] %vm785, %v2074
        %2120 = vst.msk [vmem:[%s2115 + $0x10] sm:$0xf] %vm785, %v2076
        %2121 = vst.msk [vmem:[%s2115 + $0x14] sm:$0xf] %vm785, %v2078
        %2122 = vst.msk [vmem:[%s2115 + $0x18] sm:$0xf] %vm785, %v2080
        %2123 = vst.msk [vmem:[%s2115 + $0x1c] sm:$0xf] %vm785, %v2082
        %2124 = vst.msk [vmem:[%s2115 + $0x20] sm:$0xf] %vm785, %v2084
        %2125 = vst.msk [vmem:[%s2115 + $0x24] sm:$0xf] %vm785, %v2086
        %2126 = vst.msk [vmem:[%s2115 + $0x28] sm:$0xf] %vm785, %v2088
        %2127 = vst.msk [vmem:[%s2115 + $0x2c] sm:$0xf] %vm785, %v2090
        %2128 = vst.msk [vmem:[%s2115 + $0x30] sm:$0xf] %vm785, %v2092
        %2129 = vst.msk [vmem:[%s2115 + $0x34] sm:$0xf] %vm785, %v2094
        %2130 = vst.msk [vmem:[%s2115 + $0x38] sm:$0xf] %vm785, %v2096
        %2131 = vst.msk [vmem:[%s2115 + $0x3c] sm:$0xf] %vm785, %v2098
        %2132 = vrot.lane.b32.xlu0 %v753, 16
        %v2133 = vpop.permute.xlu0 %2132
        %2134 = vrot.lane.b32.xlu0 %v754, 16
        %v2135 = vpop.permute.xlu0 %2134
        %2136 = vrot.lane.b32.xlu0 %v755, 16
        %v2137 = vpop.permute.xlu0 %2136
        %2138 = vrot.lane.b32.xlu0 %v756, 16
        %v2139 = vpop.permute.xlu0 %2138
        %2140 = vrot.lane.b32.xlu0 %v757, 16
        %v2141 = vpop.permute.xlu0 %2140
        %2142 = vrot.lane.b32.xlu0 %v758, 16
        %v2143 = vpop.permute.xlu0 %2142
        %2144 = vrot.lane.b32.xlu0 %v759, 16
        %v2145 = vpop.permute.xlu0 %2144
        %2146 = vrot.lane.b32.xlu0 %v760, 16
        %v2147 = vpop.permute.xlu0 %2146
        %2148 = vrot.lane.b32.xlu0 %v761, 16
        %v2149 = vpop.permute.xlu0 %2148
        %2150 = vrot.lane.b32.xlu0 %v762, 16
        %v2151 = vpop.permute.xlu0 %2150
        %2152 = vrot.lane.b32.xlu0 %v763, 16
        %v2153 = vpop.permute.xlu0 %2152
        %2154 = vrot.lane.b32.xlu0 %v764, 16
        %v2155 = vpop.permute.xlu0 %2154
        %2156 = vrot.lane.b32.xlu0 %v765, 16
        %v2157 = vpop.permute.xlu0 %2156
        %2158 = vrot.lane.b32.xlu0 %v766, 16
        %v2159 = vpop.permute.xlu0 %2158
        %2160 = vrot.lane.b32.xlu0 %v767, 16
        %v2161 = vpop.permute.xlu0 %2160
        %2162 = vrot.lane.b32.xlu0 %v768, 16
        %v2163 = vpop.permute.xlu0 %2162
        %s2180 = scalar_lea.vmem %s276, 448 [#allocation6]
        %2181 = vst.msk [vmem:[%s2180] sm:$0xf] %vm785, %v2133
        %2182 = vst.msk [vmem:[%s2180 + $0x4] sm:$0xf] %vm785, %v2135
        %2183 = vst.msk [vmem:[%s2180 + $0x8] sm:$0xf] %vm785, %v2137
        %2184 = vst.msk [vmem:[%s2180 + $0xc] sm:$0xf] %vm785, %v2139
        %2185 = vst.msk [vmem:[%s2180 + $0x10] sm:$0xf] %vm785, %v2141
        %2186 = vst.msk [vmem:[%s2180 + $0x14] sm:$0xf] %vm785, %v2143
        %2187 = vst.msk [vmem:[%s2180 + $0x18] sm:$0xf] %vm785, %v2145
        %2188 = vst.msk [vmem:[%s2180 + $0x1c] sm:$0xf] %vm785, %v2147
        %2189 = vst.msk [vmem:[%s2180 + $0x20] sm:$0xf] %vm785, %v2149
        %2190 = vst.msk [vmem:[%s2180 + $0x24] sm:$0xf] %vm785, %v2151
        %2191 = vst.msk [vmem:[%s2180 + $0x28] sm:$0xf] %vm785, %v2153
        %2192 = vst.msk [vmem:[%s2180 + $0x2c] sm:$0xf] %vm785, %v2155
        %2193 = vst.msk [vmem:[%s2180 + $0x30] sm:$0xf] %vm785, %v2157
        %2194 = vst.msk [vmem:[%s2180 + $0x34] sm:$0xf] %vm785, %v2159
        %2195 = vst.msk [vmem:[%s2180 + $0x38] sm:$0xf] %vm785, %v2161
        %2196 = vst.msk [vmem:[%s2180 + $0x3c] sm:$0xf] %vm785, %v2163
        %2197 = vrot.lane.b32.xlu0 %v834, 16
        %v2198 = vpop.permute.xlu0 %2197
        %2199 = vrot.lane.b32.xlu0 %v835, 16
        %v2200 = vpop.permute.xlu0 %2199
        %2201 = vrot.lane.b32.xlu0 %v836, 16
        %v2202 = vpop.permute.xlu0 %2201
        %2203 = vrot.lane.b32.xlu0 %v837, 16
        %v2204 = vpop.permute.xlu0 %2203
        %2205 = vrot.lane.b32.xlu0 %v838, 16
        %v2206 = vpop.permute.xlu0 %2205
        %2207 = vrot.lane.b32.xlu0 %v839, 16
        %v2208 = vpop.permute.xlu0 %2207
        %2209 = vrot.lane.b32.xlu0 %v840, 16
        %v2210 = vpop.permute.xlu0 %2209
        %2211 = vrot.lane.b32.xlu0 %v841, 16
        %v2212 = vpop.permute.xlu0 %2211
        %2213 = vrot.lane.b32.xlu0 %v842, 16
        %v2214 = vpop.permute.xlu0 %2213
        %2215 = vrot.lane.b32.xlu0 %v843, 16
        %v2216 = vpop.permute.xlu0 %2215
        %2217 = vrot.lane.b32.xlu0 %v844, 16
        %v2218 = vpop.permute.xlu0 %2217
        %2219 = vrot.lane.b32.xlu0 %v845, 16
        %v2220 = vpop.permute.xlu0 %2219
        %2221 = vrot.lane.b32.xlu0 %v846, 16
        %v2222 = vpop.permute.xlu0 %2221
        %2223 = vrot.lane.b32.xlu0 %v847, 16
        %v2224 = vpop.permute.xlu0 %2223
        %2225 = vrot.lane.b32.xlu0 %v848, 16
        %v2226 = vpop.permute.xlu0 %2225
        %2227 = vrot.lane.b32.xlu0 %v849, 16
        %v2228 = vpop.permute.xlu0 %2227
        %s2245 = scalar_lea.vmem %s282, 448 [#allocation7]
        %2246 = vst.msk [vmem:[%s2245] sm:$0xf] %vm785, %v2198
        %2247 = vst.msk [vmem:[%s2245 + $0x4] sm:$0xf] %vm785, %v2200
        %2248 = vst.msk [vmem:[%s2245 + $0x8] sm:$0xf] %vm785, %v2202
        %2249 = vst.msk [vmem:[%s2245 + $0xc] sm:$0xf] %vm785, %v2204
        %2250 = vst.msk [vmem:[%s2245 + $0x10] sm:$0xf] %vm785, %v2206
        %2251 = vst.msk [vmem:[%s2245 + $0x14] sm:$0xf] %vm785, %v2208
        %2252 = vst.msk [vmem:[%s2245 + $0x18] sm:$0xf] %vm785, %v2210
        %2253 = vst.msk [vmem:[%s2245 + $0x1c] sm:$0xf] %vm785, %v2212
        %2254 = vst.msk [vmem:[%s2245 + $0x20] sm:$0xf] %vm785, %v2214
        %2255 = vst.msk [vmem:[%s2245 + $0x24] sm:$0xf] %vm785, %v2216
        %2256 = vst.msk [vmem:[%s2245 + $0x28] sm:$0xf] %vm785, %v2218
        %2257 = vst.msk [vmem:[%s2245 + $0x2c] sm:$0xf] %vm785, %v2220
        %2258 = vst.msk [vmem:[%s2245 + $0x30] sm:$0xf] %vm785, %v2222
        %2259 = vst.msk [vmem:[%s2245 + $0x34] sm:$0xf] %vm785, %v2224
        %2260 = vst.msk [vmem:[%s2245 + $0x38] sm:$0xf] %vm785, %v2226
        %2261 = vst.msk [vmem:[%s2245 + $0x3c] sm:$0xf] %vm785, %v2228
        %2262 = vrot.lane.b32.xlu0 %v914, 16
        %v2263 = vpop.permute.xlu0 %2262
        %2264 = vrot.lane.b32.xlu0 %v915, 16
        %v2265 = vpop.permute.xlu0 %2264
        %2266 = vrot.lane.b32.xlu0 %v916, 16
        %v2267 = vpop.permute.xlu0 %2266
        %2268 = vrot.lane.b32.xlu0 %v917, 16
        %v2269 = vpop.permute.xlu0 %2268
        %2270 = vrot.lane.b32.xlu0 %v918, 16
        %v2271 = vpop.permute.xlu0 %2270
        %2272 = vrot.lane.b32.xlu0 %v919, 16
        %v2273 = vpop.permute.xlu0 %2272
        %2274 = vrot.lane.b32.xlu0 %v920, 16
        %v2275 = vpop.permute.xlu0 %2274
        %2276 = vrot.lane.b32.xlu0 %v921, 16
        %v2277 = vpop.permute.xlu0 %2276
        %2278 = vrot.lane.b32.xlu0 %v922, 16
        %v2279 = vpop.permute.xlu0 %2278
        %2280 = vrot.lane.b32.xlu0 %v923, 16
        %v2281 = vpop.permute.xlu0 %2280
        %2282 = vrot.lane.b32.xlu0 %v924, 16
        %v2283 = vpop.permute.xlu0 %2282
        %2284 = vrot.lane.b32.xlu0 %v925, 16
        %v2285 = vpop.permute.xlu0 %2284
        %2286 = vrot.lane.b32.xlu0 %v926, 16
        %v2287 = vpop.permute.xlu0 %2286
        %2288 = vrot.lane.b32.xlu0 %v927, 16
        %v2289 = vpop.permute.xlu0 %2288
        %2290 = vrot.lane.b32.xlu0 %v928, 16
        %v2291 = vpop.permute.xlu0 %2290
        %2292 = vrot.lane.b32.xlu0 %v929, 16
        %v2293 = vpop.permute.xlu0 %2292
        %s2310 = scalar_lea.vmem %s288, 448 [#allocation8]
        %2311 = vst.msk [vmem:[%s2310] sm:$0xf] %vm785, %v2263
        %2312 = vst.msk [vmem:[%s2310 + $0x4] sm:$0xf] %vm785, %v2265
        %2313 = vst.msk [vmem:[%s2310 + $0x8] sm:$0xf] %vm785, %v2267
        %2314 = vst.msk [vmem:[%s2310 + $0xc] sm:$0xf] %vm785, %v2269
        %2315 = vst.msk [vmem:[%s2310 + $0x10] sm:$0xf] %vm785, %v2271
        %2316 = vst.msk [vmem:[%s2310 + $0x14] sm:$0xf] %vm785, %v2273
        %2317 = vst.msk [vmem:[%s2310 + $0x18] sm:$0xf] %vm785, %v2275
        %2318 = vst.msk [vmem:[%s2310 + $0x1c] sm:$0xf] %vm785, %v2277
        %2319 = vst.msk [vmem:[%s2310 + $0x20] sm:$0xf] %vm785, %v2279
        %2320 = vst.msk [vmem:[%s2310 + $0x24] sm:$0xf] %vm785, %v2281
        %2321 = vst.msk [vmem:[%s2310 + $0x28] sm:$0xf] %vm785, %v2283
        %2322 = vst.msk [vmem:[%s2310 + $0x2c] sm:$0xf] %vm785, %v2285
        %2323 = vst.msk [vmem:[%s2310 + $0x30] sm:$0xf] %vm785, %v2287
        %2324 = vst.msk [vmem:[%s2310 + $0x34] sm:$0xf] %vm785, %v2289
        %2325 = vst.msk [vmem:[%s2310 + $0x38] sm:$0xf] %vm785, %v2291
        %2326 = vst.msk [vmem:[%s2310 + $0x3c] sm:$0xf] %vm785, %v2293
        %s2327 = sand.u32 %s113, 1
        %s2328 = sand.u32 %s113, 1
        %s2329 = smul.addr %s2328, 512
        %s2330 = scalar_lea.vmem [#allocation6], %s2329
        %s2331 = sand.u32 %s141, 1
        %s2332 = sand.u32 %s141, 1
        %s2333 = smul.addr %s2332, 512
        %s2334 = scalar_lea.vmem [#allocation7], %s2333
        %s2335 = sand.u32 %s169, 1
        %s2336 = sand.u32 %s169, 1
        %s2337 = smul.addr %s2336, 512
        %s2338 = scalar_lea.vmem [#allocation8], %s2337
        // Predicated region
        $region41: #{tpu_custom_call.1} parent=31 // pred_check
          %p2339 = pneg %p123
        $region42: #{tpu_custom_call.1} parent=31 // pred_check_branch
          %2341 = sbr.rel (%p2339) target = $region44
        $region43: #{tpu_custom_call.1} parent=31 // pred_region
          %s2342 = smul.u32 16, %s26
          %s2343 = smul.addr %s25, 256
          %s2344 = sadd.s32 %s2342, %s2343
          %s2345 = smul.addr %s2344, 4
          %s2346 = scalar_lea.vmem %s3, %s2345
          // Predicated region
          $region45: #{tpu_custom_call.1} parent=43 // pred_check
            _
          $region46: #{tpu_custom_call.1} parent=43 // pred_check_branch
            %2348 = sbr.rel (0) target = $region48
          $region47: #{tpu_custom_call.1} parent=43 // pred_region
            // Predicated region
            $region49: #{tpu_custom_call.1} parent=47 // pred_check
              _
            $region50: #{tpu_custom_call.1} parent=47 // pred_check_branch
              %2350 = sbr.rel target = $region52
            $region51: #{tpu_custom_call.1} parent=47 // pred_region
              // Predicated region
              $region64: #{tpu_custom_call.1} parent=51 // pred_check
                _
              $region65: #{tpu_custom_call.1} parent=51 // pred_check_branch
                %2619 = sbr.rel (0) target = $region67
              $region66: #{tpu_custom_call.1} parent=51 // pred_region
                loop: start=0, step=1, limit=1
                $region68: #{tpu_custom_call.1} parent=66 // loop_pre_header
                  _
                $region69: #{tpu_custom_call.1} parent=66 // loop_header
                  %s2621 = sphi 0, %s2625
                  %p2622 = scmp.ge.s32.totalorder %s2621, 1
                  %s2626 = sphi %s2330, %s2330
                  %s2627 = sphi %s2346, %s2346
                $region70: #{tpu_custom_call.1} parent=66 // loop_header_branch
                  %2624 = sbr.rel (%p2622) target = $region74
                $region71: #{tpu_custom_call.1} parent=66 // loop_body
                  _
                $region72: #{tpu_custom_call.1} parent=66 // loop_footer
                  %s2625 = sadd.s32 1, %s2621
                $region73: #{tpu_custom_call.1} parent=66 // loop_footer_branch
                  %2620 = sbr.rel target = $region69
                $region74: #{tpu_custom_call.1} parent=66 // loop_exit
                  _
                loop: start=0, step=1, limit=1
                $region75: #{tpu_custom_call.1} parent=66 // loop_pre_header
                  _
                $region76: #{tpu_custom_call.1} parent=66 // loop_header
                  %s2630 = sphi 0, %s2634
                  %p2631 = scmp.ge.s32.totalorder %s2630, 1
                  %s2635 = sphi %s2330, %s2330
                  %s2636 = sphi %s2346, %s2346
                $region77: #{tpu_custom_call.1} parent=66 // loop_header_branch
                  %2633 = sbr.rel (%p2631) target = $region81
                $region78: #{tpu_custom_call.1} parent=66 // loop_body
                  %v2637 = vld [vmem:[%s2635] sm:$0xf]
                  %2638 = vst [vmem:[%s2636] sm:$0xf] %v2637
                  %v2639 = vld [vmem:[%s2635 + $0x4] sm:$0xf]
                  %2640 = vst [vmem:[%s2636 + $0x4] sm:$0xf] %v2639
                  %v2641 = vld [vmem:[%s2635 + $0x8] sm:$0xf]
                  %2642 = vst [vmem:[%s2636 + $0x8] sm:$0xf] %v2641
                  %v2643 = vld [vmem:[%s2635 + $0xc] sm:$0xf]
                  %2644 = vst [vmem:[%s2636 + $0xc] sm:$0xf] %v2643
                  %v2645 = vld [vmem:[%s2635 + $0x10] sm:$0xf]
                  %2646 = vst [vmem:[%s2636 + $0x10] sm:$0xf] %v2645
                  %v2647 = vld [vmem:[%s2635 + $0x14] sm:$0xf]
                  %2648 = vst [vmem:[%s2636 + $0x14] sm:$0xf] %v2647
                  %v2649 = vld [vmem:[%s2635 + $0x18] sm:$0xf]
                  %2650 = vst [vmem:[%s2636 + $0x18] sm:$0xf] %v2649
                  %v2651 = vld [vmem:[%s2635 + $0x1c] sm:$0xf]
                  %2652 = vst [vmem:[%s2636 + $0x1c] sm:$0xf] %v2651
                  %v2653 = vld [vmem:[%s2635 + $0x20] sm:$0xf]
                  %2654 = vst [vmem:[%s2636 + $0x20] sm:$0xf] %v2653
                  %v2655 = vld [vmem:[%s2635 + $0x24] sm:$0xf]
                  %2656 = vst [vmem:[%s2636 + $0x24] sm:$0xf] %v2655
                  %v2657 = vld [vmem:[%s2635 + $0x28] sm:$0xf]
                  %2658 = vst [vmem:[%s2636 + $0x28] sm:$0xf] %v2657
                  %v2659 = vld [vmem:[%s2635 + $0x2c] sm:$0xf]
                  %2660 = vst [vmem:[%s2636 + $0x2c] sm:$0xf] %v2659
                  %v2661 = vld [vmem:[%s2635 + $0x30] sm:$0xf]
                  %2662 = vst [vmem:[%s2636 + $0x30] sm:$0xf] %v2661
                  %v2663 = vld [vmem:[%s2635 + $0x34] sm:$0xf]
                  %2664 = vst [vmem:[%s2636 + $0x34] sm:$0xf] %v2663
                  %v2665 = vld [vmem:[%s2635 + $0x38] sm:$0xf]
                  %2666 = vst [vmem:[%s2636 + $0x38] sm:$0xf] %v2665
                  %v2667 = vld [vmem:[%s2635 + $0x3c] sm:$0xf]
                  %2668 = vst [vmem:[%s2636 + $0x3c] sm:$0xf] %v2667
                  %v2669 = vld [vmem:[%s2635 + $0x40] sm:$0xf]
                  %2670 = vst [vmem:[%s2636 + $0x80] sm:$0xf] %v2669
                  %v2671 = vld [vmem:[%s2635 + $0x44] sm:$0xf]
                  %2672 = vst [vmem:[%s2636 + $0x84] sm:$0xf] %v2671
                  %v2673 = vld [vmem:[%s2635 + $0x48] sm:$0xf]
                  %2674 = vst [vmem:[%s2636 + $0x88] sm:$0xf] %v2673
                  %v2675 = vld [vmem:[%s2635 + $0x4c] sm:$0xf]
                  %2676 = vst [vmem:[%s2636 + $0x8c] sm:$0xf] %v2675
                  %v2677 = vld [vmem:[%s2635 + $0x50] sm:$0xf]
                  %2678 = vst [vmem:[%s2636 + $0x90] sm:$0xf] %v2677
                  %v2679 = vld [vmem:[%s2635 + $0x54] sm:$0xf]
                  %2680 = vst [vmem:[%s2636 + $0x94] sm:$0xf] %v2679
                  %v2681 = vld [vmem:[%s2635 + $0x58] sm:$0xf]
                  %2682 = vst [vmem:[%s2636 + $0x98] sm:$0xf] %v2681
                  %v2683 = vld [vmem:[%s2635 + $0x5c] sm:$0xf]
                  %2684 = vst [vmem:[%s2636 + $0x9c] sm:$0xf] %v2683
                  %v2685 = vld [vmem:[%s2635 + $0x60] sm:$0xf]
                  %2686 = vst [vmem:[%s2636 + $0xa0] sm:$0xf] %v2685
                  %v2687 = vld [vmem:[%s2635 + $0x64] sm:$0xf]
                  %2688 = vst [vmem:[%s2636 + $0xa4] sm:$0xf] %v2687
                  %v2689 = vld [vmem:[%s2635 + $0x68] sm:$0xf]
                  %2690 = vst [vmem:[%s2636 + $0xa8] sm:$0xf] %v2689
                  %v2691 = vld [vmem:[%s2635 + $0x6c] sm:$0xf]
                  %2692 = vst [vmem:[%s2636 + $0xac] sm:$0xf] %v2691
                  %v2693 = vld [vmem:[%s2635 + $0x70] sm:$0xf]
                  %2694 = vst [vmem:[%s2636 + $0xb0] sm:$0xf] %v2693
                  %v2695 = vld [vmem:[%s2635 + $0x74] sm:$0xf]
                  %2696 = vst [vmem:[%s2636 + $0xb4] sm:$0xf] %v2695
                  %v2697 = vld [vmem:[%s2635 + $0x78] sm:$0xf]
                  %2698 = vst [vmem:[%s2636 + $0xb8] sm:$0xf] %v2697
                  %v2699 = vld [vmem:[%s2635 + $0x7c] sm:$0xf]
                  %2700 = vst [vmem:[%s2636 + $0xbc] sm:$0xf] %v2699
                  %v2701 = vld [vmem:[%s2635 + $0x80] sm:$0xf]
                  %2702 = vst [vmem:[%s2636 + $0x100] sm:$0xf] %v2701
                  %v2703 = vld [vmem:[%s2635 + $0x84] sm:$0xf]
                  %2704 = vst [vmem:[%s2636 + $0x104] sm:$0xf] %v2703
                  %v2705 = vld [vmem:[%s2635 + $0x88] sm:$0xf]
                  %2706 = vst [vmem:[%s2636 + $0x108] sm:$0xf] %v2705
                  %v2707 = vld [vmem:[%s2635 + $0x8c] sm:$0xf]
                  %2708 = vst [vmem:[%s2636 + $0x10c] sm:$0xf] %v2707
                  %v2709 = vld [vmem:[%s2635 + $0x90] sm:$0xf]
                  %2710 = vst [vmem:[%s2636 + $0x110] sm:$0xf] %v2709
                  %v2711 = vld [vmem:[%s2635 + $0x94] sm:$0xf]
                  %2712 = vst [vmem:[%s2636 + $0x114] sm:$0xf] %v2711
                  %v2713 = vld [vmem:[%s2635 + $0x98] sm:$0xf]
                  %2714 = vst [vmem:[%s2636 + $0x118] sm:$0xf] %v2713
                  %v2715 = vld [vmem:[%s2635 + $0x9c] sm:$0xf]
                  %2716 = vst [vmem:[%s2636 + $0x11c] sm:$0xf] %v2715
                  %v2717 = vld [vmem:[%s2635 + $0xa0] sm:$0xf]
                  %2718 = vst [vmem:[%s2636 + $0x120] sm:$0xf] %v2717
                  %v2719 = vld [vmem:[%s2635 + $0xa4] sm:$0xf]
                  %2720 = vst [vmem:[%s2636 + $0x124] sm:$0xf] %v2719
                  %v2721 = vld [vmem:[%s2635 + $0xa8] sm:$0xf]
                  %2722 = vst [vmem:[%s2636 + $0x128] sm:$0xf] %v2721
                  %v2723 = vld [vmem:[%s2635 + $0xac] sm:$0xf]
                  %2724 = vst [vmem:[%s2636 + $0x12c] sm:$0xf] %v2723
                  %v2725 = vld [vmem:[%s2635 + $0xb0] sm:$0xf]
                  %2726 = vst [vmem:[%s2636 + $0x130] sm:$0xf] %v2725
                  %v2727 = vld [vmem:[%s2635 + $0xb4] sm:$0xf]
                  %2728 = vst [vmem:[%s2636 + $0x134] sm:$0xf] %v2727
                  %v2729 = vld [vmem:[%s2635 + $0xb8] sm:$0xf]
                  %2730 = vst [vmem:[%s2636 + $0x138] sm:$0xf] %v2729
                  %v2731 = vld [vmem:[%s2635 + $0xbc] sm:$0xf]
                  %2732 = vst [vmem:[%s2636 + $0x13c] sm:$0xf] %v2731
                  %v2733 = vld [vmem:[%s2635 + $0xc0] sm:$0xf]
                  %2734 = vst [vmem:[%s2636 + $0x180] sm:$0xf] %v2733
                  %v2735 = vld [vmem:[%s2635 + $0xc4] sm:$0xf]
                  %2736 = vst [vmem:[%s2636 + $0x184] sm:$0xf] %v2735
                  %v2737 = vld [vmem:[%s2635 + $0xc8] sm:$0xf]
                  %2738 = vst [vmem:[%s2636 + $0x188] sm:$0xf] %v2737
                  %v2739 = vld [vmem:[%s2635 + $0xcc] sm:$0xf]
                  %2740 = vst [vmem:[%s2636 + $0x18c] sm:$0xf] %v2739
                  %v2741 = vld [vmem:[%s2635 + $0xd0] sm:$0xf]
                  %2742 = vst [vmem:[%s2636 + $0x190] sm:$0xf] %v2741
                  %v2743 = vld [vmem:[%s2635 + $0xd4] sm:$0xf]
                  %2744 = vst [vmem:[%s2636 + $0x194] sm:$0xf] %v2743
                  %v2745 = vld [vmem:[%s2635 + $0xd8] sm:$0xf]
                  %2746 = vst [vmem:[%s2636 + $0x198] sm:$0xf] %v2745
                  %v2747 = vld [vmem:[%s2635 + $0xdc] sm:$0xf]
                  %2748 = vst [vmem:[%s2636 + $0x19c] sm:$0xf] %v2747
                  %v2749 = vld [vmem:[%s2635 + $0xe0] sm:$0xf]
                  %2750 = vst [vmem:[%s2636 + $0x1a0] sm:$0xf] %v2749
                  %v2751 = vld [vmem:[%s2635 + $0xe4] sm:$0xf]
                  %2752 = vst [vmem:[%s2636 + $0x1a4] sm:$0xf] %v2751
                  %v2753 = vld [vmem:[%s2635 + $0xe8] sm:$0xf]
                  %2754 = vst [vmem:[%s2636 + $0x1a8] sm:$0xf] %v2753
                  %v2755 = vld [vmem:[%s2635 + $0xec] sm:$0xf]
                  %2756 = vst [vmem:[%s2636 + $0x1ac] sm:$0xf] %v2755
                  %v2757 = vld [vmem:[%s2635 + $0xf0] sm:$0xf]
                  %2758 = vst [vmem:[%s2636 + $0x1b0] sm:$0xf] %v2757
                  %v2759 = vld [vmem:[%s2635 + $0xf4] sm:$0xf]
                  %2760 = vst [vmem:[%s2636 + $0x1b4] sm:$0xf] %v2759
                  %v2761 = vld [vmem:[%s2635 + $0xf8] sm:$0xf]
                  %2762 = vst [vmem:[%s2636 + $0x1b8] sm:$0xf] %v2761
                  %v2763 = vld [vmem:[%s2635 + $0xfc] sm:$0xf]
                  %2764 = vst [vmem:[%s2636 + $0x1bc] sm:$0xf] %v2763
                  %v2765 = vld [vmem:[%s2635 + $0x100] sm:$0xf]
                  %2766 = vst [vmem:[%s2636 + $0x200] sm:$0xf] %v2765
                  %v2767 = vld [vmem:[%s2635 + $0x104] sm:$0xf]
                  %2768 = vst [vmem:[%s2636 + $0x204] sm:$0xf] %v2767
                  %v2769 = vld [vmem:[%s2635 + $0x108] sm:$0xf]
                  %2770 = vst [vmem:[%s2636 + $0x208] sm:$0xf] %v2769
                  %v2771 = vld [vmem:[%s2635 + $0x10c] sm:$0xf]
                  %2772 = vst [vmem:[%s2636 + $0x20c] sm:$0xf] %v2771
                  %v2773 = vld [vmem:[%s2635 + $0x110] sm:$0xf]
                  %2774 = vst [vmem:[%s2636 + $0x210] sm:$0xf] %v2773
                  %v2775 = vld [vmem:[%s2635 + $0x114] sm:$0xf]
                  %2776 = vst [vmem:[%s2636 + $0x214] sm:$0xf] %v2775
                  %v2777 = vld [vmem:[%s2635 + $0x118] sm:$0xf]
                  %2778 = vst [vmem:[%s2636 + $0x218] sm:$0xf] %v2777
                  %v2779 = vld [vmem:[%s2635 + $0x11c] sm:$0xf]
                  %2780 = vst [vmem:[%s2636 + $0x21c] sm:$0xf] %v2779
                  %v2781 = vld [vmem:[%s2635 + $0x120] sm:$0xf]
                  %2782 = vst [vmem:[%s2636 + $0x220] sm:$0xf] %v2781
                  %v2783 = vld [vmem:[%s2635 + $0x124] sm:$0xf]
                  %2784 = vst [vmem:[%s2636 + $0x224] sm:$0xf] %v2783
                  %v2785 = vld [vmem:[%s2635 + $0x128] sm:$0xf]
                  %2786 = vst [vmem:[%s2636 + $0x228] sm:$0xf] %v2785
                  %v2787 = vld [vmem:[%s2635 + $0x12c] sm:$0xf]
                  %2788 = vst [vmem:[%s2636 + $0x22c] sm:$0xf] %v2787
                  %v2789 = vld [vmem:[%s2635 + $0x130] sm:$0xf]
                  %2790 = vst [vmem:[%s2636 + $0x230] sm:$0xf] %v2789
                  %v2791 = vld [vmem:[%s2635 + $0x134] sm:$0xf]
                  %2792 = vst [vmem:[%s2636 + $0x234] sm:$0xf] %v2791
                  %v2793 = vld [vmem:[%s2635 + $0x138] sm:$0xf]
                  %2794 = vst [vmem:[%s2636 + $0x238] sm:$0xf] %v2793
                  %v2795 = vld [vmem:[%s2635 + $0x13c] sm:$0xf]
                  %2796 = vst [vmem:[%s2636 + $0x23c] sm:$0xf] %v2795
                  %v2797 = vld [vmem:[%s2635 + $0x140] sm:$0xf]
                  %2798 = vst [vmem:[%s2636 + $0x280] sm:$0xf] %v2797
                  %v2799 = vld [vmem:[%s2635 + $0x144] sm:$0xf]
                  %2800 = vst [vmem:[%s2636 + $0x284] sm:$0xf] %v2799
                  %v2801 = vld [vmem:[%s2635 + $0x148] sm:$0xf]
                  %2802 = vst [vmem:[%s2636 + $0x288] sm:$0xf] %v2801
                  %v2803 = vld [vmem:[%s2635 + $0x14c] sm:$0xf]
                  %2804 = vst [vmem:[%s2636 + $0x28c] sm:$0xf] %v2803
                  %v2805 = vld [vmem:[%s2635 + $0x150] sm:$0xf]
                  %2806 = vst [vmem:[%s2636 + $0x290] sm:$0xf] %v2805
                  %v2807 = vld [vmem:[%s2635 + $0x154] sm:$0xf]
                  %2808 = vst [vmem:[%s2636 + $0x294] sm:$0xf] %v2807
                  %v2809 = vld [vmem:[%s2635 + $0x158] sm:$0xf]
                  %2810 = vst [vmem:[%s2636 + $0x298] sm:$0xf] %v2809
                  %v2811 = vld [vmem:[%s2635 + $0x15c] sm:$0xf]
                  %2812 = vst [vmem:[%s2636 + $0x29c] sm:$0xf] %v2811
                  %v2813 = vld [vmem:[%s2635 + $0x160] sm:$0xf]
                  %2814 = vst [vmem:[%s2636 + $0x2a0] sm:$0xf] %v2813
                  %v2815 = vld [vmem:[%s2635 + $0x164] sm:$0xf]
                  %2816 = vst [vmem:[%s2636 + $0x2a4] sm:$0xf] %v2815
                  %v2817 = vld [vmem:[%s2635 + $0x168] sm:$0xf]
                  %2818 = vst [vmem:[%s2636 + $0x2a8] sm:$0xf] %v2817
                  %v2819 = vld [vmem:[%s2635 + $0x16c] sm:$0xf]
                  %2820 = vst [vmem:[%s2636 + $0x2ac] sm:$0xf] %v2819
                  %v2821 = vld [vmem:[%s2635 + $0x170] sm:$0xf]
                  %2822 = vst [vmem:[%s2636 + $0x2b0] sm:$0xf] %v2821
                  %v2823 = vld [vmem:[%s2635 + $0x174] sm:$0xf]
                  %2824 = vst [vmem:[%s2636 + $0x2b4] sm:$0xf] %v2823
                  %v2825 = vld [vmem:[%s2635 + $0x178] sm:$0xf]
                  %2826 = vst [vmem:[%s2636 + $0x2b8] sm:$0xf] %v2825
                  %v2827 = vld [vmem:[%s2635 + $0x17c] sm:$0xf]
                  %2828 = vst [vmem:[%s2636 + $0x2bc] sm:$0xf] %v2827
                  %v2829 = vld [vmem:[%s2635 + $0x180] sm:$0xf]
                  %2830 = vst [vmem:[%s2636 + $0x300] sm:$0xf] %v2829
                  %v2831 = vld [vmem:[%s2635 + $0x184] sm:$0xf]
                  %2832 = vst [vmem:[%s2636 + $0x304] sm:$0xf] %v2831
                  %v2833 = vld [vmem:[%s2635 + $0x188] sm:$0xf]
                  %2834 = vst [vmem:[%s2636 + $0x308] sm:$0xf] %v2833
                  %v2835 = vld [vmem:[%s2635 + $0x18c] sm:$0xf]
                  %2836 = vst [vmem:[%s2636 + $0x30c] sm:$0xf] %v2835
                  %v2837 = vld [vmem:[%s2635 + $0x190] sm:$0xf]
                  %2838 = vst [vmem:[%s2636 + $0x310] sm:$0xf] %v2837
                  %v2839 = vld [vmem:[%s2635 + $0x194] sm:$0xf]
                  %2840 = vst [vmem:[%s2636 + $0x314] sm:$0xf] %v2839
                  %v2841 = vld [vmem:[%s2635 + $0x198] sm:$0xf]
                  %2842 = vst [vmem:[%s2636 + $0x318] sm:$0xf] %v2841
                  %v2843 = vld [vmem:[%s2635 + $0x19c] sm:$0xf]
                  %2844 = vst [vmem:[%s2636 + $0x31c] sm:$0xf] %v2843
                  %v2845 = vld [vmem:[%s2635 + $0x1a0] sm:$0xf]
                  %2846 = vst [vmem:[%s2636 + $0x320] sm:$0xf] %v2845
                  %v2847 = vld [vmem:[%s2635 + $0x1a4] sm:$0xf]
                  %2848 = vst [vmem:[%s2636 + $0x324] sm:$0xf] %v2847
                  %v2849 = vld [vmem:[%s2635 + $0x1a8] sm:$0xf]
                  %2850 = vst [vmem:[%s2636 + $0x328] sm:$0xf] %v2849
                  %v2851 = vld [vmem:[%s2635 + $0x1ac] sm:$0xf]
                  %2852 = vst [vmem:[%s2636 + $0x32c] sm:$0xf] %v2851
                  %v2853 = vld [vmem:[%s2635 + $0x1b0] sm:$0xf]
                  %2854 = vst [vmem:[%s2636 + $0x330] sm:$0xf] %v2853
                  %v2855 = vld [vmem:[%s2635 + $0x1b4] sm:$0xf]
                  %2856 = vst [vmem:[%s2636 + $0x334] sm:$0xf] %v2855
                  %v2857 = vld [vmem:[%s2635 + $0x1b8] sm:$0xf]
                  %2858 = vst [vmem:[%s2636 + $0x338] sm:$0xf] %v2857
                  %v2859 = vld [vmem:[%s2635 + $0x1bc] sm:$0xf]
                  %2860 = vst [vmem:[%s2636 + $0x33c] sm:$0xf] %v2859
                  %v2861 = vld [vmem:[%s2635 + $0x1c0] sm:$0xf]
                  %2862 = vst [vmem:[%s2636 + $0x380] sm:$0xf] %v2861
                  %v2863 = vld [vmem:[%s2635 + $0x1c4] sm:$0xf]
                  %2864 = vst [vmem:[%s2636 + $0x384] sm:$0xf] %v2863
                  %v2865 = vld [vmem:[%s2635 + $0x1c8] sm:$0xf]
                  %2866 = vst [vmem:[%s2636 + $0x388] sm:$0xf] %v2865
                  %v2867 = vld [vmem:[%s2635 + $0x1cc] sm:$0xf]
                  %2868 = vst [vmem:[%s2636 + $0x38c] sm:$0xf] %v2867
                  %v2869 = vld [vmem:[%s2635 + $0x1d0] sm:$0xf]
                  %2870 = vst [vmem:[%s2636 + $0x390] sm:$0xf] %v2869
                  %v2871 = vld [vmem:[%s2635 + $0x1d4] sm:$0xf]
                  %2872 = vst [vmem:[%s2636 + $0x394] sm:$0xf] %v2871
                  %v2873 = vld [vmem:[%s2635 + $0x1d8] sm:$0xf]
                  %2874 = vst [vmem:[%s2636 + $0x398] sm:$0xf] %v2873
                  %v2875 = vld [vmem:[%s2635 + $0x1dc] sm:$0xf]
                  %2876 = vst [vmem:[%s2636 + $0x39c] sm:$0xf] %v2875
                  %v2877 = vld [vmem:[%s2635 + $0x1e0] sm:$0xf]
                  %2878 = vst [vmem:[%s2636 + $0x3a0] sm:$0xf] %v2877
                  %v2879 = vld [vmem:[%s2635 + $0x1e4] sm:$0xf]
                  %2880 = vst [vmem:[%s2636 + $0x3a4] sm:$0xf] %v2879
                  %v2881 = vld [vmem:[%s2635 + $0x1e8] sm:$0xf]
                  %2882 = vst [vmem:[%s2636 + $0x3a8] sm:$0xf] %v2881
                  %v2883 = vld [vmem:[%s2635 + $0x1ec] sm:$0xf]
                  %2884 = vst [vmem:[%s2636 + $0x3ac] sm:$0xf] %v2883
                  %v2885 = vld [vmem:[%s2635 + $0x1f0] sm:$0xf]
                  %2886 = vst [vmem:[%s2636 + $0x3b0] sm:$0xf] %v2885
                  %v2887 = vld [vmem:[%s2635 + $0x1f4] sm:$0xf]
                  %2888 = vst [vmem:[%s2636 + $0x3b4] sm:$0xf] %v2887
                  %v2889 = vld [vmem:[%s2635 + $0x1f8] sm:$0xf]
                  %2890 = vst [vmem:[%s2636 + $0x3b8] sm:$0xf] %v2889
                  %v2891 = vld [vmem:[%s2635 + $0x1fc] sm:$0xf]
                  %2892 = vst [vmem:[%s2636 + $0x3bc] sm:$0xf] %v2891
                $region79: #{tpu_custom_call.1} parent=66 // loop_footer
                  %s2634 = sadd.s32 1, %s2630
                $region80: #{tpu_custom_call.1} parent=66 // loop_footer_branch
                  %2629 = sbr.rel target = $region76
                $region81: #{tpu_custom_call.1} parent=66 // loop_exit
                  _
              $region67: #{tpu_custom_call.1} parent=51 // pred_fallthru
                _
            $region52: #{tpu_custom_call.1} parent=47 // pred_fallthru
              _
            // Predicated region
            $region53: #{tpu_custom_call.1} parent=47 // pred_check
              _
            $region54: #{tpu_custom_call.1} parent=47 // pred_check_branch
              %2352 = sbr.rel (0) target = $region56
            $region55: #{tpu_custom_call.1} parent=47 // pred_region
              loop: start=0, step=1, limit=1
              $region57: #{tpu_custom_call.1} parent=55 // loop_pre_header
                _
              $region58: #{tpu_custom_call.1} parent=55 // loop_header
                %s2355 = sphi 0, %s2359
                %p2356 = scmp.ge.s32.totalorder %s2355, 1
                %s2360 = sphi %s2330, %s2330
                %s2361 = sphi %s2346, %s2346
              $region59: #{tpu_custom_call.1} parent=55 // loop_header_branch
                %2358 = sbr.rel (%p2356) target = $region63
              $region60: #{tpu_custom_call.1} parent=55 // loop_body
                %v2362 = vld [vmem:[%s2360] sm:$0xf]
                %2363 = vst [vmem:[%s2361] sm:$0xf] %v2362
                %v2364 = vld [vmem:[%s2360 + $0x4] sm:$0xf]
                %2365 = vst [vmem:[%s2361 + $0x4] sm:$0xf] %v2364
                %v2366 = vld [vmem:[%s2360 + $0x8] sm:$0xf]
                %2367 = vst [vmem:[%s2361 + $0x8] sm:$0xf] %v2366
                %v2368 = vld [vmem:[%s2360 + $0xc] sm:$0xf]
                %2369 = vst [vmem:[%s2361 + $0xc] sm:$0xf] %v2368
                %v2370 = vld [vmem:[%s2360 + $0x10] sm:$0xf]
                %2371 = vst [vmem:[%s2361 + $0x10] sm:$0xf] %v2370
                %v2372 = vld [vmem:[%s2360 + $0x14] sm:$0xf]
                %2373 = vst [vmem:[%s2361 + $0x14] sm:$0xf] %v2372
                %v2374 = vld [vmem:[%s2360 + $0x18] sm:$0xf]
                %2375 = vst [vmem:[%s2361 + $0x18] sm:$0xf] %v2374
                %v2376 = vld [vmem:[%s2360 + $0x1c] sm:$0xf]
                %2377 = vst [vmem:[%s2361 + $0x1c] sm:$0xf] %v2376
                %v2378 = vld [vmem:[%s2360 + $0x20] sm:$0xf]
                %2379 = vst [vmem:[%s2361 + $0x20] sm:$0xf] %v2378
                %v2380 = vld [vmem:[%s2360 + $0x24] sm:$0xf]
                %2381 = vst [vmem:[%s2361 + $0x24] sm:$0xf] %v2380
                %v2382 = vld [vmem:[%s2360 + $0x28] sm:$0xf]
                %2383 = vst [vmem:[%s2361 + $0x28] sm:$0xf] %v2382
                %v2384 = vld [vmem:[%s2360 + $0x2c] sm:$0xf]
                %2385 = vst [vmem:[%s2361 + $0x2c] sm:$0xf] %v2384
                %v2386 = vld [vmem:[%s2360 + $0x30] sm:$0xf]
                %2387 = vst [vmem:[%s2361 + $0x30] sm:$0xf] %v2386
                %v2388 = vld [vmem:[%s2360 + $0x34] sm:$0xf]
                %2389 = vst [vmem:[%s2361 + $0x34] sm:$0xf] %v2388
                %v2390 = vld [vmem:[%s2360 + $0x38] sm:$0xf]
                %2391 = vst [vmem:[%s2361 + $0x38] sm:$0xf] %v2390
                %v2392 = vld [vmem:[%s2360 + $0x3c] sm:$0xf]
                %2393 = vst [vmem:[%s2361 + $0x3c] sm:$0xf] %v2392
                %v2394 = vld [vmem:[%s2360 + $0x40] sm:$0xf]
                %2395 = vst [vmem:[%s2361 + $0x80] sm:$0xf] %v2394
                %v2396 = vld [vmem:[%s2360 + $0x44] sm:$0xf]
                %2397 = vst [vmem:[%s2361 + $0x84] sm:$0xf] %v2396
                %v2398 = vld [vmem:[%s2360 + $0x48] sm:$0xf]
                %2399 = vst [vmem:[%s2361 + $0x88] sm:$0xf] %v2398
                %v2400 = vld [vmem:[%s2360 + $0x4c] sm:$0xf]
                %2401 = vst [vmem:[%s2361 + $0x8c] sm:$0xf] %v2400
                %v2402 = vld [vmem:[%s2360 + $0x50] sm:$0xf]
                %2403 = vst [vmem:[%s2361 + $0x90] sm:$0xf] %v2402
                %v2404 = vld [vmem:[%s2360 + $0x54] sm:$0xf]
                %2405 = vst [vmem:[%s2361 + $0x94] sm:$0xf] %v2404
                %v2406 = vld [vmem:[%s2360 + $0x58] sm:$0xf]
                %2407 = vst [vmem:[%s2361 + $0x98] sm:$0xf] %v2406
                %v2408 = vld [vmem:[%s2360 + $0x5c] sm:$0xf]
                %2409 = vst [vmem:[%s2361 + $0x9c] sm:$0xf] %v2408
                %v2410 = vld [vmem:[%s2360 + $0x60] sm:$0xf]
                %2411 = vst [vmem:[%s2361 + $0xa0] sm:$0xf] %v2410
                %v2412 = vld [vmem:[%s2360 + $0x64] sm:$0xf]
                %2413 = vst [vmem:[%s2361 + $0xa4] sm:$0xf] %v2412
                %v2414 = vld [vmem:[%s2360 + $0x68] sm:$0xf]
                %2415 = vst [vmem:[%s2361 + $0xa8] sm:$0xf] %v2414
                %v2416 = vld [vmem:[%s2360 + $0x6c] sm:$0xf]
                %2417 = vst [vmem:[%s2361 + $0xac] sm:$0xf] %v2416
                %v2418 = vld [vmem:[%s2360 + $0x70] sm:$0xf]
                %2419 = vst [vmem:[%s2361 + $0xb0] sm:$0xf] %v2418
                %v2420 = vld [vmem:[%s2360 + $0x74] sm:$0xf]
                %2421 = vst [vmem:[%s2361 + $0xb4] sm:$0xf] %v2420
                %v2422 = vld [vmem:[%s2360 + $0x78] sm:$0xf]
                %2423 = vst [vmem:[%s2361 + $0xb8] sm:$0xf] %v2422
                %v2424 = vld [vmem:[%s2360 + $0x7c] sm:$0xf]
                %2425 = vst [vmem:[%s2361 + $0xbc] sm:$0xf] %v2424
                %v2426 = vld [vmem:[%s2360 + $0x80] sm:$0xf]
                %2427 = vst [vmem:[%s2361 + $0x100] sm:$0xf] %v2426
                %v2428 = vld [vmem:[%s2360 + $0x84] sm:$0xf]
                %2429 = vst [vmem:[%s2361 + $0x104] sm:$0xf] %v2428
                %v2430 = vld [vmem:[%s2360 + $0x88] sm:$0xf]
                %2431 = vst [vmem:[%s2361 + $0x108] sm:$0xf] %v2430
                %v2432 = vld [vmem:[%s2360 + $0x8c] sm:$0xf]
                %2433 = vst [vmem:[%s2361 + $0x10c] sm:$0xf] %v2432
                %v2434 = vld [vmem:[%s2360 + $0x90] sm:$0xf]
                %2435 = vst [vmem:[%s2361 + $0x110] sm:$0xf] %v2434
                %v2436 = vld [vmem:[%s2360 + $0x94] sm:$0xf]
                %2437 = vst [vmem:[%s2361 + $0x114] sm:$0xf] %v2436
                %v2438 = vld [vmem:[%s2360 + $0x98] sm:$0xf]
                %2439 = vst [vmem:[%s2361 + $0x118] sm:$0xf] %v2438
                %v2440 = vld [vmem:[%s2360 + $0x9c] sm:$0xf]
                %2441 = vst [vmem:[%s2361 + $0x11c] sm:$0xf] %v2440
                %v2442 = vld [vmem:[%s2360 + $0xa0] sm:$0xf]
                %2443 = vst [vmem:[%s2361 + $0x120] sm:$0xf] %v2442
                %v2444 = vld [vmem:[%s2360 + $0xa4] sm:$0xf]
                %2445 = vst [vmem:[%s2361 + $0x124] sm:$0xf] %v2444
                %v2446 = vld [vmem:[%s2360 + $0xa8] sm:$0xf]
                %2447 = vst [vmem:[%s2361 + $0x128] sm:$0xf] %v2446
                %v2448 = vld [vmem:[%s2360 + $0xac] sm:$0xf]
                %2449 = vst [vmem:[%s2361 + $0x12c] sm:$0xf] %v2448
                %v2450 = vld [vmem:[%s2360 + $0xb0] sm:$0xf]
                %2451 = vst [vmem:[%s2361 + $0x130] sm:$0xf] %v2450
                %v2452 = vld [vmem:[%s2360 + $0xb4] sm:$0xf]
                %2453 = vst [vmem:[%s2361 + $0x134] sm:$0xf] %v2452
                %v2454 = vld [vmem:[%s2360 + $0xb8] sm:$0xf]
                %2455 = vst [vmem:[%s2361 + $0x138] sm:$0xf] %v2454
                %v2456 = vld [vmem:[%s2360 + $0xbc] sm:$0xf]
                %2457 = vst [vmem:[%s2361 + $0x13c] sm:$0xf] %v2456
                %v2458 = vld [vmem:[%s2360 + $0xc0] sm:$0xf]
                %2459 = vst [vmem:[%s2361 + $0x180] sm:$0xf] %v2458
                %v2460 = vld [vmem:[%s2360 + $0xc4] sm:$0xf]
                %2461 = vst [vmem:[%s2361 + $0x184] sm:$0xf] %v2460
                %v2462 = vld [vmem:[%s2360 + $0xc8] sm:$0xf]
                %2463 = vst [vmem:[%s2361 + $0x188] sm:$0xf] %v2462
                %v2464 = vld [vmem:[%s2360 + $0xcc] sm:$0xf]
                %2465 = vst [vmem:[%s2361 + $0x18c] sm:$0xf] %v2464
                %v2466 = vld [vmem:[%s2360 + $0xd0] sm:$0xf]
                %2467 = vst [vmem:[%s2361 + $0x190] sm:$0xf] %v2466
                %v2468 = vld [vmem:[%s2360 + $0xd4] sm:$0xf]
                %2469 = vst [vmem:[%s2361 + $0x194] sm:$0xf] %v2468
                %v2470 = vld [vmem:[%s2360 + $0xd8] sm:$0xf]
                %2471 = vst [vmem:[%s2361 + $0x198] sm:$0xf] %v2470
                %v2472 = vld [vmem:[%s2360 + $0xdc] sm:$0xf]
                %2473 = vst [vmem:[%s2361 + $0x19c] sm:$0xf] %v2472
                %v2474 = vld [vmem:[%s2360 + $0xe0] sm:$0xf]
                %2475 = vst [vmem:[%s2361 + $0x1a0] sm:$0xf] %v2474
                %v2476 = vld [vmem:[%s2360 + $0xe4] sm:$0xf]
                %2477 = vst [vmem:[%s2361 + $0x1a4] sm:$0xf] %v2476
                %v2478 = vld [vmem:[%s2360 + $0xe8] sm:$0xf]
                %2479 = vst [vmem:[%s2361 + $0x1a8] sm:$0xf] %v2478
                %v2480 = vld [vmem:[%s2360 + $0xec] sm:$0xf]
                %2481 = vst [vmem:[%s2361 + $0x1ac] sm:$0xf] %v2480
                %v2482 = vld [vmem:[%s2360 + $0xf0] sm:$0xf]
                %2483 = vst [vmem:[%s2361 + $0x1b0] sm:$0xf] %v2482
                %v2484 = vld [vmem:[%s2360 + $0xf4] sm:$0xf]
                %2485 = vst [vmem:[%s2361 + $0x1b4] sm:$0xf] %v2484
                %v2486 = vld [vmem:[%s2360 + $0xf8] sm:$0xf]
                %2487 = vst [vmem:[%s2361 + $0x1b8] sm:$0xf] %v2486
                %v2488 = vld [vmem:[%s2360 + $0xfc] sm:$0xf]
                %2489 = vst [vmem:[%s2361 + $0x1bc] sm:$0xf] %v2488
                %v2490 = vld [vmem:[%s2360 + $0x100] sm:$0xf]
                %2491 = vst [vmem:[%s2361 + $0x200] sm:$0xf] %v2490
                %v2492 = vld [vmem:[%s2360 + $0x104] sm:$0xf]
                %2493 = vst [vmem:[%s2361 + $0x204] sm:$0xf] %v2492
                %v2494 = vld [vmem:[%s2360 + $0x108] sm:$0xf]
                %2495 = vst [vmem:[%s2361 + $0x208] sm:$0xf] %v2494
                %v2496 = vld [vmem:[%s2360 + $0x10c] sm:$0xf]
                %2497 = vst [vmem:[%s2361 + $0x20c] sm:$0xf] %v2496
                %v2498 = vld [vmem:[%s2360 + $0x110] sm:$0xf]
                %2499 = vst [vmem:[%s2361 + $0x210] sm:$0xf] %v2498
                %v2500 = vld [vmem:[%s2360 + $0x114] sm:$0xf]
                %2501 = vst [vmem:[%s2361 + $0x214] sm:$0xf] %v2500
                %v2502 = vld [vmem:[%s2360 + $0x118] sm:$0xf]
                %2503 = vst [vmem:[%s2361 + $0x218] sm:$0xf] %v2502
                %v2504 = vld [vmem:[%s2360 + $0x11c] sm:$0xf]
                %2505 = vst [vmem:[%s2361 + $0x21c] sm:$0xf] %v2504
                %v2506 = vld [vmem:[%s2360 + $0x120] sm:$0xf]
                %2507 = vst [vmem:[%s2361 + $0x220] sm:$0xf] %v2506
                %v2508 = vld [vmem:[%s2360 + $0x124] sm:$0xf]
                %2509 = vst [vmem:[%s2361 + $0x224] sm:$0xf] %v2508
                %v2510 = vld [vmem:[%s2360 + $0x128] sm:$0xf]
                %2511 = vst [vmem:[%s2361 + $0x228] sm:$0xf] %v2510
                %v2512 = vld [vmem:[%s2360 + $0x12c] sm:$0xf]
                %2513 = vst [vmem:[%s2361 + $0x22c] sm:$0xf] %v2512
                %v2514 = vld [vmem:[%s2360 + $0x130] sm:$0xf]
                %2515 = vst [vmem:[%s2361 + $0x230] sm:$0xf] %v2514
                %v2516 = vld [vmem:[%s2360 + $0x134] sm:$0xf]
                %2517 = vst [vmem:[%s2361 + $0x234] sm:$0xf] %v2516
                %v2518 = vld [vmem:[%s2360 + $0x138] sm:$0xf]
                %2519 = vst [vmem:[%s2361 + $0x238] sm:$0xf] %v2518
                %v2520 = vld [vmem:[%s2360 + $0x13c] sm:$0xf]
                %2521 = vst [vmem:[%s2361 + $0x23c] sm:$0xf] %v2520
                %v2522 = vld [vmem:[%s2360 + $0x140] sm:$0xf]
                %2523 = vst [vmem:[%s2361 + $0x280] sm:$0xf] %v2522
                %v2524 = vld [vmem:[%s2360 + $0x144] sm:$0xf]
                %2525 = vst [vmem:[%s2361 + $0x284] sm:$0xf] %v2524
                %v2526 = vld [vmem:[%s2360 + $0x148] sm:$0xf]
                %2527 = vst [vmem:[%s2361 + $0x288] sm:$0xf] %v2526
                %v2528 = vld [vmem:[%s2360 + $0x14c] sm:$0xf]
                %2529 = vst [vmem:[%s2361 + $0x28c] sm:$0xf] %v2528
                %v2530 = vld [vmem:[%s2360 + $0x150] sm:$0xf]
                %2531 = vst [vmem:[%s2361 + $0x290] sm:$0xf] %v2530
                %v2532 = vld [vmem:[%s2360 + $0x154] sm:$0xf]
                %2533 = vst [vmem:[%s2361 + $0x294] sm:$0xf] %v2532
                %v2534 = vld [vmem:[%s2360 + $0x158] sm:$0xf]
                %2535 = vst [vmem:[%s2361 + $0x298] sm:$0xf] %v2534
                %v2536 = vld [vmem:[%s2360 + $0x15c] sm:$0xf]
                %2537 = vst [vmem:[%s2361 + $0x29c] sm:$0xf] %v2536
                %v2538 = vld [vmem:[%s2360 + $0x160] sm:$0xf]
                %2539 = vst [vmem:[%s2361 + $0x2a0] sm:$0xf] %v2538
                %v2540 = vld [vmem:[%s2360 + $0x164] sm:$0xf]
                %2541 = vst [vmem:[%s2361 + $0x2a4] sm:$0xf] %v2540
                %v2542 = vld [vmem:[%s2360 + $0x168] sm:$0xf]
                %2543 = vst [vmem:[%s2361 + $0x2a8] sm:$0xf] %v2542
                %v2544 = vld [vmem:[%s2360 + $0x16c] sm:$0xf]
                %2545 = vst [vmem:[%s2361 + $0x2ac] sm:$0xf] %v2544
                %v2546 = vld [vmem:[%s2360 + $0x170] sm:$0xf]
                %2547 = vst [vmem:[%s2361 + $0x2b0] sm:$0xf] %v2546
                %v2548 = vld [vmem:[%s2360 + $0x174] sm:$0xf]
                %2549 = vst [vmem:[%s2361 + $0x2b4] sm:$0xf] %v2548
                %v2550 = vld [vmem:[%s2360 + $0x178] sm:$0xf]
                %2551 = vst [vmem:[%s2361 + $0x2b8] sm:$0xf] %v2550
                %v2552 = vld [vmem:[%s2360 + $0x17c] sm:$0xf]
                %2553 = vst [vmem:[%s2361 + $0x2bc] sm:$0xf] %v2552
                %v2554 = vld [vmem:[%s2360 + $0x180] sm:$0xf]
                %2555 = vst [vmem:[%s2361 + $0x300] sm:$0xf] %v2554
                %v2556 = vld [vmem:[%s2360 + $0x184] sm:$0xf]
                %2557 = vst [vmem:[%s2361 + $0x304] sm:$0xf] %v2556
                %v2558 = vld [vmem:[%s2360 + $0x188] sm:$0xf]
                %2559 = vst [vmem:[%s2361 + $0x308] sm:$0xf] %v2558
                %v2560 = vld [vmem:[%s2360 + $0x18c] sm:$0xf]
                %2561 = vst [vmem:[%s2361 + $0x30c] sm:$0xf] %v2560
                %v2562 = vld [vmem:[%s2360 + $0x190] sm:$0xf]
                %2563 = vst [vmem:[%s2361 + $0x310] sm:$0xf] %v2562
                %v2564 = vld [vmem:[%s2360 + $0x194] sm:$0xf]
                %2565 = vst [vmem:[%s2361 + $0x314] sm:$0xf] %v2564
                %v2566 = vld [vmem:[%s2360 + $0x198] sm:$0xf]
                %2567 = vst [vmem:[%s2361 + $0x318] sm:$0xf] %v2566
                %v2568 = vld [vmem:[%s2360 + $0x19c] sm:$0xf]
                %2569 = vst [vmem:[%s2361 + $0x31c] sm:$0xf] %v2568
                %v2570 = vld [vmem:[%s2360 + $0x1a0] sm:$0xf]
                %2571 = vst [vmem:[%s2361 + $0x320] sm:$0xf] %v2570
                %v2572 = vld [vmem:[%s2360 + $0x1a4] sm:$0xf]
                %2573 = vst [vmem:[%s2361 + $0x324] sm:$0xf] %v2572
                %v2574 = vld [vmem:[%s2360 + $0x1a8] sm:$0xf]
                %2575 = vst [vmem:[%s2361 + $0x328] sm:$0xf] %v2574
                %v2576 = vld [vmem:[%s2360 + $0x1ac] sm:$0xf]
                %2577 = vst [vmem:[%s2361 + $0x32c] sm:$0xf] %v2576
                %v2578 = vld [vmem:[%s2360 + $0x1b0] sm:$0xf]
                %2579 = vst [vmem:[%s2361 + $0x330] sm:$0xf] %v2578
                %v2580 = vld [vmem:[%s2360 + $0x1b4] sm:$0xf]
                %2581 = vst [vmem:[%s2361 + $0x334] sm:$0xf] %v2580
                %v2582 = vld [vmem:[%s2360 + $0x1b8] sm:$0xf]
                %2583 = vst [vmem:[%s2361 + $0x338] sm:$0xf] %v2582
                %v2584 = vld [vmem:[%s2360 + $0x1bc] sm:$0xf]
                %2585 = vst [vmem:[%s2361 + $0x33c] sm:$0xf] %v2584
                %v2586 = vld [vmem:[%s2360 + $0x1c0] sm:$0xf]
                %2587 = vst [vmem:[%s2361 + $0x380] sm:$0xf] %v2586
                %v2588 = vld [vmem:[%s2360 + $0x1c4] sm:$0xf]
                %2589 = vst [vmem:[%s2361 + $0x384] sm:$0xf] %v2588
                %v2590 = vld [vmem:[%s2360 + $0x1c8] sm:$0xf]
                %2591 = vst [vmem:[%s2361 + $0x388] sm:$0xf] %v2590
                %v2592 = vld [vmem:[%s2360 + $0x1cc] sm:$0xf]
                %2593 = vst [vmem:[%s2361 + $0x38c] sm:$0xf] %v2592
                %v2594 = vld [vmem:[%s2360 + $0x1d0] sm:$0xf]
                %2595 = vst [vmem:[%s2361 + $0x390] sm:$0xf] %v2594
                %v2596 = vld [vmem:[%s2360 + $0x1d4] sm:$0xf]
                %2597 = vst [vmem:[%s2361 + $0x394] sm:$0xf] %v2596
                %v2598 = vld [vmem:[%s2360 + $0x1d8] sm:$0xf]
                %2599 = vst [vmem:[%s2361 + $0x398] sm:$0xf] %v2598
                %v2600 = vld [vmem:[%s2360 + $0x1dc] sm:$0xf]
                %2601 = vst [vmem:[%s2361 + $0x39c] sm:$0xf] %v2600
                %v2602 = vld [vmem:[%s2360 + $0x1e0] sm:$0xf]
                %2603 = vst [vmem:[%s2361 + $0x3a0] sm:$0xf] %v2602
                %v2604 = vld [vmem:[%s2360 + $0x1e4] sm:$0xf]
                %2605 = vst [vmem:[%s2361 + $0x3a4] sm:$0xf] %v2604
                %v2606 = vld [vmem:[%s2360 + $0x1e8] sm:$0xf]
                %2607 = vst [vmem:[%s2361 + $0x3a8] sm:$0xf] %v2606
                %v2608 = vld [vmem:[%s2360 + $0x1ec] sm:$0xf]
                %2609 = vst [vmem:[%s2361 + $0x3ac] sm:$0xf] %v2608
                %v2610 = vld [vmem:[%s2360 + $0x1f0] sm:$0xf]
                %2611 = vst [vmem:[%s2361 + $0x3b0] sm:$0xf] %v2610
                %v2612 = vld [vmem:[%s2360 + $0x1f4] sm:$0xf]
                %2613 = vst [vmem:[%s2361 + $0x3b4] sm:$0xf] %v2612
                %v2614 = vld [vmem:[%s2360 + $0x1f8] sm:$0xf]
                %2615 = vst [vmem:[%s2361 + $0x3b8] sm:$0xf] %v2614
                %v2616 = vld [vmem:[%s2360 + $0x1fc] sm:$0xf]
                %2617 = vst [vmem:[%s2361 + $0x3bc] sm:$0xf] %v2616
              $region61: #{tpu_custom_call.1} parent=55 // loop_footer
                %s2359 = sadd.s32 1, %s2355
              $region62: #{tpu_custom_call.1} parent=55 // loop_footer_branch
                %2354 = sbr.rel target = $region58
              $region63: #{tpu_custom_call.1} parent=55 // loop_exit
                _
            $region56: #{tpu_custom_call.1} parent=47 // pred_fallthru
              _
          $region48: #{tpu_custom_call.1} parent=43 // pred_fallthru
            _
          %2893 = vnop
        $region44: #{tpu_custom_call.1} parent=31 // pred_fallthru
          _
        // Predicated region
        $region82: #{tpu_custom_call.1} parent=31 // pred_check
          %p2894 = pneg %p151
        $region83: #{tpu_custom_call.1} parent=31 // pred_check_branch
          %2896 = sbr.rel (%p2894) target = $region85
        $region84: #{tpu_custom_call.1} parent=31 // pred_region
          %s2897 = smul.u32 16, %s26
          %s2898 = smul.addr %s25, 256
          %s2899 = sadd.s32 %s2897, %s2898
          %s2900 = smul.addr %s2899, 4
          %s2901 = scalar_lea.vmem %s4, %s2900
          // Predicated region
          $region86: #{tpu_custom_call.1} parent=84 // pred_check
            _
          $region87: #{tpu_custom_call.1} parent=84 // pred_check_branch
            %2903 = sbr.rel (0) target = $region89
          $region88: #{tpu_custom_call.1} parent=84 // pred_region
            // Predicated region
            $region90: #{tpu_custom_call.1} parent=88 // pred_check
              _
            $region91: #{tpu_custom_call.1} parent=88 // pred_check_branch
              %2905 = sbr.rel target = $region93
            $region92: #{tpu_custom_call.1} parent=88 // pred_region
              // Predicated region
              $region105: #{tpu_custom_call.1} parent=92 // pred_check
                _
              $region106: #{tpu_custom_call.1} parent=92 // pred_check_branch
                %3174 = sbr.rel (0) target = $region108
              $region107: #{tpu_custom_call.1} parent=92 // pred_region
                loop: start=0, step=1, limit=1
                $region109: #{tpu_custom_call.1} parent=107 // loop_pre_header
                  _
                $region110: #{tpu_custom_call.1} parent=107 // loop_header
                  %s3176 = sphi 0, %s3180
                  %p3177 = scmp.ge.s32.totalorder %s3176, 1
                  %s3181 = sphi %s2334, %s2334
                  %s3182 = sphi %s2901, %s2901
                $region111: #{tpu_custom_call.1} parent=107 // loop_header_branch
                  %3179 = sbr.rel (%p3177) target = $region115
                $region112: #{tpu_custom_call.1} parent=107 // loop_body
                  _
                $region113: #{tpu_custom_call.1} parent=107 // loop_footer
                  %s3180 = sadd.s32 1, %s3176
                $region114: #{tpu_custom_call.1} parent=107 // loop_footer_branch
                  %3175 = sbr.rel target = $region110
                $region115: #{tpu_custom_call.1} parent=107 // loop_exit
                  _
                loop: start=0, step=1, limit=1
                $region116: #{tpu_custom_call.1} parent=107 // loop_pre_header
                  _
                $region117: #{tpu_custom_call.1} parent=107 // loop_header
                  %s3185 = sphi 0, %s3189
                  %p3186 = scmp.ge.s32.totalorder %s3185, 1
                  %s3190 = sphi %s2334, %s2334
                  %s3191 = sphi %s2901, %s2901
                $region118: #{tpu_custom_call.1} parent=107 // loop_header_branch
                  %3188 = sbr.rel (%p3186) target = $region122
                $region119: #{tpu_custom_call.1} parent=107 // loop_body
                  %v3192 = vld [vmem:[%s3190] sm:$0xf]
                  %3193 = vst [vmem:[%s3191] sm:$0xf] %v3192
                  %v3194 = vld [vmem:[%s3190 + $0x4] sm:$0xf]
                  %3195 = vst [vmem:[%s3191 + $0x4] sm:$0xf] %v3194
                  %v3196 = vld [vmem:[%s3190 + $0x8] sm:$0xf]
                  %3197 = vst [vmem:[%s3191 + $0x8] sm:$0xf] %v3196
                  %v3198 = vld [vmem:[%s3190 + $0xc] sm:$0xf]
                  %3199 = vst [vmem:[%s3191 + $0xc] sm:$0xf] %v3198
                  %v3200 = vld [vmem:[%s3190 + $0x10] sm:$0xf]
                  %3201 = vst [vmem:[%s3191 + $0x10] sm:$0xf] %v3200
                  %v3202 = vld [vmem:[%s3190 + $0x14] sm:$0xf]
                  %3203 = vst [vmem:[%s3191 + $0x14] sm:$0xf] %v3202
                  %v3204 = vld [vmem:[%s3190 + $0x18] sm:$0xf]
                  %3205 = vst [vmem:[%s3191 + $0x18] sm:$0xf] %v3204
                  %v3206 = vld [vmem:[%s3190 + $0x1c] sm:$0xf]
                  %3207 = vst [vmem:[%s3191 + $0x1c] sm:$0xf] %v3206
                  %v3208 = vld [vmem:[%s3190 + $0x20] sm:$0xf]
                  %3209 = vst [vmem:[%s3191 + $0x20] sm:$0xf] %v3208
                  %v3210 = vld [vmem:[%s3190 + $0x24] sm:$0xf]
                  %3211 = vst [vmem:[%s3191 + $0x24] sm:$0xf] %v3210
                  %v3212 = vld [vmem:[%s3190 + $0x28] sm:$0xf]
                  %3213 = vst [vmem:[%s3191 + $0x28] sm:$0xf] %v3212
                  %v3214 = vld [vmem:[%s3190 + $0x2c] sm:$0xf]
                  %3215 = vst [vmem:[%s3191 + $0x2c] sm:$0xf] %v3214
                  %v3216 = vld [vmem:[%s3190 + $0x30] sm:$0xf]
                  %3217 = vst [vmem:[%s3191 + $0x30] sm:$0xf] %v3216
                  %v3218 = vld [vmem:[%s3190 + $0x34] sm:$0xf]
                  %3219 = vst [vmem:[%s3191 + $0x34] sm:$0xf] %v3218
                  %v3220 = vld [vmem:[%s3190 + $0x38] sm:$0xf]
                  %3221 = vst [vmem:[%s3191 + $0x38] sm:$0xf] %v3220
                  %v3222 = vld [vmem:[%s3190 + $0x3c] sm:$0xf]
                  %3223 = vst [vmem:[%s3191 + $0x3c] sm:$0xf] %v3222
                  %v3224 = vld [vmem:[%s3190 + $0x40] sm:$0xf]
                  %3225 = vst [vmem:[%s3191 + $0x80] sm:$0xf] %v3224
                  %v3226 = vld [vmem:[%s3190 + $0x44] sm:$0xf]
                  %3227 = vst [vmem:[%s3191 + $0x84] sm:$0xf] %v3226
                  %v3228 = vld [vmem:[%s3190 + $0x48] sm:$0xf]
                  %3229 = vst [vmem:[%s3191 + $0x88] sm:$0xf] %v3228
                  %v3230 = vld [vmem:[%s3190 + $0x4c] sm:$0xf]
                  %3231 = vst [vmem:[%s3191 + $0x8c] sm:$0xf] %v3230
                  %v3232 = vld [vmem:[%s3190 + $0x50] sm:$0xf]
                  %3233 = vst [vmem:[%s3191 + $0x90] sm:$0xf] %v3232
                  %v3234 = vld [vmem:[%s3190 + $0x54] sm:$0xf]
                  %3235 = vst [vmem:[%s3191 + $0x94] sm:$0xf] %v3234
                  %v3236 = vld [vmem:[%s3190 + $0x58] sm:$0xf]
                  %3237 = vst [vmem:[%s3191 + $0x98] sm:$0xf] %v3236
                  %v3238 = vld [vmem:[%s3190 + $0x5c] sm:$0xf]
                  %3239 = vst [vmem:[%s3191 + $0x9c] sm:$0xf] %v3238
                  %v3240 = vld [vmem:[%s3190 + $0x60] sm:$0xf]
                  %3241 = vst [vmem:[%s3191 + $0xa0] sm:$0xf] %v3240
                  %v3242 = vld [vmem:[%s3190 + $0x64] sm:$0xf]
                  %3243 = vst [vmem:[%s3191 + $0xa4] sm:$0xf] %v3242
                  %v3244 = vld [vmem:[%s3190 + $0x68] sm:$0xf]
                  %3245 = vst [vmem:[%s3191 + $0xa8] sm:$0xf] %v3244
                  %v3246 = vld [vmem:[%s3190 + $0x6c] sm:$0xf]
                  %3247 = vst [vmem:[%s3191 + $0xac] sm:$0xf] %v3246
                  %v3248 = vld [vmem:[%s3190 + $0x70] sm:$0xf]
                  %3249 = vst [vmem:[%s3191 + $0xb0] sm:$0xf] %v3248
                  %v3250 = vld [vmem:[%s3190 + $0x74] sm:$0xf]
                  %3251 = vst [vmem:[%s3191 + $0xb4] sm:$0xf] %v3250
                  %v3252 = vld [vmem:[%s3190 + $0x78] sm:$0xf]
                  %3253 = vst [vmem:[%s3191 + $0xb8] sm:$0xf] %v3252
                  %v3254 = vld [vmem:[%s3190 + $0x7c] sm:$0xf]
                  %3255 = vst [vmem:[%s3191 + $0xbc] sm:$0xf] %v3254
                  %v3256 = vld [vmem:[%s3190 + $0x80] sm:$0xf]
                  %3257 = vst [vmem:[%s3191 + $0x100] sm:$0xf] %v3256
                  %v3258 = vld [vmem:[%s3190 + $0x84] sm:$0xf]
                  %3259 = vst [vmem:[%s3191 + $0x104] sm:$0xf] %v3258
                  %v3260 = vld [vmem:[%s3190 + $0x88] sm:$0xf]
                  %3261 = vst [vmem:[%s3191 + $0x108] sm:$0xf] %v3260
                  %v3262 = vld [vmem:[%s3190 + $0x8c] sm:$0xf]
                  %3263 = vst [vmem:[%s3191 + $0x10c] sm:$0xf] %v3262
                  %v3264 = vld [vmem:[%s3190 + $0x90] sm:$0xf]
                  %3265 = vst [vmem:[%s3191 + $0x110] sm:$0xf] %v3264
                  %v3266 = vld [vmem:[%s3190 + $0x94] sm:$0xf]
                  %3267 = vst [vmem:[%s3191 + $0x114] sm:$0xf] %v3266
                  %v3268 = vld [vmem:[%s3190 + $0x98] sm:$0xf]
                  %3269 = vst [vmem:[%s3191 + $0x118] sm:$0xf] %v3268
                  %v3270 = vld [vmem:[%s3190 + $0x9c] sm:$0xf]
                  %3271 = vst [vmem:[%s3191 + $0x11c] sm:$0xf] %v3270
                  %v3272 = vld [vmem:[%s3190 + $0xa0] sm:$0xf]
                  %3273 = vst [vmem:[%s3191 + $0x120] sm:$0xf] %v3272
                  %v3274 = vld [vmem:[%s3190 + $0xa4] sm:$0xf]
                  %3275 = vst [vmem:[%s3191 + $0x124] sm:$0xf] %v3274
                  %v3276 = vld [vmem:[%s3190 + $0xa8] sm:$0xf]
                  %3277 = vst [vmem:[%s3191 + $0x128] sm:$0xf] %v3276
                  %v3278 = vld [vmem:[%s3190 + $0xac] sm:$0xf]
                  %3279 = vst [vmem:[%s3191 + $0x12c] sm:$0xf] %v3278
                  %v3280 = vld [vmem:[%s3190 + $0xb0] sm:$0xf]
                  %3281 = vst [vmem:[%s3191 + $0x130] sm:$0xf] %v3280
                  %v3282 = vld [vmem:[%s3190 + $0xb4] sm:$0xf]
                  %3283 = vst [vmem:[%s3191 + $0x134] sm:$0xf] %v3282
                  %v3284 = vld [vmem:[%s3190 + $0xb8] sm:$0xf]
                  %3285 = vst [vmem:[%s3191 + $0x138] sm:$0xf] %v3284
                  %v3286 = vld [vmem:[%s3190 + $0xbc] sm:$0xf]
                  %3287 = vst [vmem:[%s3191 + $0x13c] sm:$0xf] %v3286
                  %v3288 = vld [vmem:[%s3190 + $0xc0] sm:$0xf]
                  %3289 = vst [vmem:[%s3191 + $0x180] sm:$0xf] %v3288
                  %v3290 = vld [vmem:[%s3190 + $0xc4] sm:$0xf]
                  %3291 = vst [vmem:[%s3191 + $0x184] sm:$0xf] %v3290
                  %v3292 = vld [vmem:[%s3190 + $0xc8] sm:$0xf]
                  %3293 = vst [vmem:[%s3191 + $0x188] sm:$0xf] %v3292
                  %v3294 = vld [vmem:[%s3190 + $0xcc] sm:$0xf]
                  %3295 = vst [vmem:[%s3191 + $0x18c] sm:$0xf] %v3294
                  %v3296 = vld [vmem:[%s3190 + $0xd0] sm:$0xf]
                  %3297 = vst [vmem:[%s3191 + $0x190] sm:$0xf] %v3296
                  %v3298 = vld [vmem:[%s3190 + $0xd4] sm:$0xf]
                  %3299 = vst [vmem:[%s3191 + $0x194] sm:$0xf] %v3298
                  %v3300 = vld [vmem:[%s3190 + $0xd8] sm:$0xf]
                  %3301 = vst [vmem:[%s3191 + $0x198] sm:$0xf] %v3300
                  %v3302 = vld [vmem:[%s3190 + $0xdc] sm:$0xf]
                  %3303 = vst [vmem:[%s3191 + $0x19c] sm:$0xf] %v3302
                  %v3304 = vld [vmem:[%s3190 + $0xe0] sm:$0xf]
                  %3305 = vst [vmem:[%s3191 + $0x1a0] sm:$0xf] %v3304
                  %v3306 = vld [vmem:[%s3190 + $0xe4] sm:$0xf]
                  %3307 = vst [vmem:[%s3191 + $0x1a4] sm:$0xf] %v3306
                  %v3308 = vld [vmem:[%s3190 + $0xe8] sm:$0xf]
                  %3309 = vst [vmem:[%s3191 + $0x1a8] sm:$0xf] %v3308
                  %v3310 = vld [vmem:[%s3190 + $0xec] sm:$0xf]
                  %3311 = vst [vmem:[%s3191 + $0x1ac] sm:$0xf] %v3310
                  %v3312 = vld [vmem:[%s3190 + $0xf0] sm:$0xf]
                  %3313 = vst [vmem:[%s3191 + $0x1b0] sm:$0xf] %v3312
                  %v3314 = vld [vmem:[%s3190 + $0xf4] sm:$0xf]
                  %3315 = vst [vmem:[%s3191 + $0x1b4] sm:$0xf] %v3314
                  %v3316 = vld [vmem:[%s3190 + $0xf8] sm:$0xf]
                  %3317 = vst [vmem:[%s3191 + $0x1b8] sm:$0xf] %v3316
                  %v3318 = vld [vmem:[%s3190 + $0xfc] sm:$0xf]
                  %3319 = vst [vmem:[%s3191 + $0x1bc] sm:$0xf] %v3318
                  %v3320 = vld [vmem:[%s3190 + $0x100] sm:$0xf]
                  %3321 = vst [vmem:[%s3191 + $0x200] sm:$0xf] %v3320
                  %v3322 = vld [vmem:[%s3190 + $0x104] sm:$0xf]
                  %3323 = vst [vmem:[%s3191 + $0x204] sm:$0xf] %v3322
                  %v3324 = vld [vmem:[%s3190 + $0x108] sm:$0xf]
                  %3325 = vst [vmem:[%s3191 + $0x208] sm:$0xf] %v3324
                  %v3326 = vld [vmem:[%s3190 + $0x10c] sm:$0xf]
                  %3327 = vst [vmem:[%s3191 + $0x20c] sm:$0xf] %v3326
                  %v3328 = vld [vmem:[%s3190 + $0x110] sm:$0xf]
                  %3329 = vst [vmem:[%s3191 + $0x210] sm:$0xf] %v3328
                  %v3330 = vld [vmem:[%s3190 + $0x114] sm:$0xf]
                  %3331 = vst [vmem:[%s3191 + $0x214] sm:$0xf] %v3330
                  %v3332 = vld [vmem:[%s3190 + $0x118] sm:$0xf]
                  %3333 = vst [vmem:[%s3191 + $0x218] sm:$0xf] %v3332
                  %v3334 = vld [vmem:[%s3190 + $0x11c] sm:$0xf]
                  %3335 = vst [vmem:[%s3191 + $0x21c] sm:$0xf] %v3334
                  %v3336 = vld [vmem:[%s3190 + $0x120] sm:$0xf]
                  %3337 = vst [vmem:[%s3191 + $0x220] sm:$0xf] %v3336
                  %v3338 = vld [vmem:[%s3190 + $0x124] sm:$0xf]
                  %3339 = vst [vmem:[%s3191 + $0x224] sm:$0xf] %v3338
                  %v3340 = vld [vmem:[%s3190 + $0x128] sm:$0xf]
                  %3341 = vst [vmem:[%s3191 + $0x228] sm:$0xf] %v3340
                  %v3342 = vld [vmem:[%s3190 + $0x12c] sm:$0xf]
                  %3343 = vst [vmem:[%s3191 + $0x22c] sm:$0xf] %v3342
                  %v3344 = vld [vmem:[%s3190 + $0x130] sm:$0xf]
                  %3345 = vst [vmem:[%s3191 + $0x230] sm:$0xf] %v3344
                  %v3346 = vld [vmem:[%s3190 + $0x134] sm:$0xf]
                  %3347 = vst [vmem:[%s3191 + $0x234] sm:$0xf] %v3346
                  %v3348 = vld [vmem:[%s3190 + $0x138] sm:$0xf]
                  %3349 = vst [vmem:[%s3191 + $0x238] sm:$0xf] %v3348
                  %v3350 = vld [vmem:[%s3190 + $0x13c] sm:$0xf]
                  %3351 = vst [vmem:[%s3191 + $0x23c] sm:$0xf] %v3350
                  %v3352 = vld [vmem:[%s3190 + $0x140] sm:$0xf]
                  %3353 = vst [vmem:[%s3191 + $0x280] sm:$0xf] %v3352
                  %v3354 = vld [vmem:[%s3190 + $0x144] sm:$0xf]
                  %3355 = vst [vmem:[%s3191 + $0x284] sm:$0xf] %v3354
                  %v3356 = vld [vmem:[%s3190 + $0x148] sm:$0xf]
                  %3357 = vst [vmem:[%s3191 + $0x288] sm:$0xf] %v3356
                  %v3358 = vld [vmem:[%s3190 + $0x14c] sm:$0xf]
                  %3359 = vst [vmem:[%s3191 + $0x28c] sm:$0xf] %v3358
                  %v3360 = vld [vmem:[%s3190 + $0x150] sm:$0xf]
                  %3361 = vst [vmem:[%s3191 + $0x290] sm:$0xf] %v3360
                  %v3362 = vld [vmem:[%s3190 + $0x154] sm:$0xf]
                  %3363 = vst [vmem:[%s3191 + $0x294] sm:$0xf] %v3362
                  %v3364 = vld [vmem:[%s3190 + $0x158] sm:$0xf]
                  %3365 = vst [vmem:[%s3191 + $0x298] sm:$0xf] %v3364
                  %v3366 = vld [vmem:[%s3190 + $0x15c] sm:$0xf]
                  %3367 = vst [vmem:[%s3191 + $0x29c] sm:$0xf] %v3366
                  %v3368 = vld [vmem:[%s3190 + $0x160] sm:$0xf]
                  %3369 = vst [vmem:[%s3191 + $0x2a0] sm:$0xf] %v3368
                  %v3370 = vld [vmem:[%s3190 + $0x164] sm:$0xf]
                  %3371 = vst [vmem:[%s3191 + $0x2a4] sm:$0xf] %v3370
                  %v3372 = vld [vmem:[%s3190 + $0x168] sm:$0xf]
                  %3373 = vst [vmem:[%s3191 + $0x2a8] sm:$0xf] %v3372
                  %v3374 = vld [vmem:[%s3190 + $0x16c] sm:$0xf]
                  %3375 = vst [vmem:[%s3191 + $0x2ac] sm:$0xf] %v3374
                  %v3376 = vld [vmem:[%s3190 + $0x170] sm:$0xf]
                  %3377 = vst [vmem:[%s3191 + $0x2b0] sm:$0xf] %v3376
                  %v3378 = vld [vmem:[%s3190 + $0x174] sm:$0xf]
                  %3379 = vst [vmem:[%s3191 + $0x2b4] sm:$0xf] %v3378
                  %v3380 = vld [vmem:[%s3190 + $0x178] sm:$0xf]
                  %3381 = vst [vmem:[%s3191 + $0x2b8] sm:$0xf] %v3380
                  %v3382 = vld [vmem:[%s3190 + $0x17c] sm:$0xf]
                  %3383 = vst [vmem:[%s3191 + $0x2bc] sm:$0xf] %v3382
                  %v3384 = vld [vmem:[%s3190 + $0x180] sm:$0xf]
                  %3385 = vst [vmem:[%s3191 + $0x300] sm:$0xf] %v3384
                  %v3386 = vld [vmem:[%s3190 + $0x184] sm:$0xf]
                  %3387 = vst [vmem:[%s3191 + $0x304] sm:$0xf] %v3386
                  %v3388 = vld [vmem:[%s3190 + $0x188] sm:$0xf]
                  %3389 = vst [vmem:[%s3191 + $0x308] sm:$0xf] %v3388
                  %v3390 = vld [vmem:[%s3190 + $0x18c] sm:$0xf]
                  %3391 = vst [vmem:[%s3191 + $0x30c] sm:$0xf] %v3390
                  %v3392 = vld [vmem:[%s3190 + $0x190] sm:$0xf]
                  %3393 = vst [vmem:[%s3191 + $0x310] sm:$0xf] %v3392
                  %v3394 = vld [vmem:[%s3190 + $0x194] sm:$0xf]
                  %3395 = vst [vmem:[%s3191 + $0x314] sm:$0xf] %v3394
                  %v3396 = vld [vmem:[%s3190 + $0x198] sm:$0xf]
                  %3397 = vst [vmem:[%s3191 + $0x318] sm:$0xf] %v3396
                  %v3398 = vld [vmem:[%s3190 + $0x19c] sm:$0xf]
                  %3399 = vst [vmem:[%s3191 + $0x31c] sm:$0xf] %v3398
                  %v3400 = vld [vmem:[%s3190 + $0x1a0] sm:$0xf]
                  %3401 = vst [vmem:[%s3191 + $0x320] sm:$0xf] %v3400
                  %v3402 = vld [vmem:[%s3190 + $0x1a4] sm:$0xf]
                  %3403 = vst [vmem:[%s3191 + $0x324] sm:$0xf] %v3402
                  %v3404 = vld [vmem:[%s3190 + $0x1a8] sm:$0xf]
                  %3405 = vst [vmem:[%s3191 + $0x328] sm:$0xf] %v3404
                  %v3406 = vld [vmem:[%s3190 + $0x1ac] sm:$0xf]
                  %3407 = vst [vmem:[%s3191 + $0x32c] sm:$0xf] %v3406
                  %v3408 = vld [vmem:[%s3190 + $0x1b0] sm:$0xf]
                  %3409 = vst [vmem:[%s3191 + $0x330] sm:$0xf] %v3408
                  %v3410 = vld [vmem:[%s3190 + $0x1b4] sm:$0xf]
                  %3411 = vst [vmem:[%s3191 + $0x334] sm:$0xf] %v3410
                  %v3412 = vld [vmem:[%s3190 + $0x1b8] sm:$0xf]
                  %3413 = vst [vmem:[%s3191 + $0x338] sm:$0xf] %v3412
                  %v3414 = vld [vmem:[%s3190 + $0x1bc] sm:$0xf]
                  %3415 = vst [vmem:[%s3191 + $0x33c] sm:$0xf] %v3414
                  %v3416 = vld [vmem:[%s3190 + $0x1c0] sm:$0xf]
                  %3417 = vst [vmem:[%s3191 + $0x380] sm:$0xf] %v3416
                  %v3418 = vld [vmem:[%s3190 + $0x1c4] sm:$0xf]
                  %3419 = vst [vmem:[%s3191 + $0x384] sm:$0xf] %v3418
                  %v3420 = vld [vmem:[%s3190 + $0x1c8] sm:$0xf]
                  %3421 = vst [vmem:[%s3191 + $0x388] sm:$0xf] %v3420
                  %v3422 = vld [vmem:[%s3190 + $0x1cc] sm:$0xf]
                  %3423 = vst [vmem:[%s3191 + $0x38c] sm:$0xf] %v3422
                  %v3424 = vld [vmem:[%s3190 + $0x1d0] sm:$0xf]
                  %3425 = vst [vmem:[%s3191 + $0x390] sm:$0xf] %v3424
                  %v3426 = vld [vmem:[%s3190 + $0x1d4] sm:$0xf]
                  %3427 = vst [vmem:[%s3191 + $0x394] sm:$0xf] %v3426
                  %v3428 = vld [vmem:[%s3190 + $0x1d8] sm:$0xf]
                  %3429 = vst [vmem:[%s3191 + $0x398] sm:$0xf] %v3428
                  %v3430 = vld [vmem:[%s3190 + $0x1dc] sm:$0xf]
                  %3431 = vst [vmem:[%s3191 + $0x39c] sm:$0xf] %v3430
                  %v3432 = vld [vmem:[%s3190 + $0x1e0] sm:$0xf]
                  %3433 = vst [vmem:[%s3191 + $0x3a0] sm:$0xf] %v3432
                  %v3434 = vld [vmem:[%s3190 + $0x1e4] sm:$0xf]
                  %3435 = vst [vmem:[%s3191 + $0x3a4] sm:$0xf] %v3434
                  %v3436 = vld [vmem:[%s3190 + $0x1e8] sm:$0xf]
                  %3437 = vst [vmem:[%s3191 + $0x3a8] sm:$0xf] %v3436
                  %v3438 = vld [vmem:[%s3190 + $0x1ec] sm:$0xf]
                  %3439 = vst [vmem:[%s3191 + $0x3ac] sm:$0xf] %v3438
                  %v3440 = vld [vmem:[%s3190 + $0x1f0] sm:$0xf]
                  %3441 = vst [vmem:[%s3191 + $0x3b0] sm:$0xf] %v3440
                  %v3442 = vld [vmem:[%s3190 + $0x1f4] sm:$0xf]
                  %3443 = vst [vmem:[%s3191 + $0x3b4] sm:$0xf] %v3442
                  %v3444 = vld [vmem:[%s3190 + $0x1f8] sm:$0xf]
                  %3445 = vst [vmem:[%s3191 + $0x3b8] sm:$0xf] %v3444
                  %v3446 = vld [vmem:[%s3190 + $0x1fc] sm:$0xf]
                  %3447 = vst [vmem:[%s3191 + $0x3bc] sm:$0xf] %v3446
                $region120: #{tpu_custom_call.1} parent=107 // loop_footer
                  %s3189 = sadd.s32 1, %s3185
                $region121: #{tpu_custom_call.1} parent=107 // loop_footer_branch
                  %3184 = sbr.rel target = $region117
                $region122: #{tpu_custom_call.1} parent=107 // loop_exit
                  _
              $region108: #{tpu_custom_call.1} parent=92 // pred_fallthru
                _
            $region93: #{tpu_custom_call.1} parent=88 // pred_fallthru
              _
            // Predicated region
            $region94: #{tpu_custom_call.1} parent=88 // pred_check
              _
            $region95: #{tpu_custom_call.1} parent=88 // pred_check_branch
              %2907 = sbr.rel (0) target = $region97
            $region96: #{tpu_custom_call.1} parent=88 // pred_region
              loop: start=0, step=1, limit=1
              $region98: #{tpu_custom_call.1} parent=96 // loop_pre_header
                _
              $region99: #{tpu_custom_call.1} parent=96 // loop_header
                %s2910 = sphi 0, %s2914
                %p2911 = scmp.ge.s32.totalorder %s2910, 1
                %s2915 = sphi %s2334, %s2334
                %s2916 = sphi %s2901, %s2901
              $region100: #{tpu_custom_call.1} parent=96 // loop_header_branch
                %2913 = sbr.rel (%p2911) target = $region104
              $region101: #{tpu_custom_call.1} parent=96 // loop_body
                %v2917 = vld [vmem:[%s2915] sm:$0xf]
                %2918 = vst [vmem:[%s2916] sm:$0xf] %v2917
                %v2919 = vld [vmem:[%s2915 + $0x4] sm:$0xf]
                %2920 = vst [vmem:[%s2916 + $0x4] sm:$0xf] %v2919
                %v2921 = vld [vmem:[%s2915 + $0x8] sm:$0xf]
                %2922 = vst [vmem:[%s2916 + $0x8] sm:$0xf] %v2921
                %v2923 = vld [vmem:[%s2915 + $0xc] sm:$0xf]
                %2924 = vst [vmem:[%s2916 + $0xc] sm:$0xf] %v2923
                %v2925 = vld [vmem:[%s2915 + $0x10] sm:$0xf]
                %2926 = vst [vmem:[%s2916 + $0x10] sm:$0xf] %v2925
                %v2927 = vld [vmem:[%s2915 + $0x14] sm:$0xf]
                %2928 = vst [vmem:[%s2916 + $0x14] sm:$0xf] %v2927
                %v2929 = vld [vmem:[%s2915 + $0x18] sm:$0xf]
                %2930 = vst [vmem:[%s2916 + $0x18] sm:$0xf] %v2929
                %v2931 = vld [vmem:[%s2915 + $0x1c] sm:$0xf]
                %2932 = vst [vmem:[%s2916 + $0x1c] sm:$0xf] %v2931
                %v2933 = vld [vmem:[%s2915 + $0x20] sm:$0xf]
                %2934 = vst [vmem:[%s2916 + $0x20] sm:$0xf] %v2933
                %v2935 = vld [vmem:[%s2915 + $0x24] sm:$0xf]
                %2936 = vst [vmem:[%s2916 + $0x24] sm:$0xf] %v2935
                %v2937 = vld [vmem:[%s2915 + $0x28] sm:$0xf]
                %2938 = vst [vmem:[%s2916 + $0x28] sm:$0xf] %v2937
                %v2939 = vld [vmem:[%s2915 + $0x2c] sm:$0xf]
                %2940 = vst [vmem:[%s2916 + $0x2c] sm:$0xf] %v2939
                %v2941 = vld [vmem:[%s2915 + $0x30] sm:$0xf]
                %2942 = vst [vmem:[%s2916 + $0x30] sm:$0xf] %v2941
                %v2943 = vld [vmem:[%s2915 + $0x34] sm:$0xf]
                %2944 = vst [vmem:[%s2916 + $0x34] sm:$0xf] %v2943
                %v2945 = vld [vmem:[%s2915 + $0x38] sm:$0xf]
                %2946 = vst [vmem:[%s2916 + $0x38] sm:$0xf] %v2945
                %v2947 = vld [vmem:[%s2915 + $0x3c] sm:$0xf]
                %2948 = vst [vmem:[%s2916 + $0x3c] sm:$0xf] %v2947
                %v2949 = vld [vmem:[%s2915 + $0x40] sm:$0xf]
                %2950 = vst [vmem:[%s2916 + $0x80] sm:$0xf] %v2949
                %v2951 = vld [vmem:[%s2915 + $0x44] sm:$0xf]
                %2952 = vst [vmem:[%s2916 + $0x84] sm:$0xf] %v2951
                %v2953 = vld [vmem:[%s2915 + $0x48] sm:$0xf]
                %2954 = vst [vmem:[%s2916 + $0x88] sm:$0xf] %v2953
                %v2955 = vld [vmem:[%s2915 + $0x4c] sm:$0xf]
                %2956 = vst [vmem:[%s2916 + $0x8c] sm:$0xf] %v2955
                %v2957 = vld [vmem:[%s2915 + $0x50] sm:$0xf]
                %2958 = vst [vmem:[%s2916 + $0x90] sm:$0xf] %v2957
                %v2959 = vld [vmem:[%s2915 + $0x54] sm:$0xf]
                %2960 = vst [vmem:[%s2916 + $0x94] sm:$0xf] %v2959
                %v2961 = vld [vmem:[%s2915 + $0x58] sm:$0xf]
                %2962 = vst [vmem:[%s2916 + $0x98] sm:$0xf] %v2961
                %v2963 = vld [vmem:[%s2915 + $0x5c] sm:$0xf]
                %2964 = vst [vmem:[%s2916 + $0x9c] sm:$0xf] %v2963
                %v2965 = vld [vmem:[%s2915 + $0x60] sm:$0xf]
                %2966 = vst [vmem:[%s2916 + $0xa0] sm:$0xf] %v2965
                %v2967 = vld [vmem:[%s2915 + $0x64] sm:$0xf]
                %2968 = vst [vmem:[%s2916 + $0xa4] sm:$0xf] %v2967
                %v2969 = vld [vmem:[%s2915 + $0x68] sm:$0xf]
                %2970 = vst [vmem:[%s2916 + $0xa8] sm:$0xf] %v2969
                %v2971 = vld [vmem:[%s2915 + $0x6c] sm:$0xf]
                %2972 = vst [vmem:[%s2916 + $0xac] sm:$0xf] %v2971
                %v2973 = vld [vmem:[%s2915 + $0x70] sm:$0xf]
                %2974 = vst [vmem:[%s2916 + $0xb0] sm:$0xf] %v2973
                %v2975 = vld [vmem:[%s2915 + $0x74] sm:$0xf]
                %2976 = vst [vmem:[%s2916 + $0xb4] sm:$0xf] %v2975
                %v2977 = vld [vmem:[%s2915 + $0x78] sm:$0xf]
                %2978 = vst [vmem:[%s2916 + $0xb8] sm:$0xf] %v2977
                %v2979 = vld [vmem:[%s2915 + $0x7c] sm:$0xf]
                %2980 = vst [vmem:[%s2916 + $0xbc] sm:$0xf] %v2979
                %v2981 = vld [vmem:[%s2915 + $0x80] sm:$0xf]
                %2982 = vst [vmem:[%s2916 + $0x100] sm:$0xf] %v2981
                %v2983 = vld [vmem:[%s2915 + $0x84] sm:$0xf]
                %2984 = vst [vmem:[%s2916 + $0x104] sm:$0xf] %v2983
                %v2985 = vld [vmem:[%s2915 + $0x88] sm:$0xf]
                %2986 = vst [vmem:[%s2916 + $0x108] sm:$0xf] %v2985
                %v2987 = vld [vmem:[%s2915 + $0x8c] sm:$0xf]
                %2988 = vst [vmem:[%s2916 + $0x10c] sm:$0xf] %v2987
                %v2989 = vld [vmem:[%s2915 + $0x90] sm:$0xf]
                %2990 = vst [vmem:[%s2916 + $0x110] sm:$0xf] %v2989
                %v2991 = vld [vmem:[%s2915 + $0x94] sm:$0xf]
                %2992 = vst [vmem:[%s2916 + $0x114] sm:$0xf] %v2991
                %v2993 = vld [vmem:[%s2915 + $0x98] sm:$0xf]
                %2994 = vst [vmem:[%s2916 + $0x118] sm:$0xf] %v2993
                %v2995 = vld [vmem:[%s2915 + $0x9c] sm:$0xf]
                %2996 = vst [vmem:[%s2916 + $0x11c] sm:$0xf] %v2995
                %v2997 = vld [vmem:[%s2915 + $0xa0] sm:$0xf]
                %2998 = vst [vmem:[%s2916 + $0x120] sm:$0xf] %v2997
                %v2999 = vld [vmem:[%s2915 + $0xa4] sm:$0xf]
                %3000 = vst [vmem:[%s2916 + $0x124] sm:$0xf] %v2999
                %v3001 = vld [vmem:[%s2915 + $0xa8] sm:$0xf]
                %3002 = vst [vmem:[%s2916 + $0x128] sm:$0xf] %v3001
                %v3003 = vld [vmem:[%s2915 + $0xac] sm:$0xf]
                %3004 = vst [vmem:[%s2916 + $0x12c] sm:$0xf] %v3003
                %v3005 = vld [vmem:[%s2915 + $0xb0] sm:$0xf]
                %3006 = vst [vmem:[%s2916 + $0x130] sm:$0xf] %v3005
                %v3007 = vld [vmem:[%s2915 + $0xb4] sm:$0xf]
                %3008 = vst [vmem:[%s2916 + $0x134] sm:$0xf] %v3007
                %v3009 = vld [vmem:[%s2915 + $0xb8] sm:$0xf]
                %3010 = vst [vmem:[%s2916 + $0x138] sm:$0xf] %v3009
                %v3011 = vld [vmem:[%s2915 + $0xbc] sm:$0xf]
                %3012 = vst [vmem:[%s2916 + $0x13c] sm:$0xf] %v3011
                %v3013 = vld [vmem:[%s2915 + $0xc0] sm:$0xf]
                %3014 = vst [vmem:[%s2916 + $0x180] sm:$0xf] %v3013
                %v3015 = vld [vmem:[%s2915 + $0xc4] sm:$0xf]
                %3016 = vst [vmem:[%s2916 + $0x184] sm:$0xf] %v3015
                %v3017 = vld [vmem:[%s2915 + $0xc8] sm:$0xf]
                %3018 = vst [vmem:[%s2916 + $0x188] sm:$0xf] %v3017
                %v3019 = vld [vmem:[%s2915 + $0xcc] sm:$0xf]
                %3020 = vst [vmem:[%s2916 + $0x18c] sm:$0xf] %v3019
                %v3021 = vld [vmem:[%s2915 + $0xd0] sm:$0xf]
                %3022 = vst [vmem:[%s2916 + $0x190] sm:$0xf] %v3021
                %v3023 = vld [vmem:[%s2915 + $0xd4] sm:$0xf]
                %3024 = vst [vmem:[%s2916 + $0x194] sm:$0xf] %v3023
                %v3025 = vld [vmem:[%s2915 + $0xd8] sm:$0xf]
                %3026 = vst [vmem:[%s2916 + $0x198] sm:$0xf] %v3025
                %v3027 = vld [vmem:[%s2915 + $0xdc] sm:$0xf]
                %3028 = vst [vmem:[%s2916 + $0x19c] sm:$0xf] %v3027
                %v3029 = vld [vmem:[%s2915 + $0xe0] sm:$0xf]
                %3030 = vst [vmem:[%s2916 + $0x1a0] sm:$0xf] %v3029
                %v3031 = vld [vmem:[%s2915 + $0xe4] sm:$0xf]
                %3032 = vst [vmem:[%s2916 + $0x1a4] sm:$0xf] %v3031
                %v3033 = vld [vmem:[%s2915 + $0xe8] sm:$0xf]
                %3034 = vst [vmem:[%s2916 + $0x1a8] sm:$0xf] %v3033
                %v3035 = vld [vmem:[%s2915 + $0xec] sm:$0xf]
                %3036 = vst [vmem:[%s2916 + $0x1ac] sm:$0xf] %v3035
                %v3037 = vld [vmem:[%s2915 + $0xf0] sm:$0xf]
                %3038 = vst [vmem:[%s2916 + $0x1b0] sm:$0xf] %v3037
                %v3039 = vld [vmem:[%s2915 + $0xf4] sm:$0xf]
                %3040 = vst [vmem:[%s2916 + $0x1b4] sm:$0xf] %v3039
                %v3041 = vld [vmem:[%s2915 + $0xf8] sm:$0xf]
                %3042 = vst [vmem:[%s2916 + $0x1b8] sm:$0xf] %v3041
                %v3043 = vld [vmem:[%s2915 + $0xfc] sm:$0xf]
                %3044 = vst [vmem:[%s2916 + $0x1bc] sm:$0xf] %v3043
                %v3045 = vld [vmem:[%s2915 + $0x100] sm:$0xf]
                %3046 = vst [vmem:[%s2916 + $0x200] sm:$0xf] %v3045
                %v3047 = vld [vmem:[%s2915 + $0x104] sm:$0xf]
                %3048 = vst [vmem:[%s2916 + $0x204] sm:$0xf] %v3047
                %v3049 = vld [vmem:[%s2915 + $0x108] sm:$0xf]
                %3050 = vst [vmem:[%s2916 + $0x208] sm:$0xf] %v3049
                %v3051 = vld [vmem:[%s2915 + $0x10c] sm:$0xf]
                %3052 = vst [vmem:[%s2916 + $0x20c] sm:$0xf] %v3051
                %v3053 = vld [vmem:[%s2915 + $0x110] sm:$0xf]
                %3054 = vst [vmem:[%s2916 + $0x210] sm:$0xf] %v3053
                %v3055 = vld [vmem:[%s2915 + $0x114] sm:$0xf]
                %3056 = vst [vmem:[%s2916 + $0x214] sm:$0xf] %v3055
                %v3057 = vld [vmem:[%s2915 + $0x118] sm:$0xf]
                %3058 = vst [vmem:[%s2916 + $0x218] sm:$0xf] %v3057
                %v3059 = vld [vmem:[%s2915 + $0x11c] sm:$0xf]
                %3060 = vst [vmem:[%s2916 + $0x21c] sm:$0xf] %v3059
                %v3061 = vld [vmem:[%s2915 + $0x120] sm:$0xf]
                %3062 = vst [vmem:[%s2916 + $0x220] sm:$0xf] %v3061
                %v3063 = vld [vmem:[%s2915 + $0x124] sm:$0xf]
                %3064 = vst [vmem:[%s2916 + $0x224] sm:$0xf] %v3063
                %v3065 = vld [vmem:[%s2915 + $0x128] sm:$0xf]
                %3066 = vst [vmem:[%s2916 + $0x228] sm:$0xf] %v3065
                %v3067 = vld [vmem:[%s2915 + $0x12c] sm:$0xf]
                %3068 = vst [vmem:[%s2916 + $0x22c] sm:$0xf] %v3067
                %v3069 = vld [vmem:[%s2915 + $0x130] sm:$0xf]
                %3070 = vst [vmem:[%s2916 + $0x230] sm:$0xf] %v3069
                %v3071 = vld [vmem:[%s2915 + $0x134] sm:$0xf]
                %3072 = vst [vmem:[%s2916 + $0x234] sm:$0xf] %v3071
                %v3073 = vld [vmem:[%s2915 + $0x138] sm:$0xf]
                %3074 = vst [vmem:[%s2916 + $0x238] sm:$0xf] %v3073
                %v3075 = vld [vmem:[%s2915 + $0x13c] sm:$0xf]
                %3076 = vst [vmem:[%s2916 + $0x23c] sm:$0xf] %v3075
                %v3077 = vld [vmem:[%s2915 + $0x140] sm:$0xf]
                %3078 = vst [vmem:[%s2916 + $0x280] sm:$0xf] %v3077
                %v3079 = vld [vmem:[%s2915 + $0x144] sm:$0xf]
                %3080 = vst [vmem:[%s2916 + $0x284] sm:$0xf] %v3079
                %v3081 = vld [vmem:[%s2915 + $0x148] sm:$0xf]
                %3082 = vst [vmem:[%s2916 + $0x288] sm:$0xf] %v3081
                %v3083 = vld [vmem:[%s2915 + $0x14c] sm:$0xf]
                %3084 = vst [vmem:[%s2916 + $0x28c] sm:$0xf] %v3083
                %v3085 = vld [vmem:[%s2915 + $0x150] sm:$0xf]
                %3086 = vst [vmem:[%s2916 + $0x290] sm:$0xf] %v3085
                %v3087 = vld [vmem:[%s2915 + $0x154] sm:$0xf]
                %3088 = vst [vmem:[%s2916 + $0x294] sm:$0xf] %v3087
                %v3089 = vld [vmem:[%s2915 + $0x158] sm:$0xf]
                %3090 = vst [vmem:[%s2916 + $0x298] sm:$0xf] %v3089
                %v3091 = vld [vmem:[%s2915 + $0x15c] sm:$0xf]
                %3092 = vst [vmem:[%s2916 + $0x29c] sm:$0xf] %v3091
                %v3093 = vld [vmem:[%s2915 + $0x160] sm:$0xf]
                %3094 = vst [vmem:[%s2916 + $0x2a0] sm:$0xf] %v3093
                %v3095 = vld [vmem:[%s2915 + $0x164] sm:$0xf]
                %3096 = vst [vmem:[%s2916 + $0x2a4] sm:$0xf] %v3095
                %v3097 = vld [vmem:[%s2915 + $0x168] sm:$0xf]
                %3098 = vst [vmem:[%s2916 + $0x2a8] sm:$0xf] %v3097
                %v3099 = vld [vmem:[%s2915 + $0x16c] sm:$0xf]
                %3100 = vst [vmem:[%s2916 + $0x2ac] sm:$0xf] %v3099
                %v3101 = vld [vmem:[%s2915 + $0x170] sm:$0xf]
                %3102 = vst [vmem:[%s2916 + $0x2b0] sm:$0xf] %v3101
                %v3103 = vld [vmem:[%s2915 + $0x174] sm:$0xf]
                %3104 = vst [vmem:[%s2916 + $0x2b4] sm:$0xf] %v3103
                %v3105 = vld [vmem:[%s2915 + $0x178] sm:$0xf]
                %3106 = vst [vmem:[%s2916 + $0x2b8] sm:$0xf] %v3105
                %v3107 = vld [vmem:[%s2915 + $0x17c] sm:$0xf]
                %3108 = vst [vmem:[%s2916 + $0x2bc] sm:$0xf] %v3107
                %v3109 = vld [vmem:[%s2915 + $0x180] sm:$0xf]
                %3110 = vst [vmem:[%s2916 + $0x300] sm:$0xf] %v3109
                %v3111 = vld [vmem:[%s2915 + $0x184] sm:$0xf]
                %3112 = vst [vmem:[%s2916 + $0x304] sm:$0xf] %v3111
                %v3113 = vld [vmem:[%s2915 + $0x188] sm:$0xf]
                %3114 = vst [vmem:[%s2916 + $0x308] sm:$0xf] %v3113
                %v3115 = vld [vmem:[%s2915 + $0x18c] sm:$0xf]
                %3116 = vst [vmem:[%s2916 + $0x30c] sm:$0xf] %v3115
                %v3117 = vld [vmem:[%s2915 + $0x190] sm:$0xf]
                %3118 = vst [vmem:[%s2916 + $0x310] sm:$0xf] %v3117
                %v3119 = vld [vmem:[%s2915 + $0x194] sm:$0xf]
                %3120 = vst [vmem:[%s2916 + $0x314] sm:$0xf] %v3119
                %v3121 = vld [vmem:[%s2915 + $0x198] sm:$0xf]
                %3122 = vst [vmem:[%s2916 + $0x318] sm:$0xf] %v3121
                %v3123 = vld [vmem:[%s2915 + $0x19c] sm:$0xf]
                %3124 = vst [vmem:[%s2916 + $0x31c] sm:$0xf] %v3123
                %v3125 = vld [vmem:[%s2915 + $0x1a0] sm:$0xf]
                %3126 = vst [vmem:[%s2916 + $0x320] sm:$0xf] %v3125
                %v3127 = vld [vmem:[%s2915 + $0x1a4] sm:$0xf]
                %3128 = vst [vmem:[%s2916 + $0x324] sm:$0xf] %v3127
                %v3129 = vld [vmem:[%s2915 + $0x1a8] sm:$0xf]
                %3130 = vst [vmem:[%s2916 + $0x328] sm:$0xf] %v3129
                %v3131 = vld [vmem:[%s2915 + $0x1ac] sm:$0xf]
                %3132 = vst [vmem:[%s2916 + $0x32c] sm:$0xf] %v3131
                %v3133 = vld [vmem:[%s2915 + $0x1b0] sm:$0xf]
                %3134 = vst [vmem:[%s2916 + $0x330] sm:$0xf] %v3133
                %v3135 = vld [vmem:[%s2915 + $0x1b4] sm:$0xf]
                %3136 = vst [vmem:[%s2916 + $0x334] sm:$0xf] %v3135
                %v3137 = vld [vmem:[%s2915 + $0x1b8] sm:$0xf]
                %3138 = vst [vmem:[%s2916 + $0x338] sm:$0xf] %v3137
                %v3139 = vld [vmem:[%s2915 + $0x1bc] sm:$0xf]
                %3140 = vst [vmem:[%s2916 + $0x33c] sm:$0xf] %v3139
                %v3141 = vld [vmem:[%s2915 + $0x1c0] sm:$0xf]
                %3142 = vst [vmem:[%s2916 + $0x380] sm:$0xf] %v3141
                %v3143 = vld [vmem:[%s2915 + $0x1c4] sm:$0xf]
                %3144 = vst [vmem:[%s2916 + $0x384] sm:$0xf] %v3143
                %v3145 = vld [vmem:[%s2915 + $0x1c8] sm:$0xf]
                %3146 = vst [vmem:[%s2916 + $0x388] sm:$0xf] %v3145
                %v3147 = vld [vmem:[%s2915 + $0x1cc] sm:$0xf]
                %3148 = vst [vmem:[%s2916 + $0x38c] sm:$0xf] %v3147
                %v3149 = vld [vmem:[%s2915 + $0x1d0] sm:$0xf]
                %3150 = vst [vmem:[%s2916 + $0x390] sm:$0xf] %v3149
                %v3151 = vld [vmem:[%s2915 + $0x1d4] sm:$0xf]
                %3152 = vst [vmem:[%s2916 + $0x394] sm:$0xf] %v3151
                %v3153 = vld [vmem:[%s2915 + $0x1d8] sm:$0xf]
                %3154 = vst [vmem:[%s2916 + $0x398] sm:$0xf] %v3153
                %v3155 = vld [vmem:[%s2915 + $0x1dc] sm:$0xf]
                %3156 = vst [vmem:[%s2916 + $0x39c] sm:$0xf] %v3155
                %v3157 = vld [vmem:[%s2915 + $0x1e0] sm:$0xf]
                %3158 = vst [vmem:[%s2916 + $0x3a0] sm:$0xf] %v3157
                %v3159 = vld [vmem:[%s2915 + $0x1e4] sm:$0xf]
                %3160 = vst [vmem:[%s2916 + $0x3a4] sm:$0xf] %v3159
                %v3161 = vld [vmem:[%s2915 + $0x1e8] sm:$0xf]
                %3162 = vst [vmem:[%s2916 + $0x3a8] sm:$0xf] %v3161
                %v3163 = vld [vmem:[%s2915 + $0x1ec] sm:$0xf]
                %3164 = vst [vmem:[%s2916 + $0x3ac] sm:$0xf] %v3163
                %v3165 = vld [vmem:[%s2915 + $0x1f0] sm:$0xf]
                %3166 = vst [vmem:[%s2916 + $0x3b0] sm:$0xf] %v3165
                %v3167 = vld [vmem:[%s2915 + $0x1f4] sm:$0xf]
                %3168 = vst [vmem:[%s2916 + $0x3b4] sm:$0xf] %v3167
                %v3169 = vld [vmem:[%s2915 + $0x1f8] sm:$0xf]
                %3170 = vst [vmem:[%s2916 + $0x3b8] sm:$0xf] %v3169
                %v3171 = vld [vmem:[%s2915 + $0x1fc] sm:$0xf]
                %3172 = vst [vmem:[%s2916 + $0x3bc] sm:$0xf] %v3171
              $region102: #{tpu_custom_call.1} parent=96 // loop_footer
                %s2914 = sadd.s32 1, %s2910
              $region103: #{tpu_custom_call.1} parent=96 // loop_footer_branch
                %2909 = sbr.rel target = $region99
              $region104: #{tpu_custom_call.1} parent=96 // loop_exit
                _
            $region97: #{tpu_custom_call.1} parent=88 // pred_fallthru
              _
          $region89: #{tpu_custom_call.1} parent=84 // pred_fallthru
            _
          %3448 = vnop
        $region85: #{tpu_custom_call.1} parent=31 // pred_fallthru
          _
        // Predicated region
        $region123: #{tpu_custom_call.1} parent=31 // pred_check
          %p3449 = pneg %p179
        $region124: #{tpu_custom_call.1} parent=31 // pred_check_branch
          %3451 = sbr.rel (%p3449) target = $region126
        $region125: #{tpu_custom_call.1} parent=31 // pred_region
          %s3452 = smul.u32 16, %s26
          %s3453 = smul.addr %s25, 256
          %s3454 = sadd.s32 %s3452, %s3453
          %s3455 = smul.addr %s3454, 4
          %s3456 = scalar_lea.vmem %s5, %s3455
          // Predicated region
          $region127: #{tpu_custom_call.1} parent=125 // pred_check
            _
          $region128: #{tpu_custom_call.1} parent=125 // pred_check_branch
            %3458 = sbr.rel (0) target = $region130
          $region129: #{tpu_custom_call.1} parent=125 // pred_region
            // Predicated region
            $region131: #{tpu_custom_call.1} parent=129 // pred_check
              _
            $region132: #{tpu_custom_call.1} parent=129 // pred_check_branch
              %3460 = sbr.rel target = $region134
            $region133: #{tpu_custom_call.1} parent=129 // pred_region
              // Predicated region
              $region146: #{tpu_custom_call.1} parent=133 // pred_check
                _
              $region147: #{tpu_custom_call.1} parent=133 // pred_check_branch
                %3729 = sbr.rel (0) target = $region149
              $region148: #{tpu_custom_call.1} parent=133 // pred_region
                loop: start=0, step=1, limit=1
                $region150: #{tpu_custom_call.1} parent=148 // loop_pre_header
                  _
                $region151: #{tpu_custom_call.1} parent=148 // loop_header
                  %s3731 = sphi 0, %s3735
                  %p3732 = scmp.ge.s32.totalorder %s3731, 1
                  %s3736 = sphi %s2338, %s2338
                  %s3737 = sphi %s3456, %s3456
                $region152: #{tpu_custom_call.1} parent=148 // loop_header_branch
                  %3734 = sbr.rel (%p3732) target = $region156
                $region153: #{tpu_custom_call.1} parent=148 // loop_body
                  _
                $region154: #{tpu_custom_call.1} parent=148 // loop_footer
                  %s3735 = sadd.s32 1, %s3731
                $region155: #{tpu_custom_call.1} parent=148 // loop_footer_branch
                  %3730 = sbr.rel target = $region151
                $region156: #{tpu_custom_call.1} parent=148 // loop_exit
                  _
                loop: start=0, step=1, limit=1
                $region157: #{tpu_custom_call.1} parent=148 // loop_pre_header
                  _
                $region158: #{tpu_custom_call.1} parent=148 // loop_header
                  %s3740 = sphi 0, %s3744
                  %p3741 = scmp.ge.s32.totalorder %s3740, 1
                  %s3745 = sphi %s2338, %s2338
                  %s3746 = sphi %s3456, %s3456
                $region159: #{tpu_custom_call.1} parent=148 // loop_header_branch
                  %3743 = sbr.rel (%p3741) target = $region163
                $region160: #{tpu_custom_call.1} parent=148 // loop_body
                  %v3747 = vld [vmem:[%s3745] sm:$0xf]
                  %3748 = vst [vmem:[%s3746] sm:$0xf] %v3747
                  %v3749 = vld [vmem:[%s3745 + $0x4] sm:$0xf]
                  %3750 = vst [vmem:[%s3746 + $0x4] sm:$0xf] %v3749
                  %v3751 = vld [vmem:[%s3745 + $0x8] sm:$0xf]
                  %3752 = vst [vmem:[%s3746 + $0x8] sm:$0xf] %v3751
                  %v3753 = vld [vmem:[%s3745 + $0xc] sm:$0xf]
                  %3754 = vst [vmem:[%s3746 + $0xc] sm:$0xf] %v3753
                  %v3755 = vld [vmem:[%s3745 + $0x10] sm:$0xf]
                  %3756 = vst [vmem:[%s3746 + $0x10] sm:$0xf] %v3755
                  %v3757 = vld [vmem:[%s3745 + $0x14] sm:$0xf]
                  %3758 = vst [vmem:[%s3746 + $0x14] sm:$0xf] %v3757
                  %v3759 = vld [vmem:[%s3745 + $0x18] sm:$0xf]
                  %3760 = vst [vmem:[%s3746 + $0x18] sm:$0xf] %v3759
                  %v3761 = vld [vmem:[%s3745 + $0x1c] sm:$0xf]
                  %3762 = vst [vmem:[%s3746 + $0x1c] sm:$0xf] %v3761
                  %v3763 = vld [vmem:[%s3745 + $0x20] sm:$0xf]
                  %3764 = vst [vmem:[%s3746 + $0x20] sm:$0xf] %v3763
                  %v3765 = vld [vmem:[%s3745 + $0x24] sm:$0xf]
                  %3766 = vst [vmem:[%s3746 + $0x24] sm:$0xf] %v3765
                  %v3767 = vld [vmem:[%s3745 + $0x28] sm:$0xf]
                  %3768 = vst [vmem:[%s3746 + $0x28] sm:$0xf] %v3767
                  %v3769 = vld [vmem:[%s3745 + $0x2c] sm:$0xf]
                  %3770 = vst [vmem:[%s3746 + $0x2c] sm:$0xf] %v3769
                  %v3771 = vld [vmem:[%s3745 + $0x30] sm:$0xf]
                  %3772 = vst [vmem:[%s3746 + $0x30] sm:$0xf] %v3771
                  %v3773 = vld [vmem:[%s3745 + $0x34] sm:$0xf]
                  %3774 = vst [vmem:[%s3746 + $0x34] sm:$0xf] %v3773
                  %v3775 = vld [vmem:[%s3745 + $0x38] sm:$0xf]
                  %3776 = vst [vmem:[%s3746 + $0x38] sm:$0xf] %v3775
                  %v3777 = vld [vmem:[%s3745 + $0x3c] sm:$0xf]
                  %3778 = vst [vmem:[%s3746 + $0x3c] sm:$0xf] %v3777
                  %v3779 = vld [vmem:[%s3745 + $0x40] sm:$0xf]
                  %3780 = vst [vmem:[%s3746 + $0x80] sm:$0xf] %v3779
                  %v3781 = vld [vmem:[%s3745 + $0x44] sm:$0xf]
                  %3782 = vst [vmem:[%s3746 + $0x84] sm:$0xf] %v3781
                  %v3783 = vld [vmem:[%s3745 + $0x48] sm:$0xf]
                  %3784 = vst [vmem:[%s3746 + $0x88] sm:$0xf] %v3783
                  %v3785 = vld [vmem:[%s3745 + $0x4c] sm:$0xf]
                  %3786 = vst [vmem:[%s3746 + $0x8c] sm:$0xf] %v3785
                  %v3787 = vld [vmem:[%s3745 + $0x50] sm:$0xf]
                  %3788 = vst [vmem:[%s3746 + $0x90] sm:$0xf] %v3787
                  %v3789 = vld [vmem:[%s3745 + $0x54] sm:$0xf]
                  %3790 = vst [vmem:[%s3746 + $0x94] sm:$0xf] %v3789
                  %v3791 = vld [vmem:[%s3745 + $0x58] sm:$0xf]
                  %3792 = vst [vmem:[%s3746 + $0x98] sm:$0xf] %v3791
                  %v3793 = vld [vmem:[%s3745 + $0x5c] sm:$0xf]
                  %3794 = vst [vmem:[%s3746 + $0x9c] sm:$0xf] %v3793
                  %v3795 = vld [vmem:[%s3745 + $0x60] sm:$0xf]
                  %3796 = vst [vmem:[%s3746 + $0xa0] sm:$0xf] %v3795
                  %v3797 = vld [vmem:[%s3745 + $0x64] sm:$0xf]
                  %3798 = vst [vmem:[%s3746 + $0xa4] sm:$0xf] %v3797
                  %v3799 = vld [vmem:[%s3745 + $0x68] sm:$0xf]
                  %3800 = vst [vmem:[%s3746 + $0xa8] sm:$0xf] %v3799
                  %v3801 = vld [vmem:[%s3745 + $0x6c] sm:$0xf]
                  %3802 = vst [vmem:[%s3746 + $0xac] sm:$0xf] %v3801
                  %v3803 = vld [vmem:[%s3745 + $0x70] sm:$0xf]
                  %3804 = vst [vmem:[%s3746 + $0xb0] sm:$0xf] %v3803
                  %v3805 = vld [vmem:[%s3745 + $0x74] sm:$0xf]
                  %3806 = vst [vmem:[%s3746 + $0xb4] sm:$0xf] %v3805
                  %v3807 = vld [vmem:[%s3745 + $0x78] sm:$0xf]
                  %3808 = vst [vmem:[%s3746 + $0xb8] sm:$0xf] %v3807
                  %v3809 = vld [vmem:[%s3745 + $0x7c] sm:$0xf]
                  %3810 = vst [vmem:[%s3746 + $0xbc] sm:$0xf] %v3809
                  %v3811 = vld [vmem:[%s3745 + $0x80] sm:$0xf]
                  %3812 = vst [vmem:[%s3746 + $0x100] sm:$0xf] %v3811
                  %v3813 = vld [vmem:[%s3745 + $0x84] sm:$0xf]
                  %3814 = vst [vmem:[%s3746 + $0x104] sm:$0xf] %v3813
                  %v3815 = vld [vmem:[%s3745 + $0x88] sm:$0xf]
                  %3816 = vst [vmem:[%s3746 + $0x108] sm:$0xf] %v3815
                  %v3817 = vld [vmem:[%s3745 + $0x8c] sm:$0xf]
                  %3818 = vst [vmem:[%s3746 + $0x10c] sm:$0xf] %v3817
                  %v3819 = vld [vmem:[%s3745 + $0x90] sm:$0xf]
                  %3820 = vst [vmem:[%s3746 + $0x110] sm:$0xf] %v3819
                  %v3821 = vld [vmem:[%s3745 + $0x94] sm:$0xf]
                  %3822 = vst [vmem:[%s3746 + $0x114] sm:$0xf] %v3821
                  %v3823 = vld [vmem:[%s3745 + $0x98] sm:$0xf]
                  %3824 = vst [vmem:[%s3746 + $0x118] sm:$0xf] %v3823
                  %v3825 = vld [vmem:[%s3745 + $0x9c] sm:$0xf]
                  %3826 = vst [vmem:[%s3746 + $0x11c] sm:$0xf] %v3825
                  %v3827 = vld [vmem:[%s3745 + $0xa0] sm:$0xf]
                  %3828 = vst [vmem:[%s3746 + $0x120] sm:$0xf] %v3827
                  %v3829 = vld [vmem:[%s3745 + $0xa4] sm:$0xf]
                  %3830 = vst [vmem:[%s3746 + $0x124] sm:$0xf] %v3829
                  %v3831 = vld [vmem:[%s3745 + $0xa8] sm:$0xf]
                  %3832 = vst [vmem:[%s3746 + $0x128] sm:$0xf] %v3831
                  %v3833 = vld [vmem:[%s3745 + $0xac] sm:$0xf]
                  %3834 = vst [vmem:[%s3746 + $0x12c] sm:$0xf] %v3833
                  %v3835 = vld [vmem:[%s3745 + $0xb0] sm:$0xf]
                  %3836 = vst [vmem:[%s3746 + $0x130] sm:$0xf] %v3835
                  %v3837 = vld [vmem:[%s3745 + $0xb4] sm:$0xf]
                  %3838 = vst [vmem:[%s3746 + $0x134] sm:$0xf] %v3837
                  %v3839 = vld [vmem:[%s3745 + $0xb8] sm:$0xf]
                  %3840 = vst [vmem:[%s3746 + $0x138] sm:$0xf] %v3839
                  %v3841 = vld [vmem:[%s3745 + $0xbc] sm:$0xf]
                  %3842 = vst [vmem:[%s3746 + $0x13c] sm:$0xf] %v3841
                  %v3843 = vld [vmem:[%s3745 + $0xc0] sm:$0xf]
                  %3844 = vst [vmem:[%s3746 + $0x180] sm:$0xf] %v3843
                  %v3845 = vld [vmem:[%s3745 + $0xc4] sm:$0xf]
                  %3846 = vst [vmem:[%s3746 + $0x184] sm:$0xf] %v3845
                  %v3847 = vld [vmem:[%s3745 + $0xc8] sm:$0xf]
                  %3848 = vst [vmem:[%s3746 + $0x188] sm:$0xf] %v3847
                  %v3849 = vld [vmem:[%s3745 + $0xcc] sm:$0xf]
                  %3850 = vst [vmem:[%s3746 + $0x18c] sm:$0xf] %v3849
                  %v3851 = vld [vmem:[%s3745 + $0xd0] sm:$0xf]
                  %3852 = vst [vmem:[%s3746 + $0x190] sm:$0xf] %v3851
                  %v3853 = vld [vmem:[%s3745 + $0xd4] sm:$0xf]
                  %3854 = vst [vmem:[%s3746 + $0x194] sm:$0xf] %v3853
                  %v3855 = vld [vmem:[%s3745 + $0xd8] sm:$0xf]
                  %3856 = vst [vmem:[%s3746 + $0x198] sm:$0xf] %v3855
                  %v3857 = vld [vmem:[%s3745 + $0xdc] sm:$0xf]
                  %3858 = vst [vmem:[%s3746 + $0x19c] sm:$0xf] %v3857
                  %v3859 = vld [vmem:[%s3745 + $0xe0] sm:$0xf]
                  %3860 = vst [vmem:[%s3746 + $0x1a0] sm:$0xf] %v3859
                  %v3861 = vld [vmem:[%s3745 + $0xe4] sm:$0xf]
                  %3862 = vst [vmem:[%s3746 + $0x1a4] sm:$0xf] %v3861
                  %v3863 = vld [vmem:[%s3745 + $0xe8] sm:$0xf]
                  %3864 = vst [vmem:[%s3746 + $0x1a8] sm:$0xf] %v3863
                  %v3865 = vld [vmem:[%s3745 + $0xec] sm:$0xf]
                  %3866 = vst [vmem:[%s3746 + $0x1ac] sm:$0xf] %v3865
                  %v3867 = vld [vmem:[%s3745 + $0xf0] sm:$0xf]
                  %3868 = vst [vmem:[%s3746 + $0x1b0] sm:$0xf] %v3867
                  %v3869 = vld [vmem:[%s3745 + $0xf4] sm:$0xf]
                  %3870 = vst [vmem:[%s3746 + $0x1b4] sm:$0xf] %v3869
                  %v3871 = vld [vmem:[%s3745 + $0xf8] sm:$0xf]
                  %3872 = vst [vmem:[%s3746 + $0x1b8] sm:$0xf] %v3871
                  %v3873 = vld [vmem:[%s3745 + $0xfc] sm:$0xf]
                  %3874 = vst [vmem:[%s3746 + $0x1bc] sm:$0xf] %v3873
                  %v3875 = vld [vmem:[%s3745 + $0x100] sm:$0xf]
                  %3876 = vst [vmem:[%s3746 + $0x200] sm:$0xf] %v3875
                  %v3877 = vld [vmem:[%s3745 + $0x104] sm:$0xf]
                  %3878 = vst [vmem:[%s3746 + $0x204] sm:$0xf] %v3877
                  %v3879 = vld [vmem:[%s3745 + $0x108] sm:$0xf]
                  %3880 = vst [vmem:[%s3746 + $0x208] sm:$0xf] %v3879
                  %v3881 = vld [vmem:[%s3745 + $0x10c] sm:$0xf]
                  %3882 = vst [vmem:[%s3746 + $0x20c] sm:$0xf] %v3881
                  %v3883 = vld [vmem:[%s3745 + $0x110] sm:$0xf]
                  %3884 = vst [vmem:[%s3746 + $0x210] sm:$0xf] %v3883
                  %v3885 = vld [vmem:[%s3745 + $0x114] sm:$0xf]
                  %3886 = vst [vmem:[%s3746 + $0x214] sm:$0xf] %v3885
                  %v3887 = vld [vmem:[%s3745 + $0x118] sm:$0xf]
                  %3888 = vst [vmem:[%s3746 + $0x218] sm:$0xf] %v3887
                  %v3889 = vld [vmem:[%s3745 + $0x11c] sm:$0xf]
                  %3890 = vst [vmem:[%s3746 + $0x21c] sm:$0xf] %v3889
                  %v3891 = vld [vmem:[%s3745 + $0x120] sm:$0xf]
                  %3892 = vst [vmem:[%s3746 + $0x220] sm:$0xf] %v3891
                  %v3893 = vld [vmem:[%s3745 + $0x124] sm:$0xf]
                  %3894 = vst [vmem:[%s3746 + $0x224] sm:$0xf] %v3893
                  %v3895 = vld [vmem:[%s3745 + $0x128] sm:$0xf]
                  %3896 = vst [vmem:[%s3746 + $0x228] sm:$0xf] %v3895
                  %v3897 = vld [vmem:[%s3745 + $0x12c] sm:$0xf]
                  %3898 = vst [vmem:[%s3746 + $0x22c] sm:$0xf] %v3897
                  %v3899 = vld [vmem:[%s3745 + $0x130] sm:$0xf]
                  %3900 = vst [vmem:[%s3746 + $0x230] sm:$0xf] %v3899
                  %v3901 = vld [vmem:[%s3745 + $0x134] sm:$0xf]
                  %3902 = vst [vmem:[%s3746 + $0x234] sm:$0xf] %v3901
                  %v3903 = vld [vmem:[%s3745 + $0x138] sm:$0xf]
                  %3904 = vst [vmem:[%s3746 + $0x238] sm:$0xf] %v3903
                  %v3905 = vld [vmem:[%s3745 + $0x13c] sm:$0xf]
                  %3906 = vst [vmem:[%s3746 + $0x23c] sm:$0xf] %v3905
                  %v3907 = vld [vmem:[%s3745 + $0x140] sm:$0xf]
                  %3908 = vst [vmem:[%s3746 + $0x280] sm:$0xf] %v3907
                  %v3909 = vld [vmem:[%s3745 + $0x144] sm:$0xf]
                  %3910 = vst [vmem:[%s3746 + $0x284] sm:$0xf] %v3909
                  %v3911 = vld [vmem:[%s3745 + $0x148] sm:$0xf]
                  %3912 = vst [vmem:[%s3746 + $0x288] sm:$0xf] %v3911
                  %v3913 = vld [vmem:[%s3745 + $0x14c] sm:$0xf]
                  %3914 = vst [vmem:[%s3746 + $0x28c] sm:$0xf] %v3913
                  %v3915 = vld [vmem:[%s3745 + $0x150] sm:$0xf]
                  %3916 = vst [vmem:[%s3746 + $0x290] sm:$0xf] %v3915
                  %v3917 = vld [vmem:[%s3745 + $0x154] sm:$0xf]
                  %3918 = vst [vmem:[%s3746 + $0x294] sm:$0xf] %v3917
                  %v3919 = vld [vmem:[%s3745 + $0x158] sm:$0xf]
                  %3920 = vst [vmem:[%s3746 + $0x298] sm:$0xf] %v3919
                  %v3921 = vld [vmem:[%s3745 + $0x15c] sm:$0xf]
                  %3922 = vst [vmem:[%s3746 + $0x29c] sm:$0xf] %v3921
                  %v3923 = vld [vmem:[%s3745 + $0x160] sm:$0xf]
                  %3924 = vst [vmem:[%s3746 + $0x2a0] sm:$0xf] %v3923
                  %v3925 = vld [vmem:[%s3745 + $0x164] sm:$0xf]
                  %3926 = vst [vmem:[%s3746 + $0x2a4] sm:$0xf] %v3925
                  %v3927 = vld [vmem:[%s3745 + $0x168] sm:$0xf]
                  %3928 = vst [vmem:[%s3746 + $0x2a8] sm:$0xf] %v3927
                  %v3929 = vld [vmem:[%s3745 + $0x16c] sm:$0xf]
                  %3930 = vst [vmem:[%s3746 + $0x2ac] sm:$0xf] %v3929
                  %v3931 = vld [vmem:[%s3745 + $0x170] sm:$0xf]
                  %3932 = vst [vmem:[%s3746 + $0x2b0] sm:$0xf] %v3931
                  %v3933 = vld [vmem:[%s3745 + $0x174] sm:$0xf]
                  %3934 = vst [vmem:[%s3746 + $0x2b4] sm:$0xf] %v3933
                  %v3935 = vld [vmem:[%s3745 + $0x178] sm:$0xf]
                  %3936 = vst [vmem:[%s3746 + $0x2b8] sm:$0xf] %v3935
                  %v3937 = vld [vmem:[%s3745 + $0x17c] sm:$0xf]
                  %3938 = vst [vmem:[%s3746 + $0x2bc] sm:$0xf] %v3937
                  %v3939 = vld [vmem:[%s3745 + $0x180] sm:$0xf]
                  %3940 = vst [vmem:[%s3746 + $0x300] sm:$0xf] %v3939
                  %v3941 = vld [vmem:[%s3745 + $0x184] sm:$0xf]
                  %3942 = vst [vmem:[%s3746 + $0x304] sm:$0xf] %v3941
                  %v3943 = vld [vmem:[%s3745 + $0x188] sm:$0xf]
                  %3944 = vst [vmem:[%s3746 + $0x308] sm:$0xf] %v3943
                  %v3945 = vld [vmem:[%s3745 + $0x18c] sm:$0xf]
                  %3946 = vst [vmem:[%s3746 + $0x30c] sm:$0xf] %v3945
                  %v3947 = vld [vmem:[%s3745 + $0x190] sm:$0xf]
                  %3948 = vst [vmem:[%s3746 + $0x310] sm:$0xf] %v3947
                  %v3949 = vld [vmem:[%s3745 + $0x194] sm:$0xf]
                  %3950 = vst [vmem:[%s3746 + $0x314] sm:$0xf] %v3949
                  %v3951 = vld [vmem:[%s3745 + $0x198] sm:$0xf]
                  %3952 = vst [vmem:[%s3746 + $0x318] sm:$0xf] %v3951
                  %v3953 = vld [vmem:[%s3745 + $0x19c] sm:$0xf]
                  %3954 = vst [vmem:[%s3746 + $0x31c] sm:$0xf] %v3953
                  %v3955 = vld [vmem:[%s3745 + $0x1a0] sm:$0xf]
                  %3956 = vst [vmem:[%s3746 + $0x320] sm:$0xf] %v3955
                  %v3957 = vld [vmem:[%s3745 + $0x1a4] sm:$0xf]
                  %3958 = vst [vmem:[%s3746 + $0x324] sm:$0xf] %v3957
                  %v3959 = vld [vmem:[%s3745 + $0x1a8] sm:$0xf]
                  %3960 = vst [vmem:[%s3746 + $0x328] sm:$0xf] %v3959
                  %v3961 = vld [vmem:[%s3745 + $0x1ac] sm:$0xf]
                  %3962 = vst [vmem:[%s3746 + $0x32c] sm:$0xf] %v3961
                  %v3963 = vld [vmem:[%s3745 + $0x1b0] sm:$0xf]
                  %3964 = vst [vmem:[%s3746 + $0x330] sm:$0xf] %v3963
                  %v3965 = vld [vmem:[%s3745 + $0x1b4] sm:$0xf]
                  %3966 = vst [vmem:[%s3746 + $0x334] sm:$0xf] %v3965
                  %v3967 = vld [vmem:[%s3745 + $0x1b8] sm:$0xf]
                  %3968 = vst [vmem:[%s3746 + $0x338] sm:$0xf] %v3967
                  %v3969 = vld [vmem:[%s3745 + $0x1bc] sm:$0xf]
                  %3970 = vst [vmem:[%s3746 + $0x33c] sm:$0xf] %v3969
                  %v3971 = vld [vmem:[%s3745 + $0x1c0] sm:$0xf]
                  %3972 = vst [vmem:[%s3746 + $0x380] sm:$0xf] %v3971
                  %v3973 = vld [vmem:[%s3745 + $0x1c4] sm:$0xf]
                  %3974 = vst [vmem:[%s3746 + $0x384] sm:$0xf] %v3973
                  %v3975 = vld [vmem:[%s3745 + $0x1c8] sm:$0xf]
                  %3976 = vst [vmem:[%s3746 + $0x388] sm:$0xf] %v3975
                  %v3977 = vld [vmem:[%s3745 + $0x1cc] sm:$0xf]
                  %3978 = vst [vmem:[%s3746 + $0x38c] sm:$0xf] %v3977
                  %v3979 = vld [vmem:[%s3745 + $0x1d0] sm:$0xf]
                  %3980 = vst [vmem:[%s3746 + $0x390] sm:$0xf] %v3979
                  %v3981 = vld [vmem:[%s3745 + $0x1d4] sm:$0xf]
                  %3982 = vst [vmem:[%s3746 + $0x394] sm:$0xf] %v3981
                  %v3983 = vld [vmem:[%s3745 + $0x1d8] sm:$0xf]
                  %3984 = vst [vmem:[%s3746 + $0x398] sm:$0xf] %v3983
                  %v3985 = vld [vmem:[%s3745 + $0x1dc] sm:$0xf]
                  %3986 = vst [vmem:[%s3746 + $0x39c] sm:$0xf] %v3985
                  %v3987 = vld [vmem:[%s3745 + $0x1e0] sm:$0xf]
                  %3988 = vst [vmem:[%s3746 + $0x3a0] sm:$0xf] %v3987
                  %v3989 = vld [vmem:[%s3745 + $0x1e4] sm:$0xf]
                  %3990 = vst [vmem:[%s3746 + $0x3a4] sm:$0xf] %v3989
                  %v3991 = vld [vmem:[%s3745 + $0x1e8] sm:$0xf]
                  %3992 = vst [vmem:[%s3746 + $0x3a8] sm:$0xf] %v3991
                  %v3993 = vld [vmem:[%s3745 + $0x1ec] sm:$0xf]
                  %3994 = vst [vmem:[%s3746 + $0x3ac] sm:$0xf] %v3993
                  %v3995 = vld [vmem:[%s3745 + $0x1f0] sm:$0xf]
                  %3996 = vst [vmem:[%s3746 + $0x3b0] sm:$0xf] %v3995
                  %v3997 = vld [vmem:[%s3745 + $0x1f4] sm:$0xf]
                  %3998 = vst [vmem:[%s3746 + $0x3b4] sm:$0xf] %v3997
                  %v3999 = vld [vmem:[%s3745 + $0x1f8] sm:$0xf]
                  %4000 = vst [vmem:[%s3746 + $0x3b8] sm:$0xf] %v3999
                  %v4001 = vld [vmem:[%s3745 + $0x1fc] sm:$0xf]
                  %4002 = vst [vmem:[%s3746 + $0x3bc] sm:$0xf] %v4001
                $region161: #{tpu_custom_call.1} parent=148 // loop_footer
                  %s3744 = sadd.s32 1, %s3740
                $region162: #{tpu_custom_call.1} parent=148 // loop_footer_branch
                  %3739 = sbr.rel target = $region158
                $region163: #{tpu_custom_call.1} parent=148 // loop_exit
                  _
              $region149: #{tpu_custom_call.1} parent=133 // pred_fallthru
                _
            $region134: #{tpu_custom_call.1} parent=129 // pred_fallthru
              _
            // Predicated region
            $region135: #{tpu_custom_call.1} parent=129 // pred_check
              _
            $region136: #{tpu_custom_call.1} parent=129 // pred_check_branch
              %3462 = sbr.rel (0) target = $region138
            $region137: #{tpu_custom_call.1} parent=129 // pred_region
              loop: start=0, step=1, limit=1
              $region139: #{tpu_custom_call.1} parent=137 // loop_pre_header
                _
              $region140: #{tpu_custom_call.1} parent=137 // loop_header
                %s3465 = sphi 0, %s3469
                %p3466 = scmp.ge.s32.totalorder %s3465, 1
                %s3470 = sphi %s2338, %s2338
                %s3471 = sphi %s3456, %s3456
              $region141: #{tpu_custom_call.1} parent=137 // loop_header_branch
                %3468 = sbr.rel (%p3466) target = $region145
              $region142: #{tpu_custom_call.1} parent=137 // loop_body
                %v3472 = vld [vmem:[%s3470] sm:$0xf]
                %3473 = vst [vmem:[%s3471] sm:$0xf] %v3472
                %v3474 = vld [vmem:[%s3470 + $0x4] sm:$0xf]
                %3475 = vst [vmem:[%s3471 + $0x4] sm:$0xf] %v3474
                %v3476 = vld [vmem:[%s3470 + $0x8] sm:$0xf]
                %3477 = vst [vmem:[%s3471 + $0x8] sm:$0xf] %v3476
                %v3478 = vld [vmem:[%s3470 + $0xc] sm:$0xf]
                %3479 = vst [vmem:[%s3471 + $0xc] sm:$0xf] %v3478
                %v3480 = vld [vmem:[%s3470 + $0x10] sm:$0xf]
                %3481 = vst [vmem:[%s3471 + $0x10] sm:$0xf] %v3480
                %v3482 = vld [vmem:[%s3470 + $0x14] sm:$0xf]
                %3483 = vst [vmem:[%s3471 + $0x14] sm:$0xf] %v3482
                %v3484 = vld [vmem:[%s3470 + $0x18] sm:$0xf]
                %3485 = vst [vmem:[%s3471 + $0x18] sm:$0xf] %v3484
                %v3486 = vld [vmem:[%s3470 + $0x1c] sm:$0xf]
                %3487 = vst [vmem:[%s3471 + $0x1c] sm:$0xf] %v3486
                %v3488 = vld [vmem:[%s3470 + $0x20] sm:$0xf]
                %3489 = vst [vmem:[%s3471 + $0x20] sm:$0xf] %v3488
                %v3490 = vld [vmem:[%s3470 + $0x24] sm:$0xf]
                %3491 = vst [vmem:[%s3471 + $0x24] sm:$0xf] %v3490
                %v3492 = vld [vmem:[%s3470 + $0x28] sm:$0xf]
                %3493 = vst [vmem:[%s3471 + $0x28] sm:$0xf] %v3492
                %v3494 = vld [vmem:[%s3470 + $0x2c] sm:$0xf]
                %3495 = vst [vmem:[%s3471 + $0x2c] sm:$0xf] %v3494
                %v3496 = vld [vmem:[%s3470 + $0x30] sm:$0xf]
                %3497 = vst [vmem:[%s3471 + $0x30] sm:$0xf] %v3496
                %v3498 = vld [vmem:[%s3470 + $0x34] sm:$0xf]
                %3499 = vst [vmem:[%s3471 + $0x34] sm:$0xf] %v3498
                %v3500 = vld [vmem:[%s3470 + $0x38] sm:$0xf]
                %3501 = vst [vmem:[%s3471 + $0x38] sm:$0xf] %v3500
                %v3502 = vld [vmem:[%s3470 + $0x3c] sm:$0xf]
                %3503 = vst [vmem:[%s3471 + $0x3c] sm:$0xf] %v3502
                %v3504 = vld [vmem:[%s3470 + $0x40] sm:$0xf]
                %3505 = vst [vmem:[%s3471 + $0x80] sm:$0xf] %v3504
                %v3506 = vld [vmem:[%s3470 + $0x44] sm:$0xf]
                %3507 = vst [vmem:[%s3471 + $0x84] sm:$0xf] %v3506
                %v3508 = vld [vmem:[%s3470 + $0x48] sm:$0xf]
                %3509 = vst [vmem:[%s3471 + $0x88] sm:$0xf] %v3508
                %v3510 = vld [vmem:[%s3470 + $0x4c] sm:$0xf]
                %3511 = vst [vmem:[%s3471 + $0x8c] sm:$0xf] %v3510
                %v3512 = vld [vmem:[%s3470 + $0x50] sm:$0xf]
                %3513 = vst [vmem:[%s3471 + $0x90] sm:$0xf] %v3512
                %v3514 = vld [vmem:[%s3470 + $0x54] sm:$0xf]
                %3515 = vst [vmem:[%s3471 + $0x94] sm:$0xf] %v3514
                %v3516 = vld [vmem:[%s3470 + $0x58] sm:$0xf]
                %3517 = vst [vmem:[%s3471 + $0x98] sm:$0xf] %v3516
                %v3518 = vld [vmem:[%s3470 + $0x5c] sm:$0xf]
                %3519 = vst [vmem:[%s3471 + $0x9c] sm:$0xf] %v3518
                %v3520 = vld [vmem:[%s3470 + $0x60] sm:$0xf]
                %3521 = vst [vmem:[%s3471 + $0xa0] sm:$0xf] %v3520
                %v3522 = vld [vmem:[%s3470 + $0x64] sm:$0xf]
                %3523 = vst [vmem:[%s3471 + $0xa4] sm:$0xf] %v3522
                %v3524 = vld [vmem:[%s3470 + $0x68] sm:$0xf]
                %3525 = vst [vmem:[%s3471 + $0xa8] sm:$0xf] %v3524
                %v3526 = vld [vmem:[%s3470 + $0x6c] sm:$0xf]
                %3527 = vst [vmem:[%s3471 + $0xac] sm:$0xf] %v3526
                %v3528 = vld [vmem:[%s3470 + $0x70] sm:$0xf]
                %3529 = vst [vmem:[%s3471 + $0xb0] sm:$0xf] %v3528
                %v3530 = vld [vmem:[%s3470 + $0x74] sm:$0xf]
                %3531 = vst [vmem:[%s3471 + $0xb4] sm:$0xf] %v3530
                %v3532 = vld [vmem:[%s3470 + $0x78] sm:$0xf]
                %3533 = vst [vmem:[%s3471 + $0xb8] sm:$0xf] %v3532
                %v3534 = vld [vmem:[%s3470 + $0x7c] sm:$0xf]
                %3535 = vst [vmem:[%s3471 + $0xbc] sm:$0xf] %v3534
                %v3536 = vld [vmem:[%s3470 + $0x80] sm:$0xf]
                %3537 = vst [vmem:[%s3471 + $0x100] sm:$0xf] %v3536
                %v3538 = vld [vmem:[%s3470 + $0x84] sm:$0xf]
                %3539 = vst [vmem:[%s3471 + $0x104] sm:$0xf] %v3538
                %v3540 = vld [vmem:[%s3470 + $0x88] sm:$0xf]
                %3541 = vst [vmem:[%s3471 + $0x108] sm:$0xf] %v3540
                %v3542 = vld [vmem:[%s3470 + $0x8c] sm:$0xf]
                %3543 = vst [vmem:[%s3471 + $0x10c] sm:$0xf] %v3542
                %v3544 = vld [vmem:[%s3470 + $0x90] sm:$0xf]
                %3545 = vst [vmem:[%s3471 + $0x110] sm:$0xf] %v3544
                %v3546 = vld [vmem:[%s3470 + $0x94] sm:$0xf]
                %3547 = vst [vmem:[%s3471 + $0x114] sm:$0xf] %v3546
                %v3548 = vld [vmem:[%s3470 + $0x98] sm:$0xf]
                %3549 = vst [vmem:[%s3471 + $0x118] sm:$0xf] %v3548
                %v3550 = vld [vmem:[%s3470 + $0x9c] sm:$0xf]
                %3551 = vst [vmem:[%s3471 + $0x11c] sm:$0xf] %v3550
                %v3552 = vld [vmem:[%s3470 + $0xa0] sm:$0xf]
                %3553 = vst [vmem:[%s3471 + $0x120] sm:$0xf] %v3552
                %v3554 = vld [vmem:[%s3470 + $0xa4] sm:$0xf]
                %3555 = vst [vmem:[%s3471 + $0x124] sm:$0xf] %v3554
                %v3556 = vld [vmem:[%s3470 + $0xa8] sm:$0xf]
                %3557 = vst [vmem:[%s3471 + $0x128] sm:$0xf] %v3556
                %v3558 = vld [vmem:[%s3470 + $0xac] sm:$0xf]
                %3559 = vst [vmem:[%s3471 + $0x12c] sm:$0xf] %v3558
                %v3560 = vld [vmem:[%s3470 + $0xb0] sm:$0xf]
                %3561 = vst [vmem:[%s3471 + $0x130] sm:$0xf] %v3560
                %v3562 = vld [vmem:[%s3470 + $0xb4] sm:$0xf]
                %3563 = vst [vmem:[%s3471 + $0x134] sm:$0xf] %v3562
                %v3564 = vld [vmem:[%s3470 + $0xb8] sm:$0xf]
                %3565 = vst [vmem:[%s3471 + $0x138] sm:$0xf] %v3564
                %v3566 = vld [vmem:[%s3470 + $0xbc] sm:$0xf]
                %3567 = vst [vmem:[%s3471 + $0x13c] sm:$0xf] %v3566
                %v3568 = vld [vmem:[%s3470 + $0xc0] sm:$0xf]
                %3569 = vst [vmem:[%s3471 + $0x180] sm:$0xf] %v3568
                %v3570 = vld [vmem:[%s3470 + $0xc4] sm:$0xf]
                %3571 = vst [vmem:[%s3471 + $0x184] sm:$0xf] %v3570
                %v3572 = vld [vmem:[%s3470 + $0xc8] sm:$0xf]
                %3573 = vst [vmem:[%s3471 + $0x188] sm:$0xf] %v3572
                %v3574 = vld [vmem:[%s3470 + $0xcc] sm:$0xf]
                %3575 = vst [vmem:[%s3471 + $0x18c] sm:$0xf] %v3574
                %v3576 = vld [vmem:[%s3470 + $0xd0] sm:$0xf]
                %3577 = vst [vmem:[%s3471 + $0x190] sm:$0xf] %v3576
                %v3578 = vld [vmem:[%s3470 + $0xd4] sm:$0xf]
                %3579 = vst [vmem:[%s3471 + $0x194] sm:$0xf] %v3578
                %v3580 = vld [vmem:[%s3470 + $0xd8] sm:$0xf]
                %3581 = vst [vmem:[%s3471 + $0x198] sm:$0xf] %v3580
                %v3582 = vld [vmem:[%s3470 + $0xdc] sm:$0xf]
                %3583 = vst [vmem:[%s3471 + $0x19c] sm:$0xf] %v3582
                %v3584 = vld [vmem:[%s3470 + $0xe0] sm:$0xf]
                %3585 = vst [vmem:[%s3471 + $0x1a0] sm:$0xf] %v3584
                %v3586 = vld [vmem:[%s3470 + $0xe4] sm:$0xf]
                %3587 = vst [vmem:[%s3471 + $0x1a4] sm:$0xf] %v3586
                %v3588 = vld [vmem:[%s3470 + $0xe8] sm:$0xf]
                %3589 = vst [vmem:[%s3471 + $0x1a8] sm:$0xf] %v3588
                %v3590 = vld [vmem:[%s3470 + $0xec] sm:$0xf]
                %3591 = vst [vmem:[%s3471 + $0x1ac] sm:$0xf] %v3590
                %v3592 = vld [vmem:[%s3470 + $0xf0] sm:$0xf]
                %3593 = vst [vmem:[%s3471 + $0x1b0] sm:$0xf] %v3592
                %v3594 = vld [vmem:[%s3470 + $0xf4] sm:$0xf]
                %3595 = vst [vmem:[%s3471 + $0x1b4] sm:$0xf] %v3594
                %v3596 = vld [vmem:[%s3470 + $0xf8] sm:$0xf]
                %3597 = vst [vmem:[%s3471 + $0x1b8] sm:$0xf] %v3596
                %v3598 = vld [vmem:[%s3470 + $0xfc] sm:$0xf]
                %3599 = vst [vmem:[%s3471 + $0x1bc] sm:$0xf] %v3598
                %v3600 = vld [vmem:[%s3470 + $0x100] sm:$0xf]
                %3601 = vst [vmem:[%s3471 + $0x200] sm:$0xf] %v3600
                %v3602 = vld [vmem:[%s3470 + $0x104] sm:$0xf]
                %3603 = vst [vmem:[%s3471 + $0x204] sm:$0xf] %v3602
                %v3604 = vld [vmem:[%s3470 + $0x108] sm:$0xf]
                %3605 = vst [vmem:[%s3471 + $0x208] sm:$0xf] %v3604
                %v3606 = vld [vmem:[%s3470 + $0x10c] sm:$0xf]
                %3607 = vst [vmem:[%s3471 + $0x20c] sm:$0xf] %v3606
                %v3608 = vld [vmem:[%s3470 + $0x110] sm:$0xf]
                %3609 = vst [vmem:[%s3471 + $0x210] sm:$0xf] %v3608
                %v3610 = vld [vmem:[%s3470 + $0x114] sm:$0xf]
                %3611 = vst [vmem:[%s3471 + $0x214] sm:$0xf] %v3610
                %v3612 = vld [vmem:[%s3470 + $0x118] sm:$0xf]
                %3613 = vst [vmem:[%s3471 + $0x218] sm:$0xf] %v3612
                %v3614 = vld [vmem:[%s3470 + $0x11c] sm:$0xf]
                %3615 = vst [vmem:[%s3471 + $0x21c] sm:$0xf] %v3614
                %v3616 = vld [vmem:[%s3470 + $0x120] sm:$0xf]
                %3617 = vst [vmem:[%s3471 + $0x220] sm:$0xf] %v3616
                %v3618 = vld [vmem:[%s3470 + $0x124] sm:$0xf]
                %3619 = vst [vmem:[%s3471 + $0x224] sm:$0xf] %v3618
                %v3620 = vld [vmem:[%s3470 + $0x128] sm:$0xf]
                %3621 = vst [vmem:[%s3471 + $0x228] sm:$0xf] %v3620
                %v3622 = vld [vmem:[%s3470 + $0x12c] sm:$0xf]
                %3623 = vst [vmem:[%s3471 + $0x22c] sm:$0xf] %v3622
                %v3624 = vld [vmem:[%s3470 + $0x130] sm:$0xf]
                %3625 = vst [vmem:[%s3471 + $0x230] sm:$0xf] %v3624
                %v3626 = vld [vmem:[%s3470 + $0x134] sm:$0xf]
                %3627 = vst [vmem:[%s3471 + $0x234] sm:$0xf] %v3626
                %v3628 = vld [vmem:[%s3470 + $0x138] sm:$0xf]
                %3629 = vst [vmem:[%s3471 + $0x238] sm:$0xf] %v3628
                %v3630 = vld [vmem:[%s3470 + $0x13c] sm:$0xf]
                %3631 = vst [vmem:[%s3471 + $0x23c] sm:$0xf] %v3630
                %v3632 = vld [vmem:[%s3470 + $0x140] sm:$0xf]
                %3633 = vst [vmem:[%s3471 + $0x280] sm:$0xf] %v3632
                %v3634 = vld [vmem:[%s3470 + $0x144] sm:$0xf]
                %3635 = vst [vmem:[%s3471 + $0x284] sm:$0xf] %v3634
                %v3636 = vld [vmem:[%s3470 + $0x148] sm:$0xf]
                %3637 = vst [vmem:[%s3471 + $0x288] sm:$0xf] %v3636
                %v3638 = vld [vmem:[%s3470 + $0x14c] sm:$0xf]
                %3639 = vst [vmem:[%s3471 + $0x28c] sm:$0xf] %v3638
                %v3640 = vld [vmem:[%s3470 + $0x150] sm:$0xf]
                %3641 = vst [vmem:[%s3471 + $0x290] sm:$0xf] %v3640
                %v3642 = vld [vmem:[%s3470 + $0x154] sm:$0xf]
                %3643 = vst [vmem:[%s3471 + $0x294] sm:$0xf] %v3642
                %v3644 = vld [vmem:[%s3470 + $0x158] sm:$0xf]
                %3645 = vst [vmem:[%s3471 + $0x298] sm:$0xf] %v3644
                %v3646 = vld [vmem:[%s3470 + $0x15c] sm:$0xf]
                %3647 = vst [vmem:[%s3471 + $0x29c] sm:$0xf] %v3646
                %v3648 = vld [vmem:[%s3470 + $0x160] sm:$0xf]
                %3649 = vst [vmem:[%s3471 + $0x2a0] sm:$0xf] %v3648
                %v3650 = vld [vmem:[%s3470 + $0x164] sm:$0xf]
                %3651 = vst [vmem:[%s3471 + $0x2a4] sm:$0xf] %v3650
                %v3652 = vld [vmem:[%s3470 + $0x168] sm:$0xf]
                %3653 = vst [vmem:[%s3471 + $0x2a8] sm:$0xf] %v3652
                %v3654 = vld [vmem:[%s3470 + $0x16c] sm:$0xf]
                %3655 = vst [vmem:[%s3471 + $0x2ac] sm:$0xf] %v3654
                %v3656 = vld [vmem:[%s3470 + $0x170] sm:$0xf]
                %3657 = vst [vmem:[%s3471 + $0x2b0] sm:$0xf] %v3656
                %v3658 = vld [vmem:[%s3470 + $0x174] sm:$0xf]
                %3659 = vst [vmem:[%s3471 + $0x2b4] sm:$0xf] %v3658
                %v3660 = vld [vmem:[%s3470 + $0x178] sm:$0xf]
                %3661 = vst [vmem:[%s3471 + $0x2b8] sm:$0xf] %v3660
                %v3662 = vld [vmem:[%s3470 + $0x17c] sm:$0xf]
                %3663 = vst [vmem:[%s3471 + $0x2bc] sm:$0xf] %v3662
                %v3664 = vld [vmem:[%s3470 + $0x180] sm:$0xf]
                %3665 = vst [vmem:[%s3471 + $0x300] sm:$0xf] %v3664
                %v3666 = vld [vmem:[%s3470 + $0x184] sm:$0xf]
                %3667 = vst [vmem:[%s3471 + $0x304] sm:$0xf] %v3666
                %v3668 = vld [vmem:[%s3470 + $0x188] sm:$0xf]
                %3669 = vst [vmem:[%s3471 + $0x308] sm:$0xf] %v3668
                %v3670 = vld [vmem:[%s3470 + $0x18c] sm:$0xf]
                %3671 = vst [vmem:[%s3471 + $0x30c] sm:$0xf] %v3670
                %v3672 = vld [vmem:[%s3470 + $0x190] sm:$0xf]
                %3673 = vst [vmem:[%s3471 + $0x310] sm:$0xf] %v3672
                %v3674 = vld [vmem:[%s3470 + $0x194] sm:$0xf]
                %3675 = vst [vmem:[%s3471 + $0x314] sm:$0xf] %v3674
                %v3676 = vld [vmem:[%s3470 + $0x198] sm:$0xf]
                %3677 = vst [vmem:[%s3471 + $0x318] sm:$0xf] %v3676
                %v3678 = vld [vmem:[%s3470 + $0x19c] sm:$0xf]
                %3679 = vst [vmem:[%s3471 + $0x31c] sm:$0xf] %v3678
                %v3680 = vld [vmem:[%s3470 + $0x1a0] sm:$0xf]
                %3681 = vst [vmem:[%s3471 + $0x320] sm:$0xf] %v3680
                %v3682 = vld [vmem:[%s3470 + $0x1a4] sm:$0xf]
                %3683 = vst [vmem:[%s3471 + $0x324] sm:$0xf] %v3682
                %v3684 = vld [vmem:[%s3470 + $0x1a8] sm:$0xf]
                %3685 = vst [vmem:[%s3471 + $0x328] sm:$0xf] %v3684
                %v3686 = vld [vmem:[%s3470 + $0x1ac] sm:$0xf]
                %3687 = vst [vmem:[%s3471 + $0x32c] sm:$0xf] %v3686
                %v3688 = vld [vmem:[%s3470 + $0x1b0] sm:$0xf]
                %3689 = vst [vmem:[%s3471 + $0x330] sm:$0xf] %v3688
                %v3690 = vld [vmem:[%s3470 + $0x1b4] sm:$0xf]
                %3691 = vst [vmem:[%s3471 + $0x334] sm:$0xf] %v3690
                %v3692 = vld [vmem:[%s3470 + $0x1b8] sm:$0xf]
                %3693 = vst [vmem:[%s3471 + $0x338] sm:$0xf] %v3692
                %v3694 = vld [vmem:[%s3470 + $0x1bc] sm:$0xf]
                %3695 = vst [vmem:[%s3471 + $0x33c] sm:$0xf] %v3694
                %v3696 = vld [vmem:[%s3470 + $0x1c0] sm:$0xf]
                %3697 = vst [vmem:[%s3471 + $0x380] sm:$0xf] %v3696
                %v3698 = vld [vmem:[%s3470 + $0x1c4] sm:$0xf]
                %3699 = vst [vmem:[%s3471 + $0x384] sm:$0xf] %v3698
                %v3700 = vld [vmem:[%s3470 + $0x1c8] sm:$0xf]
                %3701 = vst [vmem:[%s3471 + $0x388] sm:$0xf] %v3700
                %v3702 = vld [vmem:[%s3470 + $0x1cc] sm:$0xf]
                %3703 = vst [vmem:[%s3471 + $0x38c] sm:$0xf] %v3702
                %v3704 = vld [vmem:[%s3470 + $0x1d0] sm:$0xf]
                %3705 = vst [vmem:[%s3471 + $0x390] sm:$0xf] %v3704
                %v3706 = vld [vmem:[%s3470 + $0x1d4] sm:$0xf]
                %3707 = vst [vmem:[%s3471 + $0x394] sm:$0xf] %v3706
                %v3708 = vld [vmem:[%s3470 + $0x1d8] sm:$0xf]
                %3709 = vst [vmem:[%s3471 + $0x398] sm:$0xf] %v3708
                %v3710 = vld [vmem:[%s3470 + $0x1dc] sm:$0xf]
                %3711 = vst [vmem:[%s3471 + $0x39c] sm:$0xf] %v3710
                %v3712 = vld [vmem:[%s3470 + $0x1e0] sm:$0xf]
                %3713 = vst [vmem:[%s3471 + $0x3a0] sm:$0xf] %v3712
                %v3714 = vld [vmem:[%s3470 + $0x1e4] sm:$0xf]
                %3715 = vst [vmem:[%s3471 + $0x3a4] sm:$0xf] %v3714
                %v3716 = vld [vmem:[%s3470 + $0x1e8] sm:$0xf]
                %3717 = vst [vmem:[%s3471 + $0x3a8] sm:$0xf] %v3716
                %v3718 = vld [vmem:[%s3470 + $0x1ec] sm:$0xf]
                %3719 = vst [vmem:[%s3471 + $0x3ac] sm:$0xf] %v3718
                %v3720 = vld [vmem:[%s3470 + $0x1f0] sm:$0xf]
                %3721 = vst [vmem:[%s3471 + $0x3b0] sm:$0xf] %v3720
                %v3722 = vld [vmem:[%s3470 + $0x1f4] sm:$0xf]
                %3723 = vst [vmem:[%s3471 + $0x3b4] sm:$0xf] %v3722
                %v3724 = vld [vmem:[%s3470 + $0x1f8] sm:$0xf]
                %3725 = vst [vmem:[%s3471 + $0x3b8] sm:$0xf] %v3724
                %v3726 = vld [vmem:[%s3470 + $0x1fc] sm:$0xf]
                %3727 = vst [vmem:[%s3471 + $0x3bc] sm:$0xf] %v3726
              $region143: #{tpu_custom_call.1} parent=137 // loop_footer
                %s3469 = sadd.s32 1, %s3465
              $region144: #{tpu_custom_call.1} parent=137 // loop_footer_branch
                %3464 = sbr.rel target = $region140
              $region145: #{tpu_custom_call.1} parent=137 // loop_exit
                _
            $region138: #{tpu_custom_call.1} parent=129 // pred_fallthru
              _
          $region130: #{tpu_custom_call.1} parent=125 // pred_fallthru
            _
          %4003 = vnop
        $region126: #{tpu_custom_call.1} parent=31 // pred_fallthru
          _
      $region32: #{tpu_custom_call.1} parent=5 // pred_fallthru
        _
      %p4004 = scmp.le.s32.totalorder 2, %s16
      // Predicated region
      $region164: #{tpu_custom_call.1} parent=5 // pred_check
        %p4005 = pneg %p4004
      $region165: #{tpu_custom_call.1} parent=5 // pred_check_branch
        %4007 = sbr.rel (%p4005) target = $region167
      $region166: #{tpu_custom_call.1} parent=5 // pred_region
        %s4008 = ssub.s32 %s16, 2
        // Predicated region
        $region168: #{tpu_custom_call.1} parent=166 // pred_check
          %p4009 = pneg %p129
        $region169: #{tpu_custom_call.1} parent=166 // pred_check_branch
          %4011 = sbr.rel (%p4009) target = $region171
        $region170: #{tpu_custom_call.1} parent=166 // pred_region
          %s4012 = sand.u32 %s114, 1
          %s4013 = sand.u32 %s114, 1
          %s4014 = smul.addr %s4013, 512
          %s4015 = scalar_lea.vmem [#allocation6], %s4014
        $region171: #{tpu_custom_call.1} parent=166 // pred_fallthru
          _
        // Predicated region
        $region172: #{tpu_custom_call.1} parent=166 // pred_check
          %p4016 = pneg %p157
        $region173: #{tpu_custom_call.1} parent=166 // pred_check_branch
          %4018 = sbr.rel (%p4016) target = $region175
        $region174: #{tpu_custom_call.1} parent=166 // pred_region
          %s4019 = sand.u32 %s142, 1
          %s4020 = sand.u32 %s142, 1
          %s4021 = smul.addr %s4020, 512
          %s4022 = scalar_lea.vmem [#allocation7], %s4021
        $region175: #{tpu_custom_call.1} parent=166 // pred_fallthru
          _
        // Predicated region
        $region176: #{tpu_custom_call.1} parent=166 // pred_check
          %p4023 = pneg %p185
        $region177: #{tpu_custom_call.1} parent=166 // pred_check_branch
          %4025 = sbr.rel (%p4023) target = $region179
        $region178: #{tpu_custom_call.1} parent=166 // pred_region
          %s4026 = sand.u32 %s170, 1
          %s4027 = sand.u32 %s170, 1
          %s4028 = smul.addr %s4027, 512
          %s4029 = scalar_lea.vmem [#allocation8], %s4028
        $region179: #{tpu_custom_call.1} parent=166 // pred_fallthru
          _
      $region167: #{tpu_custom_call.1} parent=5 // pred_fallthru
        _
    $region6: #{tpu_custom_call.1} parent=1 // loop_footer
      %s20 = sadd.s32 1, %s16
    $region7: #{tpu_custom_call.1} parent=1 // loop_footer_branch
      %15 = sbr.rel target = $region3
    $region8: #{tpu_custom_call.1} parent=1 // loop_exit
      _
    %4030 = vsyncpa [#allocation3], 1
    %s4031 = scalar_lea.sflag [#allocation3], 1
    %4032 = vsyncpa %s4031, 1
    %4033 = vsyncpa [#allocation5], 1

</llo_original>
